<compile_context>
chip_gen: v7x
topology: tpu7x:2x2x1
jax: 0.10.0
libtpu: 0.0.40
codegen_flags: <defaults>
</compile_context>

<pallas_src>
import functools
import math

import jax
import jax.numpy as jnp
from jax.experimental import pallas as pl
from jax.experimental.pallas import tpu as pltpu

LEAKY_SLOPE = 0.01   # nn.LeakyReLU default negative_slope
BN_EPS = 1e-5        # nn.BatchNorm1d default eps

# Tile caps: comfortably fit double-buffered bf16 inputs + f32 acc in <4 MiB VMEM,
# safe for v5e (16 MiB scoped default), v6e and v7x (64 MiB physical).
_TM_CAP, _TN_CAP, _TK_CAP = 256, 512, 512
_VMEM_LIMIT = 32 * 1024 * 1024


def _round_up(x, m):
    return ((x + m - 1) // m) * m


# ---------------------------------------------------------------------------
# Kernel 1: tiled matmul + bias (+ optional BN affine fold) (+ optional LeakyReLU)
# ---------------------------------------------------------------------------
def _matmul_kernel(*refs, apply_affine, apply_act):
    if apply_affine:
        x_ref, w_ref, b_ref, scale_ref, shift_ref, o_ref, acc_ref = refs
    else:
        x_ref, w_ref, b_ref, o_ref, acc_ref = refs
        scale_ref = shift_ref = None

    k = pl.program_id(2)

    @pl.when(k == 0)
    def _():
        acc_ref[...] = jnp.zeros_like(acc_ref)

    acc_ref[...] += jnp.dot(x_ref[...], w_ref[...],
                            preferred_element_type=jnp.float32)

    @pl.when(k == pl.num_programs(2) - 1)
    def _():
        y = acc_ref[...] + b_ref[...]
        if apply_affine:
            y = y * scale_ref[...] + shift_ref[...]   # BatchNorm (eval) folded
        if apply_act:
            y = jnp.where(y > 0, y, LEAKY_SLOPE * y)  # LeakyReLU
        o_ref[...] = y


def fused_matmul(x, w, b, scale=None, shift=None, *, apply_act=False):
    """y = act(((x @ w) + b) * scale + shift); bf16 MXU inputs, f32 accumulation."""
    M, K = x.shape
    K2, N = w.shape
    assert K == K2
    apply_affine = scale is not None

    tm = min(_round_up(M, 16), _TM_CAP)
    tn = min(_round_up(N, 128), _TN_CAP)
    tk = min(_round_up(K, 128), _TK_CAP)
    Mp, Np, Kp = _round_up(M, tm), _round_up(N, tn), _round_up(K, tk)

    xp = jnp.pad(x, ((0, Mp - M), (0, Kp - K))).astype(jnp.bfloat16)
    wp = jnp.pad(w, ((0, Kp - K), (0, Np - N))).astype(jnp.bfloat16)
    bp = jnp.pad(b.reshape(1, N), ((0, 0), (0, Np - N))).astype(jnp.float32)

    in_specs = [
        pl.BlockSpec((tm, tk), lambda i, j, k: (i, k)),
        pl.BlockSpec((tk, tn), lambda i, j, k: (k, j)),
        pl.BlockSpec((1, tn), lambda i, j, k: (0, j)),
    ]
    args = [xp, wp, bp]
    if apply_affine:
        sp = jnp.pad(scale.reshape(1, N), ((0, 0), (0, Np - N))).astype(jnp.float32)
        hp = jnp.pad(shift.reshape(1, N), ((0, 0), (0, Np - N))).astype(jnp.float32)
        in_specs += [pl.BlockSpec((1, tn), lambda i, j, k: (0, j)),
                     pl.BlockSpec((1, tn), lambda i, j, k: (0, j))]
        args += [sp, hp]

    kernel = functools.partial(_matmul_kernel,
                               apply_affine=apply_affine, apply_act=apply_act)
    out = pl.pallas_call(
        kernel,
        out_shape=jax.ShapeDtypeStruct((Mp, Np), jnp.float32),
        grid_spec=pltpu.PrefetchScalarGridSpec(
            num_scalar_prefetch=0,
            grid=(Mp // tm, Np // tn, Kp // tk),
            in_specs=in_specs,
            out_specs=pl.BlockSpec((tm, tn), lambda i, j, k: (i, j)),
            scratch_shapes=[pltpu.VMEM((tm, tn), jnp.float32)],
        ),
        compiler_params=pltpu.CompilerParams(
            dimension_semantics=("parallel", "parallel", "arbitrary"),
            vmem_limit_bytes=_VMEM_LIMIT,
        ),
    )(*args)
    return out[:M, :N]


# ---------------------------------------------------------------------------
# Kernel 2: fc_mu + fc_var (one concatenated matmul) + reparameterize +
#           decoder_input Linear, all in one kernel (z never leaves VMEM)
# ---------------------------------------------------------------------------
def _latent_dec_kernel(x_ref, w_ref, b_ref, eps_ref, wd_ref, bd_ref,
                       mu_ref, lv_ref, d_ref, acc_ref):
    k = pl.program_id(0)

    @pl.when(k == 0)
    def _():
        acc_ref[...] = jnp.zeros_like(acc_ref)

    acc_ref[...] += jnp.dot(x_ref[...], w_ref[...],
                            preferred_element_type=jnp.float32)

    @pl.when(k == pl.num_programs(0) - 1)
    def _():
        dp = mu_ref.shape[1]                 # lane-aligned (multiple of 128) split
        y = acc_ref[...] + b_ref[...]
        mu = y[:, :dp]
        lv = y[:, dp:]
        mu_ref[...] = mu
        lv_ref[...] = lv
        z = eps_ref[...] * jnp.exp(0.5 * lv) + mu           # exp -> EUP slot
        d_ref[...] = jnp.dot(z.astype(wd_ref.dtype), wd_ref[...],
                             preferred_element_type=jnp.float32) + bd_ref[...]


def latent_and_decoder_input(flat, w_mu, b_mu, w_var, b_var, eps,
                             w_dec, b_dec, latent_dim):
    """Returns (mu, logvar, decoder_input_activation)."""
    B, K = flat.shape
    D = latent_dim
    Nd = w_dec.shape[1]
    Dp = _round_up(D, 128)
    Ndp = _round_up(Nd, 128)
    Bp = _round_up(B, 16)
    tk = min(_round_up(K, 128), _TK_CAP)
    Kp = _round_up(K, tk)

    w_cat = jnp.concatenate(
        [jnp.pad(w_mu, ((0, Kp - K), (0, Dp - D))),
         jnp.pad(w_var, ((0, Kp - K), (0, Dp - D)))], axis=1).astype(jnp.bfloat16)
    b_cat = jnp.concatenate(
        [jnp.pad(b_mu, (0, Dp - D)),
         jnp.pad(b_var, (0, Dp - D))]).reshape(1, 2 * Dp).astype(jnp.float32)
    xp = jnp.pad(flat, ((0, Bp - B), (0, Kp - K))).astype(jnp.bfloat16)
    ep = jnp.pad(eps, ((0, Bp - B), (0, Dp - D))).astype(jnp.float32)
    # padded latent lanes: mu=0, logvar=0, eps=0 -> z padded lanes hit zero rows of wdp
    wdp = jnp.pad(w_dec, ((0, Dp - D), (0, Ndp - Nd))).astype(jnp.bfloat16)
    bdp = jnp.pad(b_dec.reshape(1, Nd), ((0, 0), (0, Ndp - Nd))).astype(jnp.float32)

    mu, logvar, d = pl.pallas_call(
        _latent_dec_kernel,
        out_shape=(jax.ShapeDtypeStruct((Bp, Dp), jnp.float32),
                   jax.ShapeDtypeStruct((Bp, Dp), jnp.float32),
                   jax.ShapeDtypeStruct((Bp, Ndp), jnp.float32)),
        grid_spec=pltpu.PrefetchScalarGridSpec(
            num_scalar_prefetch=0,
            grid=(Kp // tk,),
            in_specs=[
                pl.BlockSpec((Bp, tk), lambda k: (0, k)),
                pl.BlockSpec((tk, 2 * Dp), lambda k: (k, 0)),
                pl.BlockSpec((1, 2 * Dp), lambda k: (0, 0)),
                pl.BlockSpec((Bp, Dp), lambda k: (0, 0)),
                pl.BlockSpec((Dp, Ndp), lambda k: (0, 0)),
                pl.BlockSpec((1, Ndp), lambda k: (0, 0)),
            ],
            out_specs=(pl.BlockSpec((Bp, Dp), lambda k: (0, 0)),
                       pl.BlockSpec((Bp, Dp), lambda k: (0, 0)),
                       pl.BlockSpec((Bp, Ndp), lambda k: (0, 0))),
            scratch_shapes=[pltpu.VMEM((Bp, 2 * Dp), jnp.float32)],
        ),
        compiler_params=pltpu.CompilerParams(
            dimension_semantics=("arbitrary",),
            vmem_limit_bytes=_VMEM_LIMIT,
        ),
    )(xp, w_cat, b_cat, ep, wdp, bdp)
    return mu[:B, :D], logvar[:B, :D], d[:B, :Nd]


# ---------------------------------------------------------------------------
# Kernel 3: final_layer1 -> final_layer2 chained, intermediate stays on-chip
# ---------------------------------------------------------------------------
def _final_kernel(x_ref, w1_ref, b1_ref, w2_ref, b2_ref, o_ref, acc_ref):
    k = pl.program_id(0)

    @pl.when(k == 0)
    def _():
        acc_ref[...] = jnp.zeros_like(acc_ref)

    acc_ref[...] += jnp.dot(x_ref[...], w1_ref[...],
                            preferred_element_type=jnp.float32)

    @pl.when(k == pl.num_programs(0) - 1)
    def _():
        r = acc_ref[...] + b1_ref[...]                       # fl1 output, on-chip only
        o_ref[...] = jnp.dot(r.astype(w2_ref.dtype), w2_ref[...],
                             preferred_element_type=jnp.float32) + b2_ref[...]


def final_layers(flat, w1, b1, w2, b2):
    # TODO(synk): for very large C*S the (Np, Np) w2 block would need N-tiling;
    # at VAE-typical sizes it fits VMEM as a single resident block.
    B, K1 = flat.shape
    N = w1.shape[1]
    Np = _round_up(N, 128)
    Bp = _round_up(B, 16)
    tk = min(_round_up(K1, 128), _TK_CAP)
    K1p = _round_up(K1, tk)

    xp = jnp.pad(flat, ((0, Bp - B), (0, K1p - K1))).astype(jnp.bfloat16)
    w1p = jnp.pad(w1, ((0, K1p - K1), (0, Np - N))).astype(jnp.bfloat16)
    b1p = jnp.pad(b1.reshape(1, N), ((0, 0), (0, Np - N))).astype(jnp.float32)
    w2p = jnp.pad(w2, ((0, Np - N), (0, Np - N))).astype(jnp.bfloat16)
    b2p = jnp.pad(b2.reshape(1, N), ((0, 0), (0, Np - N))).astype(jnp.float32)

    out = pl.pallas_call(
        _final_kernel,
        out_shape=jax.ShapeDtypeStruct((Bp, Np), jnp.float32),
        grid_spec=pltpu.PrefetchScalarGridSpec(
            num_scalar_prefetch=0,
            grid=(K1p // tk,),
            in_specs=[
                pl.BlockSpec((Bp, tk), lambda k: (0, k)),
                pl.BlockSpec((tk, Np), lambda k: (k, 0)),
                pl.BlockSpec((1, Np), lambda k: (0, 0)),
                pl.BlockSpec((Np, Np), lambda k: (0, 0)),
                pl.BlockSpec((1, Np), lambda k: (0, 0)),
            ],
            out_specs=pl.BlockSpec((Bp, Np), lambda k: (0, 0)),
            scratch_shapes=[pltpu.VMEM((Bp, Np), jnp.float32)],
        ),
        compiler_params=pltpu.CompilerParams(
            dimension_semantics=("arbitrary",),
            vmem_limit_bytes=_VMEM_LIMIT,
        ),
    )(xp, w1p, b1p, w2p, b2p)
    return out[:B, :N]


# ---------------------------------------------------------------------------
# JAX glue: channels-last im2col for Conv1d / ConvTranspose1d -> matmul
# ---------------------------------------------------------------------------
def _im2col_channels_last(x_blc, kernel, stride, pad_left, pad_right):
    """x_blc: [B, L, C] -> patches [B*L_out, kernel*C] (columns ordered (k, c))."""
    B, L, C = x_blc.shape
    xp = jnp.pad(x_blc, ((0, 0), (pad_left, pad_right), (0, 0)))
    Lp = L + pad_left + pad_right
    L_out = (Lp - kernel) // stride + 1
    idx = jnp.arange(L_out)[:, None] * stride + jnp.arange(kernel)[None, :]  # [L_out, K]
    patches = xp[:, idx, :]                                 # [B, L_out, K, C]
    return patches.reshape(B * L_out, kernel * C), L_out


def _zero_stuff(x_blc, stride):
    """Insert stride-1 zeros between consecutive positions along L (no scatter)."""
    B, L, C = x_blc.shape
    z = jnp.zeros((B, L, stride - 1, C), x_blc.dtype)
    xz = jnp.concatenate([x_blc[:, :, None, :], z], axis=2).reshape(B, L * stride, C)
    return xz[:, : (L - 1) * stride + 1, :]


def conv_bn_lrelu(x_blc, p):
    """Conv1d(k=3, s=2, p=1) + BatchNorm1d(eval) + LeakyReLU; [B, L, Cin] -> [B, L_out, Cout]."""
    B = x_blc.shape[0]
    patches, L_out = _im2col_channels_last(x_blc, kernel=3, stride=2, pad_left=1, pad_right=1)
    Cout, Cin, K = p['w'].shape
    # rows ordered (k, cin): w2d[k*Cin + c, cout] = w[cout, c, k]
    w2d = jnp.transpose(p['w'], (2, 1, 0)).reshape(K * Cin, Cout)
    scale = p['gamma'] * jax.lax.rsqrt(p['rv'] + BN_EPS)
    shift = p['beta'] - p['rm'] * scale
    y = fused_matmul(patches, w2d, p['b'], scale, shift, apply_act=True)  # [B*L_out, Cout]
    return y.reshape(B, L_out, Cout)


def convT_bn_lrelu(x_blc, p):
    """ConvTranspose1d(k=3, s=2, p=1, output_padding=1) + BN(eval) + LeakyReLU (channels-last)."""
    B = x_blc.shape[0]
    K, stride, pad, out_pad = 3, 2, 1, 1
    xz = _zero_stuff(x_blc, stride)
    patches, L_out = _im2col_channels_last(xz, kernel=K, stride=1,
                                           pad_left=K - 1 - pad,
                                           pad_right=K - 1 - pad + out_pad)
    Cin, Cout, Kw = p['w'].shape
    # direct-conv equivalent: W_conv[co, ci, k] = W_t[ci, co, K-1-k]; rows ordered (k, cin)
    wf = p['w'][:, :, ::-1]                                  # [Cin, Cout, K]
    w2d = jnp.transpose(wf, (2, 0, 1)).reshape(K * Cin, Cout)
    scale = p['gamma'] * jax.lax.rsqrt(p['rv'] + BN_EPS)
    shift = p['beta'] - p['rm'] * scale
    y = fused_matmul(patches, w2d, p['b'], scale, shift, apply_act=True)
    return y.reshape(B, L_out, Cout)


# ---------------------------------------------------------------------------
# Parameters (deterministic, in-script)
# ---------------------------------------------------------------------------
def init_params(key, in_channels, latent_dim, seq_len, hidden_dim):
    C, S, H = in_channels, seq_len, hidden_dim
    hidden_enc = [C, 2 * H, 4 * H, 8 * H]
    last_hidden = hidden_enc[-1]
    lat_mult = math.ceil(S / 2 ** 3)
    keys = iter(jax.random.split(key, 16))

    def linear(k, fin, fout):
        return {'w': jax.random.normal(k, (fin, fout), jnp.float32) / math.sqrt(fin),
                'b': jnp.zeros((fout,), jnp.float32)}

    def conv_block(k, w_shape, cout, fan_in):
        # TODO(synk): BatchNorm1d is applied in eval mode (running stats fold);
        # training-mode batch statistics are out of scope for this forward kernel.
        return {'w': jax.random.normal(k, w_shape, jnp.float32) / math.sqrt(fan_in),
                'b': jnp.zeros((cout,), jnp.float32),
                'gamma': jnp.ones((cout,), jnp.float32),
                'beta': jnp.zeros((cout,), jnp.float32),
                'rm': jnp.zeros((cout,), jnp.float32),
                'rv': jnp.ones((cout,), jnp.float32)}

    params = {'enc': [], 'dec': []}
    for i in range(3):
        cin, cout = hidden_enc[i], hidden_enc[i + 1]
        params['enc'].append(conv_block(next(keys), (cout, cin, 3), cout, fan_in=cin * 3))
    params['fc_mu'] = linear(next(keys), last_hidden * lat_mult, latent_dim)
    params['fc_var'] = linear(next(keys), last_hidden * lat_mult, latent_dim)
    params['dec_in'] = linear(next(keys), latent_dim, last_hidden * lat_mult)
    hidden_dec = [8 * H, 4 * H, 2 * H, 5 * C]
    for i in range(3):
        cin, cout = hidden_dec[i], hidden_dec[i + 1]
        params['dec'].append(conv_block(next(keys), (cin, cout, 3), cout, fan_in=cin * 3))
    params['fl1'] = linear(next(keys), 5 * C * S, C * S)
    params['fl2'] = linear(next(keys), C * S, C * S)
    meta = dict(C=C, S=S, latent_dim=latent_dim,
                last_hidden=last_hidden, lat_mult=lat_mult)
    return params, meta


# ---------------------------------------------------------------------------
# Forward pass
# ---------------------------------------------------------------------------
def vae_forward(params, x_bsc, eps, *, meta):
    """x_bsc: [B, seq_len, in_channels]; returns (recon [B, S, C], mu [B, D], logvar [B, D])."""
    C, S, D = meta['C'], meta['S'], meta['latent_dim']
    last_hidden, lat_mult = meta['last_hidden'], meta['lat_mult']
    B = x_bsc.shape[0]

    # ---- encode ----  (activations kept channels-last [B, L, C])
    h = x_bsc.astype(jnp.float32)
    for p in params['enc']:
        h = conv_bn_lrelu(h, p)
    # torch.flatten of NCL [B, C_last, L_last] is channel-major; small transpose to match
    flat = jnp.transpose(h, (0, 2, 1)).reshape(B, -1)        # [B, last_hidden * lat_mult]

    # ---- fc_mu + fc_var + reparameterize + decoder_input, fused in one kernel ----
    mu, logvar, d = latent_and_decoder_input(
        flat,
        params['fc_mu']['w'], params['fc_mu']['b'],
        params['fc_var']['w'], params['fc_var']['b'],
        eps,
        params['dec_in']['w'], params['dec_in']['b'],
        D)

    # ---- decode ----
    h = jnp.transpose(d.reshape(B, last_hidden, lat_mult), (0, 2, 1))  # [B, lat_mult, last_hidden]
    for p in params['dec']:
        h = convT_bn_lrelu(h, p)
    # TODO(synk): nn.Dropout(0.1) is implemented as identity (eval-mode semantics).
    flat = jnp.transpose(h, (0, 2, 1)).reshape(B, -1)        # [B, 5*C*S], channel-major like torch
    r = final_layers(flat, params['fl1']['w'], params['fl1']['b'],
                     params['fl2']['w'], params['fl2']['b'])
    recon = r.reshape(B, S, C)
    return recon, mu, logvar


if __name__ == "__main__":
    B, C, S, H, LAT = 2, 4, 16, 32, 16
    key = jax.random.PRNGKey(0)
    k_param, k_x, k_eps = jax.random.split(key, 3)

    params, meta = init_params(k_param, in_channels=C, latent_dim=LAT, seq_len=S, hidden_dim=H)
    x = jax.random.normal(k_x, (B, S, C), jnp.float32)       # model input [B, seq_len, C]
    eps = jax.random.normal(k_eps, (B, LAT), jnp.float32)    # stands in for torch.randn_like

    forward = jax.jit(functools.partial(vae_forward, meta=meta))
    recon, mu, logvar = forward(params, x, eps)
    jax.block_until_ready((recon, mu, logvar))

    assert recon.shape == (B, S, C), recon.shape
    assert mu.shape == (B, LAT) and logvar.shape == (B, LAT)
    assert bool(jnp.all(jnp.isfinite(recon)))
    assert bool(jnp.all(jnp.isfinite(mu))) and bool(jnp.all(jnp.isfinite(logvar)))
    print("KERNEL_OK")
</pallas_src>

<mosaic_0001>
module attributes {stable_mosaic.version = 11 : i64} {
  func.func @_matmul_kernel(%arg0: i32, %arg1: i32, %arg2: i32, %arg3: memref<16x128xbf16, #tpu.memory_space<vmem>>, %arg4: memref<128x128xbf16, #tpu.memory_space<vmem>>, %arg5: memref<1x128xf32, #tpu.memory_space<vmem>>, %arg6: memref<1x128xf32, #tpu.memory_space<vmem>>, %arg7: memref<1x128xf32, #tpu.memory_space<vmem>>, %arg8: memref<16x128xf32, #tpu.memory_space<vmem>>, %arg9: memref<16x128xf32, #tpu.memory_space<vmem>>) attributes {dimension_semantics = [#tpu.dimension_semantics<parallel>, #tpu.dimension_semantics<parallel>, #tpu.dimension_semantics<arbitrary>], iteration_bounds = array<i64: 1, 1, 1>, scalar_prefetch = 0 : i64, scratch_operands = 1 : i64, tpu.core_type = #tpu.core_type<tc>, window_params = [{transform_indices = @transform_0, window_bounds = array<i64: 16, 128>}, {transform_indices = @transform_1, window_bounds = array<i64: 128, 128>}, {transform_indices = @transform_2, window_bounds = array<i64: 1, 128>}, {transform_indices = @transform_3, window_bounds = array<i64: 1, 128>}, {transform_indices = @transform_4, window_bounds = array<i64: 1, 128>}, {transform_indices = @transform_5, window_bounds = array<i64: 16, 128>}]} {
    %c0_i32 = arith.constant 0 : i32
    %0 = arith.cmpi eq, %arg2, %c0_i32 : i32
    %1 = arith.extui %0 : i1 to i32
    %c0_i32_0 = arith.constant 0 : i32
    %2 = arith.cmpi ne, %1, %c0_i32_0 : i32
    scf.if %2 {
      %cst_10 = arith.constant 0.000000e+00 : f32
      %12 = vector.broadcast %cst_10 : f32 to vector<16x128xf32>
      %c0_11 = arith.constant 0 : index
      %c0_12 = arith.constant 0 : index
      %13 = vector.load %arg9[%c0_11, %c0_12] : memref<16x128xf32, #tpu.memory_space<vmem>>, vector<16x128xf32>
      tpu.vector_store %arg9[%c0_11, %c0_12], %12 {strides = array<i32>} : memref<16x128xf32, #tpu.memory_space<vmem>>, vector<16x128xf32>,
    } else {
    }
    %c0 = arith.constant 0 : index
    %c0_1 = arith.constant 0 : index
    %3 = vector.load %arg9[%c0, %c0_1] : memref<16x128xf32, #tpu.memory_space<vmem>>, vector<16x128xf32>
    %c0_2 = arith.constant 0 : index
    %c0_3 = arith.constant 0 : index
    %4 = vector.load %arg3[%c0_2, %c0_3] : memref<16x128xbf16, #tpu.memory_space<vmem>>, vector<16x128xbf16>
    %c0_4 = arith.constant 0 : index
    %c0_5 = arith.constant 0 : index
    %5 = vector.load %arg4[%c0_4, %c0_5] : memref<128x128xbf16, #tpu.memory_space<vmem>>, vector<128x128xbf16>
    %cst = arith.constant dense<0.000000e+00> : vector<16x128xf32>
    %6 = tpu.matmul %4, %5, %cst {dimension_numbers = #tpu.dot_dimension_numbers<[1], [0], [0], [1], [0, 0, 1, 1], [], []>} : vector<16x128xbf16>, vector<128x128xbf16>, vector<16x128xf32> -> vector<16x128xf32>
    %7 = arith.addf %3, %6 : vector<16x128xf32>
    %c0_6 = arith.constant 0 : index
    %c0_7 = arith.constant 0 : index
    %8 = vector.load %arg9[%c0_6, %c0_7] : memref<16x128xf32, #tpu.memory_space<vmem>>, vector<16x128xf32>
    tpu.vector_store %arg9[%c0_6, %c0_7], %7 {strides = array<i32>} : memref<16x128xf32, #tpu.memory_space<vmem>>, vector<16x128xf32>,
    %c0_i32_8 = arith.constant 0 : i32
    %9 = arith.cmpi eq, %arg2, %c0_i32_8 : i32
    %10 = arith.extui %9 : i1 to i32
    %c0_i32_9 = arith.constant 0 : i32
    %11 = arith.cmpi ne, %10, %c0_i32_9 : i32
    scf.if %11 {
      %c0_10 = arith.constant 0 : index
      %c0_11 = arith.constant 0 : index
      %12 = vector.load %arg9[%c0_10, %c0_11] : memref<16x128xf32, #tpu.memory_space<vmem>>, vector<16x128xf32>
      %c0_12 = arith.constant 0 : index
      %c0_13 = arith.constant 0 : index
      %13 = vector.load %arg5[%c0_12, %c0_13] : memref<1x128xf32, #tpu.memory_space<vmem>>, vector<1x128xf32>
      %14 = vector.broadcast %13 : vector<1x128xf32> to vector<16x128xf32>
      %15 = arith.addf %12, %14 : vector<16x128xf32>
      %c0_14 = arith.constant 0 : index
      %c0_15 = arith.constant 0 : index
      %16 = vector.load %arg6[%c0_14, %c0_15] : memref<1x128xf32, #tpu.memory_space<vmem>>, vector<1x128xf32>
      %17 = vector.broadcast %16 : vector<1x128xf32> to vector<16x128xf32>
      %18 = arith.mulf %15, %17 : vector<16x128xf32>
      %c0_16 = arith.constant 0 : index
      %c0_17 = arith.constant 0 : index
      %19 = vector.load %arg7[%c0_16, %c0_17] : memref<1x128xf32, #tpu.memory_space<vmem>>, vector<1x128xf32>
      %20 = vector.broadcast %19 : vector<1x128xf32> to vector<16x128xf32>
      %21 = arith.addf %18, %20 : vector<16x128xf32>
      %cst_18 = arith.constant 0.000000e+00 : f32
      %22 = vector.broadcast %cst_18 : f32 to vector<16x128xf32>
      %23 = arith.cmpf ogt, %21, %22 : vector<16x128xf32>
      %cst_19 = arith.constant 0.00999999977 : f32
      %24 = vector.broadcast %cst_19 : f32 to vector<16x128xf32>
      %25 = arith.mulf %24, %21 : vector<16x128xf32>
      %26 = arith.select %23, %21, %25 : vector<16x128xi1>, vector<16x128xf32>
      %c0_20 = arith.constant 0 : index
      %c0_21 = arith.constant 0 : index
      %27 = vector.load %arg8[%c0_20, %c0_21] : memref<16x128xf32, #tpu.memory_space<vmem>>, vector<16x128xf32>
      tpu.vector_store %arg8[%c0_20, %c0_21], %26 {strides = array<i32>} : memref<16x128xf32, #tpu.memory_space<vmem>>, vector<16x128xf32>,
    } else {
    }
    return
  }
  func.func @transform_0(%arg0: i32, %arg1: i32, %arg2: i32) -> (i32, i32) {
    %c0_i32 = arith.constant 0 : i32
    return %arg0, %arg2 : i32, i32
  }
  func.func @transform_1(%arg0: i32, %arg1: i32, %arg2: i32) -> (i32, i32) {
    %c0_i32 = arith.constant 0 : i32
    return %arg2, %arg1 : i32, i32
  }
  func.func @transform_2(%arg0: i32, %arg1: i32, %arg2: i32) -> (i32, i32) {
    %c0_i32 = arith.constant 0 : i32
    %c0_i32_0 = arith.constant 0 : i32
    return %c0_i32, %arg1 : i32, i32
  }
  func.func @transform_3(%arg0: i32, %arg1: i32, %arg2: i32) -> (i32, i32) {
    %c0_i32 = arith.constant 0 : i32
    %c0_i32_0 = arith.constant 0 : i32
    return %c0_i32, %arg1 : i32, i32
  }
  func.func @transform_4(%arg0: i32, %arg1: i32, %arg2: i32) -> (i32, i32) {
    %c0_i32 = arith.constant 0 : i32
    %c0_i32_0 = arith.constant 0 : i32
    return %c0_i32, %arg1 : i32, i32
  }
  func.func @transform_5(%arg0: i32, %arg1: i32, %arg2: i32) -> (i32, i32) {
    %c0_i32 = arith.constant 0 : i32
    return %arg0, %arg1 : i32, i32
  }
}

module attributes {stable_mosaic.version = 11 : i64} {
  func.func @_matmul_kernel(%arg0: i32, %arg1: i32, %arg2: i32, %arg3: memref<16x256xbf16, #tpu.memory_space<vmem>>, %arg4: memref<256x128xbf16, #tpu.memory_space<vmem>>, %arg5: memref<1x128xf32, #tpu.memory_space<vmem>>, %arg6: memref<1x128xf32, #tpu.memory_space<vmem>>, %arg7: memref<1x128xf32, #tpu.memory_space<vmem>>, %arg8: memref<16x128xf32, #tpu.memory_space<vmem>>, %arg9: memref<16x128xf32, #tpu.memory_space<vmem>>) attributes {dimension_semantics = [#tpu.dimension_semantics<parallel>, #tpu.dimension_semantics<parallel>, #tpu.dimension_semantics<arbitrary>], iteration_bounds = array<i64: 1, 1, 1>, scalar_prefetch = 0 : i64, scratch_operands = 1 : i64, tpu.core_type = #tpu.core_type<tc>, window_params = [{transform_indices = @transform_0, window_bounds = array<i64: 16, 256>}, {transform_indices = @transform_1, window_bounds = array<i64: 256, 128>}, {transform_indices = @transform_2, window_bounds = array<i64: 1, 128>}, {transform_indices = @transform_3, window_bounds = array<i64: 1, 128>}, {transform_indices = @transform_4, window_bounds = array<i64: 1, 128>}, {transform_indices = @transform_5, window_bounds = array<i64: 16, 128>}]} {
    %c0_i32 = arith.constant 0 : i32
    %0 = arith.cmpi eq, %arg2, %c0_i32 : i32
    %1 = arith.extui %0 : i1 to i32
    %c0_i32_0 = arith.constant 0 : i32
    %2 = arith.cmpi ne, %1, %c0_i32_0 : i32
    scf.if %2 {
      %cst_10 = arith.constant 0.000000e+00 : f32
      %12 = vector.broadcast %cst_10 : f32 to vector<16x128xf32>
      %c0_11 = arith.constant 0 : index
      %c0_12 = arith.constant 0 : index
      %13 = vector.load %arg9[%c0_11, %c0_12] : memref<16x128xf32, #tpu.memory_space<vmem>>, vector<16x128xf32>
      tpu.vector_store %arg9[%c0_11, %c0_12], %12 {strides = array<i32>} : memref<16x128xf32, #tpu.memory_space<vmem>>, vector<16x128xf32>,
    } else {
    }
    %c0 = arith.constant 0 : index
    %c0_1 = arith.constant 0 : index
    %3 = vector.load %arg9[%c0, %c0_1] : memref<16x128xf32, #tpu.memory_space<vmem>>, vector<16x128xf32>
    %c0_2 = arith.constant 0 : index
    %c0_3 = arith.constant 0 : index
    %4 = vector.load %arg3[%c0_2, %c0_3] : memref<16x256xbf16, #tpu.memory_space<vmem>>, vector<16x256xbf16>
    %c0_4 = arith.constant 0 : index
    %c0_5 = arith.constant 0 : index
    %5 = vector.load %arg4[%c0_4, %c0_5] : memref<256x128xbf16, #tpu.memory_space<vmem>>, vector<256x128xbf16>
    %cst = arith.constant dense<0.000000e+00> : vector<16x128xf32>
    %6 = tpu.matmul %4, %5, %cst {dimension_numbers = #tpu.dot_dimension_numbers<[1], [0], [0], [1], [0, 0, 1, 1], [], []>} : vector<16x256xbf16>, vector<256x128xbf16>, vector<16x128xf32> -> vector<16x128xf32>
    %7 = arith.addf %3, %6 : vector<16x128xf32>
    %c0_6 = arith.constant 0 : index
    %c0_7 = arith.constant 0 : index
    %8 = vector.load %arg9[%c0_6, %c0_7] : memref<16x128xf32, #tpu.memory_space<vmem>>, vector<16x128xf32>
    tpu.vector_store %arg9[%c0_6, %c0_7], %7 {strides = array<i32>} : memref<16x128xf32, #tpu.memory_space<vmem>>, vector<16x128xf32>,
    %c0_i32_8 = arith.constant 0 : i32
    %9 = arith.cmpi eq, %arg2, %c0_i32_8 : i32
    %10 = arith.extui %9 : i1 to i32
    %c0_i32_9 = arith.constant 0 : i32
    %11 = arith.cmpi ne, %10, %c0_i32_9 : i32
    scf.if %11 {
      %c0_10 = arith.constant 0 : index
      %c0_11 = arith.constant 0 : index
      %12 = vector.load %arg9[%c0_10, %c0_11] : memref<16x128xf32, #tpu.memory_space<vmem>>, vector<16x128xf32>
      %c0_12 = arith.constant 0 : index
      %c0_13 = arith.constant 0 : index
      %13 = vector.load %arg5[%c0_12, %c0_13] : memref<1x128xf32, #tpu.memory_space<vmem>>, vector<1x128xf32>
      %14 = vector.broadcast %13 : vector<1x128xf32> to vector<16x128xf32>
      %15 = arith.addf %12, %14 : vector<16x128xf32>
      %c0_14 = arith.constant 0 : index
      %c0_15 = arith.constant 0 : index
      %16 = vector.load %arg6[%c0_14, %c0_15] : memref<1x128xf32, #tpu.memory_space<vmem>>, vector<1x128xf32>
      %17 = vector.broadcast %16 : vector<1x128xf32> to vector<16x128xf32>
      %18 = arith.mulf %15, %17 : vector<16x128xf32>
      %c0_16 = arith.constant 0 : index
      %c0_17 = arith.constant 0 : index
      %19 = vector.load %arg7[%c0_16, %c0_17] : memref<1x128xf32, #tpu.memory_space<vmem>>, vector<1x128xf32>
      %20 = vector.broadcast %19 : vector<1x128xf32> to vector<16x128xf32>
      %21 = arith.addf %18, %20 : vector<16x128xf32>
      %cst_18 = arith.constant 0.000000e+00 : f32
      %22 = vector.broadcast %cst_18 : f32 to vector<16x128xf32>
      %23 = arith.cmpf ogt, %21, %22 : vector<16x128xf32>
      %cst_19 = arith.constant 0.00999999977 : f32
      %24 = vector.broadcast %cst_19 : f32 to vector<16x128xf32>
      %25 = arith.mulf %24, %21 : vector<16x128xf32>
      %26 = arith.select %23, %21, %25 : vector<16x128xi1>, vector<16x128xf32>
      %c0_20 = arith.constant 0 : index
      %c0_21 = arith.constant 0 : index
      %27 = vector.load %arg8[%c0_20, %c0_21] : memref<16x128xf32, #tpu.memory_space<vmem>>, vector<16x128xf32>
      tpu.vector_store %arg8[%c0_20, %c0_21], %26 {strides = array<i32>} : memref<16x128xf32, #tpu.memory_space<vmem>>, vector<16x128xf32>,
    } else {
    }
    return
  }
  func.func @transform_0(%arg0: i32, %arg1: i32, %arg2: i32) -> (i32, i32) {
    %c0_i32 = arith.constant 0 : i32
    return %arg0, %arg2 : i32, i32
  }
  func.func @transform_1(%arg0: i32, %arg1: i32, %arg2: i32) -> (i32, i32) {
    %c0_i32 = arith.constant 0 : i32
    return %arg2, %arg1 : i32, i32
  }
  func.func @transform_2(%arg0: i32, %arg1: i32, %arg2: i32) -> (i32, i32) {
    %c0_i32 = arith.constant 0 : i32
    %c0_i32_0 = arith.constant 0 : i32
    return %c0_i32, %arg1 : i32, i32
  }
  func.func @transform_3(%arg0: i32, %arg1: i32, %arg2: i32) -> (i32, i32) {
    %c0_i32 = arith.constant 0 : i32
    %c0_i32_0 = arith.constant 0 : i32
    return %c0_i32, %arg1 : i32, i32
  }
  func.func @transform_4(%arg0: i32, %arg1: i32, %arg2: i32) -> (i32, i32) {
    %c0_i32 = arith.constant 0 : i32
    %c0_i32_0 = arith.constant 0 : i32
    return %c0_i32, %arg1 : i32, i32
  }
  func.func @transform_5(%arg0: i32, %arg1: i32, %arg2: i32) -> (i32, i32) {
    %c0_i32 = arith.constant 0 : i32
    return %arg0, %arg1 : i32, i32
  }
}

module attributes {stable_mosaic.version = 11 : i64} {
  func.func @_matmul_kernel(%arg0: i32, %arg1: i32, %arg2: i32, %arg3: memref<16x384xbf16, #tpu.memory_space<vmem>>, %arg4: memref<384x256xbf16, #tpu.memory_space<vmem>>, %arg5: memref<1x256xf32, #tpu.memory_space<vmem>>, %arg6: memref<1x256xf32, #tpu.memory_space<vmem>>, %arg7: memref<1x256xf32, #tpu.memory_space<vmem>>, %arg8: memref<16x256xf32, #tpu.memory_space<vmem>>, %arg9: memref<16x256xf32, #tpu.memory_space<vmem>>) attributes {dimension_semantics = [#tpu.dimension_semantics<parallel>, #tpu.dimension_semantics<parallel>, #tpu.dimension_semantics<arbitrary>], iteration_bounds = array<i64: 1, 1, 1>, scalar_prefetch = 0 : i64, scratch_operands = 1 : i64, tpu.core_type = #tpu.core_type<tc>, window_params = [{transform_indices = @transform_0, window_bounds = array<i64: 16, 384>}, {transform_indices = @transform_1, window_bounds = array<i64: 384, 256>}, {transform_indices = @transform_2, window_bounds = array<i64: 1, 256>}, {transform_indices = @transform_3, window_bounds = array<i64: 1, 256>}, {transform_indices = @transform_4, window_bounds = array<i64: 1, 256>}, {transform_indices = @transform_5, window_bounds = array<i64: 16, 256>}]} {
    %c0_i32 = arith.constant 0 : i32
    %0 = arith.cmpi eq, %arg2, %c0_i32 : i32
    %1 = arith.extui %0 : i1 to i32
    %c0_i32_0 = arith.constant 0 : i32
    %2 = arith.cmpi ne, %1, %c0_i32_0 : i32
    scf.if %2 {
      %cst_10 = arith.constant 0.000000e+00 : f32
      %12 = vector.broadcast %cst_10 : f32 to vector<16x256xf32>
      %c0_11 = arith.constant 0 : index
      %c0_12 = arith.constant 0 : index
      %13 = vector.load %arg9[%c0_11, %c0_12] : memref<16x256xf32, #tpu.memory_space<vmem>>, vector<16x256xf32>
      tpu.vector_store %arg9[%c0_11, %c0_12], %12 {strides = array<i32>} : memref<16x256xf32, #tpu.memory_space<vmem>>, vector<16x256xf32>,
    } else {
    }
    %c0 = arith.constant 0 : index
    %c0_1 = arith.constant 0 : index
    %3 = vector.load %arg9[%c0, %c0_1] : memref<16x256xf32, #tpu.memory_space<vmem>>, vector<16x256xf32>
    %c0_2 = arith.constant 0 : index
    %c0_3 = arith.constant 0 : index
    %4 = vector.load %arg3[%c0_2, %c0_3] : memref<16x384xbf16, #tpu.memory_space<vmem>>, vector<16x384xbf16>
    %c0_4 = arith.constant 0 : index
    %c0_5 = arith.constant 0 : index
    %5 = vector.load %arg4[%c0_4, %c0_5] : memref<384x256xbf16, #tpu.memory_space<vmem>>, vector<384x256xbf16>
    %cst = arith.constant dense<0.000000e+00> : vector<16x256xf32>
    %6 = tpu.matmul %4, %5, %cst {dimension_numbers = #tpu.dot_dimension_numbers<[1], [0], [0], [1], [0, 0, 1, 1], [], []>} : vector<16x384xbf16>, vector<384x256xbf16>, vector<16x256xf32> -> vector<16x256xf32>
    %7 = arith.addf %3, %6 : vector<16x256xf32>
    %c0_6 = arith.constant 0 : index
    %c0_7 = arith.constant 0 : index
    %8 = vector.load %arg9[%c0_6, %c0_7] : memref<16x256xf32, #tpu.memory_space<vmem>>, vector<16x256xf32>
    tpu.vector_store %arg9[%c0_6, %c0_7], %7 {strides = array<i32>} : memref<16x256xf32, #tpu.memory_space<vmem>>, vector<16x256xf32>,
    %c0_i32_8 = arith.constant 0 : i32
    %9 = arith.cmpi eq, %arg2, %c0_i32_8 : i32
    %10 = arith.extui %9 : i1 to i32
    %c0_i32_9 = arith.constant 0 : i32
    %11 = arith.cmpi ne, %10, %c0_i32_9 : i32
    scf.if %11 {
      %c0_10 = arith.constant 0 : index
      %c0_11 = arith.constant 0 : index
      %12 = vector.load %arg9[%c0_10, %c0_11] : memref<16x256xf32, #tpu.memory_space<vmem>>, vector<16x256xf32>
      %c0_12 = arith.constant 0 : index
      %c0_13 = arith.constant 0 : index
      %13 = vector.load %arg5[%c0_12, %c0_13] : memref<1x256xf32, #tpu.memory_space<vmem>>, vector<1x256xf32>
      %14 = vector.broadcast %13 : vector<1x256xf32> to vector<16x256xf32>
      %15 = arith.addf %12, %14 : vector<16x256xf32>
      %c0_14 = arith.constant 0 : index
      %c0_15 = arith.constant 0 : index
      %16 = vector.load %arg6[%c0_14, %c0_15] : memref<1x256xf32, #tpu.memory_space<vmem>>, vector<1x256xf32>
      %17 = vector.broadcast %16 : vector<1x256xf32> to vector<16x256xf32>
      %18 = arith.mulf %15, %17 : vector<16x256xf32>
      %c0_16 = arith.constant 0 : index
      %c0_17 = arith.constant 0 : index
      %19 = vector.load %arg7[%c0_16, %c0_17] : memref<1x256xf32, #tpu.memory_space<vmem>>, vector<1x256xf32>
      %20 = vector.broadcast %19 : vector<1x256xf32> to vector<16x256xf32>
      %21 = arith.addf %18, %20 : vector<16x256xf32>
      %cst_18 = arith.constant 0.000000e+00 : f32
      %22 = vector.broadcast %cst_18 : f32 to vector<16x256xf32>
      %23 = arith.cmpf ogt, %21, %22 : vector<16x256xf32>
      %cst_19 = arith.constant 0.00999999977 : f32
      %24 = vector.broadcast %cst_19 : f32 to vector<16x256xf32>
      %25 = arith.mulf %24, %21 : vector<16x256xf32>
      %26 = arith.select %23, %21, %25 : vector<16x256xi1>, vector<16x256xf32>
      %c0_20 = arith.constant 0 : index
      %c0_21 = arith.constant 0 : index
      %27 = vector.load %arg8[%c0_20, %c0_21] : memref<16x256xf32, #tpu.memory_space<vmem>>, vector<16x256xf32>
      tpu.vector_store %arg8[%c0_20, %c0_21], %26 {strides = array<i32>} : memref<16x256xf32, #tpu.memory_space<vmem>>, vector<16x256xf32>,
    } else {
    }
    return
  }
  func.func @transform_0(%arg0: i32, %arg1: i32, %arg2: i32) -> (i32, i32) {
    %c0_i32 = arith.constant 0 : i32
    return %arg0, %arg2 : i32, i32
  }
  func.func @transform_1(%arg0: i32, %arg1: i32, %arg2: i32) -> (i32, i32) {
    %c0_i32 = arith.constant 0 : i32
    return %arg2, %arg1 : i32, i32
  }
  func.func @transform_2(%arg0: i32, %arg1: i32, %arg2: i32) -> (i32, i32) {
    %c0_i32 = arith.constant 0 : i32
    %c0_i32_0 = arith.constant 0 : i32
    return %c0_i32, %arg1 : i32, i32
  }
  func.func @transform_3(%arg0: i32, %arg1: i32, %arg2: i32) -> (i32, i32) {
    %c0_i32 = arith.constant 0 : i32
    %c0_i32_0 = arith.constant 0 : i32
    return %c0_i32, %arg1 : i32, i32
  }
  func.func @transform_4(%arg0: i32, %arg1: i32, %arg2: i32) -> (i32, i32) {
    %c0_i32 = arith.constant 0 : i32
    %c0_i32_0 = arith.constant 0 : i32
    return %c0_i32, %arg1 : i32, i32
  }
  func.func @transform_5(%arg0: i32, %arg1: i32, %arg2: i32) -> (i32, i32) {
    %c0_i32 = arith.constant 0 : i32
    return %arg0, %arg1 : i32, i32
  }
}

module attributes {stable_mosaic.version = 11 : i64} {
  func.func @_latent_dec_kernel(%arg0: i32, %arg1: memref<16x512xbf16, #tpu.memory_space<vmem>>, %arg2: memref<512x256xbf16, #tpu.memory_space<vmem>>, %arg3: memref<1x256xf32, #tpu.memory_space<vmem>>, %arg4: memref<16x128xf32, #tpu.memory_space<vmem>>, %arg5: memref<128x512xbf16, #tpu.memory_space<vmem>>, %arg6: memref<1x512xf32, #tpu.memory_space<vmem>>, %arg7: memref<16x128xf32, #tpu.memory_space<vmem>>, %arg8: memref<16x128xf32, #tpu.memory_space<vmem>>, %arg9: memref<16x512xf32, #tpu.memory_space<vmem>>, %arg10: memref<16x256xf32, #tpu.memory_space<vmem>>) attributes {dimension_semantics = [#tpu.dimension_semantics<arbitrary>], iteration_bounds = array<i64: 1>, scalar_prefetch = 0 : i64, scratch_operands = 1 : i64, tpu.core_type = #tpu.core_type<tc>, window_params = [{transform_indices = @transform_0, window_bounds = array<i64: 16, 512>}, {transform_indices = @transform_1, window_bounds = array<i64: 512, 256>}, {pipeline_mode = #tpu.pipeline_mode<synchronous>, transform_indices = @transform_2, window_bounds = array<i64: 1, 256>}, {pipeline_mode = #tpu.pipeline_mode<synchronous>, transform_indices = @transform_3, window_bounds = array<i64: 16, 128>}, {pipeline_mode = #tpu.pipeline_mode<synchronous>, transform_indices = @transform_4, window_bounds = array<i64: 128, 512>}, {pipeline_mode = #tpu.pipeline_mode<synchronous>, transform_indices = @transform_5, window_bounds = array<i64: 1, 512>}, {pipeline_mode = #tpu.pipeline_mode<synchronous>, transform_indices = @transform_6, window_bounds = array<i64: 16, 128>}, {pipeline_mode = #tpu.pipeline_mode<synchronous>, transform_indices = @transform_7, window_bounds = array<i64: 16, 128>}, {pipeline_mode = #tpu.pipeline_mode<synchronous>, transform_indices = @transform_8, window_bounds = array<i64: 16, 512>}]} {
    %c0_i32 = arith.constant 0 : i32
    %0 = arith.cmpi eq, %arg0, %c0_i32 : i32
    %1 = arith.extui %0 : i1 to i32
    %c0_i32_0 = arith.constant 0 : i32
    %2 = arith.cmpi ne, %1, %c0_i32_0 : i32
    scf.if %2 {
      %cst_10 = arith.constant 0.000000e+00 : f32
      %12 = vector.broadcast %cst_10 : f32 to vector<16x256xf32>
      %c0_11 = arith.constant 0 : index
      %c0_12 = arith.constant 0 : index
      %13 = vector.load %arg10[%c0_11, %c0_12] : memref<16x256xf32, #tpu.memory_space<vmem>>, vector<16x256xf32>
      tpu.vector_store %arg10[%c0_11, %c0_12], %12 {strides = array<i32>} : memref<16x256xf32, #tpu.memory_space<vmem>>, vector<16x256xf32>,
    } else {
    }
    %c0 = arith.constant 0 : index
    %c0_1 = arith.constant 0 : index
    %3 = vector.load %arg10[%c0, %c0_1] : memref<16x256xf32, #tpu.memory_space<vmem>>, vector<16x256xf32>
    %c0_2 = arith.constant 0 : index
    %c0_3 = arith.constant 0 : index
    %4 = vector.load %arg1[%c0_2, %c0_3] : memref<16x512xbf16, #tpu.memory_space<vmem>>, vector<16x512xbf16>
    %c0_4 = arith.constant 0 : index
    %c0_5 = arith.constant 0 : index
    %5 = vector.load %arg2[%c0_4, %c0_5] : memref<512x256xbf16, #tpu.memory_space<vmem>>, vector<512x256xbf16>
    %cst = arith.constant dense<0.000000e+00> : vector<16x256xf32>
    %6 = tpu.matmul %4, %5, %cst {dimension_numbers = #tpu.dot_dimension_numbers<[1], [0], [0], [1], [0, 0, 1, 1], [], []>} : vector<16x512xbf16>, vector<512x256xbf16>, vector<16x256xf32> -> vector<16x256xf32>
    %7 = arith.addf %3, %6 : vector<16x256xf32>
    %c0_6 = arith.constant 0 : index
    %c0_7 = arith.constant 0 : index
    %8 = vector.load %arg10[%c0_6, %c0_7] : memref<16x256xf32, #tpu.memory_space<vmem>>, vector<16x256xf32>
    tpu.vector_store %arg10[%c0_6, %c0_7], %7 {strides = array<i32>} : memref<16x256xf32, #tpu.memory_space<vmem>>, vector<16x256xf32>,
    %c0_i32_8 = arith.constant 0 : i32
    %9 = arith.cmpi eq, %arg0, %c0_i32_8 : i32
    %10 = arith.extui %9 : i1 to i32
    %c0_i32_9 = arith.constant 0 : i32
    %11 = arith.cmpi ne, %10, %c0_i32_9 : i32
    scf.if %11 {
      %c0_10 = arith.constant 0 : index
      %c0_11 = arith.constant 0 : index
      %12 = vector.load %arg10[%c0_10, %c0_11] : memref<16x256xf32, #tpu.memory_space<vmem>>, vector<16x256xf32>
      %c0_12 = arith.constant 0 : index
      %c0_13 = arith.constant 0 : index
      %13 = vector.load %arg3[%c0_12, %c0_13] : memref<1x256xf32, #tpu.memory_space<vmem>>, vector<1x256xf32>
      %14 = vector.broadcast %13 : vector<1x256xf32> to vector<16x256xf32>
      %15 = arith.addf %12, %14 : vector<16x256xf32>
      %16 = vector.extract_strided_slice %15 {offsets = [0, 0], sizes = [16, 128], strides = [1, 1]} : vector<16x256xf32> to vector<16x128xf32>
      %17 = vector.extract_strided_slice %15 {offsets = [0, 128], sizes = [16, 128], strides = [1, 1]} : vector<16x256xf32> to vector<16x128xf32>
      %c0_14 = arith.constant 0 : index
      %c0_15 = arith.constant 0 : index
      %18 = vector.load %arg7[%c0_14, %c0_15] : memref<16x128xf32, #tpu.memory_space<vmem>>, vector<16x128xf32>
      tpu.vector_store %arg7[%c0_14, %c0_15], %16 {strides = array<i32>} : memref<16x128xf32, #tpu.memory_space<vmem>>, vector<16x128xf32>,
      %c0_16 = arith.constant 0 : index
      %c0_17 = arith.constant 0 : index
      %19 = vector.load %arg8[%c0_16, %c0_17] : memref<16x128xf32, #tpu.memory_space<vmem>>, vector<16x128xf32>
      tpu.vector_store %arg8[%c0_16, %c0_17], %17 {strides = array<i32>} : memref<16x128xf32, #tpu.memory_space<vmem>>, vector<16x128xf32>,
      %c0_18 = arith.constant 0 : index
      %c0_19 = arith.constant 0 : index
      %20 = vector.load %arg4[%c0_18, %c0_19] : memref<16x128xf32, #tpu.memory_space<vmem>>, vector<16x128xf32>
      %cst_20 = arith.constant 5.000000e-01 : f32
      %21 = vector.broadcast %cst_20 : f32 to vector<16x128xf32>
      %22 = arith.mulf %21, %17 : vector<16x128xf32>
      %23 = math.exp %22 : vector<16x128xf32>
      %24 = arith.mulf %20, %23 : vector<16x128xf32>
      %25 = arith.addf %24, %16 : vector<16x128xf32>
      %26 = arith.truncf %25 : vector<16x128xf32> to vector<16x128xbf16>
      %c0_21 = arith.constant 0 : index
      %c0_22 = arith.constant 0 : index
      %27 = vector.load %arg5[%c0_21, %c0_22] : memref<128x512xbf16, #tpu.memory_space<vmem>>, vector<128x512xbf16>
      %cst_23 = arith.constant dense<0.000000e+00> : vector<16x512xf32>
      %28 = tpu.matmul %26, %27, %cst_23 {dimension_numbers = #tpu.dot_dimension_numbers<[1], [0], [0], [1], [0, 0, 1, 1], [], []>} : vector<16x128xbf16>, vector<128x512xbf16>, vector<16x512xf32> -> vector<16x512xf32>
      %c0_24 = arith.constant 0 : index
      %c0_25 = arith.constant 0 : index
      %29 = vector.load %arg6[%c0_24, %c0_25] : memref<1x512xf32, #tpu.memory_space<vmem>>, vector<1x512xf32>
      %30 = vector.broadcast %29 : vector<1x512xf32> to vector<16x512xf32>
      %31 = arith.addf %28, %30 : vector<16x512xf32>
      %c0_26 = arith.constant 0 : index
      %c0_27 = arith.constant 0 : index
      %32 = vector.load %arg9[%c0_26, %c0_27] : memref<16x512xf32, #tpu.memory_space<vmem>>, vector<16x512xf32>
      tpu.vector_store %arg9[%c0_26, %c0_27], %31 {strides = array<i32>} : memref<16x512xf32, #tpu.memory_space<vmem>>, vector<16x512xf32>,
    } else {
    }
    return
  }
  func.func @transform_0(%arg0: i32) -> (i32, i32) {
    %c0_i32 = arith.constant 0 : i32
    %c0_i32_0 = arith.constant 0 : i32
    return %c0_i32, %arg0 : i32, i32
  }
  func.func @transform_1(%arg0: i32) -> (i32, i32) {
    %c0_i32 = arith.constant 0 : i32
    %c0_i32_0 = arith.constant 0 : i32
    return %arg0, %c0_i32 : i32, i32
  }
  func.func @transform_2(%arg0: i32) -> (i32, i32) {
    %c0_i32 = arith.constant 0 : i32
    %c0_i32_0 = arith.constant 0 : i32
    %c0_i32_1 = arith.constant 0 : i32
    return %c0_i32, %c0_i32_0 : i32, i32
  }
  func.func @transform_3(%arg0: i32) -> (i32, i32) {
    %c0_i32 = arith.constant 0 : i32
    %c0_i32_0 = arith.constant 0 : i32
    %c0_i32_1 = arith.constant 0 : i32
    return %c0_i32, %c0_i32_0 : i32, i32
  }
  func.func @transform_4(%arg0: i32) -> (i32, i32) {
    %c0_i32 = arith.constant 0 : i32
    %c0_i32_0 = arith.constant 0 : i32
    %c0_i32_1 = arith.constant 0 : i32
    return %c0_i32, %c0_i32_0 : i32, i32
  }
  func.func @transform_5(%arg0: i32) -> (i32, i32) {
    %c0_i32 = arith.constant 0 : i32
    %c0_i32_0 = arith.constant 0 : i32
    %c0_i32_1 = arith.constant 0 : i32
    return %c0_i32, %c0_i32_0 : i32, i32
  }
  func.func @transform_6(%arg0: i32) -> (i32, i32) {
    %c0_i32 = arith.constant 0 : i32
    %c0_i32_0 = arith.constant 0 : i32
    %c0_i32_1 = arith.constant 0 : i32
    return %c0_i32, %c0_i32_0 : i32, i32
  }
  func.func @transform_7(%arg0: i32) -> (i32, i32) {
    %c0_i32 = arith.constant 0 : i32
    %c0_i32_0 = arith.constant 0 : i32
    %c0_i32_1 = arith.constant 0 : i32
    return %c0_i32, %c0_i32_0 : i32, i32
  }
  func.func @transform_8(%arg0: i32) -> (i32, i32) {
    %c0_i32 = arith.constant 0 : i32
    %c0_i32_0 = arith.constant 0 : i32
    %c0_i32_1 = arith.constant 0 : i32
    return %c0_i32, %c0_i32_0 : i32, i32
  }
}

module attributes {stable_mosaic.version = 11 : i64} {
  func.func @_matmul_kernel(%arg0: i32, %arg1: i32, %arg2: i32, %arg3: memref<16x512xbf16, #tpu.memory_space<vmem>>, %arg4: memref<512x128xbf16, #tpu.memory_space<vmem>>, %arg5: memref<1x128xf32, #tpu.memory_space<vmem>>, %arg6: memref<1x128xf32, #tpu.memory_space<vmem>>, %arg7: memref<1x128xf32, #tpu.memory_space<vmem>>, %arg8: memref<16x128xf32, #tpu.memory_space<vmem>>, %arg9: memref<16x128xf32, #tpu.memory_space<vmem>>) attributes {dimension_semantics = [#tpu.dimension_semantics<parallel>, #tpu.dimension_semantics<parallel>, #tpu.dimension_semantics<arbitrary>], iteration_bounds = array<i64: 1, 1, 2>, scalar_prefetch = 0 : i64, scratch_operands = 1 : i64, tpu.core_type = #tpu.core_type<tc>, window_params = [{transform_indices = @transform_0, window_bounds = array<i64: 16, 512>}, {transform_indices = @transform_1, window_bounds = array<i64: 512, 128>}, {transform_indices = @transform_2, window_bounds = array<i64: 1, 128>}, {transform_indices = @transform_3, window_bounds = array<i64: 1, 128>}, {transform_indices = @transform_4, window_bounds = array<i64: 1, 128>}, {transform_indices = @transform_5, window_bounds = array<i64: 16, 128>}]} {
    %c0_i32 = arith.constant 0 : i32
    %0 = arith.cmpi eq, %arg2, %c0_i32 : i32
    %1 = arith.extui %0 : i1 to i32
    %c0_i32_0 = arith.constant 0 : i32
    %2 = arith.cmpi ne, %1, %c0_i32_0 : i32
    scf.if %2 {
      %cst_9 = arith.constant 0.000000e+00 : f32
      %12 = vector.broadcast %cst_9 : f32 to vector<16x128xf32>
      %c0_10 = arith.constant 0 : index
      %c0_11 = arith.constant 0 : index
      %13 = vector.load %arg9[%c0_10, %c0_11] : memref<16x128xf32, #tpu.memory_space<vmem>>, vector<16x128xf32>
      tpu.vector_store %arg9[%c0_10, %c0_11], %12 {strides = array<i32>} : memref<16x128xf32, #tpu.memory_space<vmem>>, vector<16x128xf32>,
    } else {
    }
    %c0 = arith.constant 0 : index
    %c0_1 = arith.constant 0 : index
    %3 = vector.load %arg9[%c0, %c0_1] : memref<16x128xf32, #tpu.memory_space<vmem>>, vector<16x128xf32>
    %c0_2 = arith.constant 0 : index
    %c0_3 = arith.constant 0 : index
    %4 = vector.load %arg3[%c0_2, %c0_3] : memref<16x512xbf16, #tpu.memory_space<vmem>>, vector<16x512xbf16>
    %c0_4 = arith.constant 0 : index
    %c0_5 = arith.constant 0 : index
    %5 = vector.load %arg4[%c0_4, %c0_5] : memref<512x128xbf16, #tpu.memory_space<vmem>>, vector<512x128xbf16>
    %cst = arith.constant dense<0.000000e+00> : vector<16x128xf32>
    %6 = tpu.matmul %4, %5, %cst {dimension_numbers = #tpu.dot_dimension_numbers<[1], [0], [0], [1], [0, 0, 1, 1], [], []>} : vector<16x512xbf16>, vector<512x128xbf16>, vector<16x128xf32> -> vector<16x128xf32>
    %7 = arith.addf %3, %6 : vector<16x128xf32>
    %c0_6 = arith.constant 0 : index
    %c0_7 = arith.constant 0 : index
    %8 = vector.load %arg9[%c0_6, %c0_7] : memref<16x128xf32, #tpu.memory_space<vmem>>, vector<16x128xf32>
    tpu.vector_store %arg9[%c0_6, %c0_7], %7 {strides = array<i32>} : memref<16x128xf32, #tpu.memory_space<vmem>>, vector<16x128xf32>,
    %c1_i32 = arith.constant 1 : i32
    %9 = arith.cmpi eq, %arg2, %c1_i32 : i32
    %10 = arith.extui %9 : i1 to i32
    %c0_i32_8 = arith.constant 0 : i32
    %11 = arith.cmpi ne, %10, %c0_i32_8 : i32
    scf.if %11 {
      %c0_9 = arith.constant 0 : index
      %c0_10 = arith.constant 0 : index
      %12 = vector.load %arg9[%c0_9, %c0_10] : memref<16x128xf32, #tpu.memory_space<vmem>>, vector<16x128xf32>
      %c0_11 = arith.constant 0 : index
      %c0_12 = arith.constant 0 : index
      %13 = vector.load %arg5[%c0_11, %c0_12] : memref<1x128xf32, #tpu.memory_space<vmem>>, vector<1x128xf32>
      %14 = vector.broadcast %13 : vector<1x128xf32> to vector<16x128xf32>
      %15 = arith.addf %12, %14 : vector<16x128xf32>
      %c0_13 = arith.constant 0 : index
      %c0_14 = arith.constant 0 : index
      %16 = vector.load %arg6[%c0_13, %c0_14] : memref<1x128xf32, #tpu.memory_space<vmem>>, vector<1x128xf32>
      %17 = vector.broadcast %16 : vector<1x128xf32> to vector<16x128xf32>
      %18 = arith.mulf %15, %17 : vector<16x128xf32>
      %c0_15 = arith.constant 0 : index
      %c0_16 = arith.constant 0 : index
      %19 = vector.load %arg7[%c0_15, %c0_16] : memref<1x128xf32, #tpu.memory_space<vmem>>, vector<1x128xf32>
      %20 = vector.broadcast %19 : vector<1x128xf32> to vector<16x128xf32>
      %21 = arith.addf %18, %20 : vector<16x128xf32>
      %cst_17 = arith.constant 0.000000e+00 : f32
      %22 = vector.broadcast %cst_17 : f32 to vector<16x128xf32>
      %23 = arith.cmpf ogt, %21, %22 : vector<16x128xf32>
      %cst_18 = arith.constant 0.00999999977 : f32
      %24 = vector.broadcast %cst_18 : f32 to vector<16x128xf32>
      %25 = arith.mulf %24, %21 : vector<16x128xf32>
      %26 = arith.select %23, %21, %25 : vector<16x128xi1>, vector<16x128xf32>
      %c0_19 = arith.constant 0 : index
      %c0_20 = arith.constant 0 : index
      %27 = vector.load %arg8[%c0_19, %c0_20] : memref<16x128xf32, #tpu.memory_space<vmem>>, vector<16x128xf32>
      tpu.vector_store %arg8[%c0_19, %c0_20], %26 {strides = array<i32>} : memref<16x128xf32, #tpu.memory_space<vmem>>, vector<16x128xf32>,
    } else {
    }
    return
  }
  func.func @transform_0(%arg0: i32, %arg1: i32, %arg2: i32) -> (i32, i32) {
    %c0_i32 = arith.constant 0 : i32
    return %arg0, %arg2 : i32, i32
  }
  func.func @transform_1(%arg0: i32, %arg1: i32, %arg2: i32) -> (i32, i32) {
    %c0_i32 = arith.constant 0 : i32
    return %arg2, %arg1 : i32, i32
  }
  func.func @transform_2(%arg0: i32, %arg1: i32, %arg2: i32) -> (i32, i32) {
    %c0_i32 = arith.constant 0 : i32
    %c0_i32_0 = arith.constant 0 : i32
    return %c0_i32, %arg1 : i32, i32
  }
  func.func @transform_3(%arg0: i32, %arg1: i32, %arg2: i32) -> (i32, i32) {
    %c0_i32 = arith.constant 0 : i32
    %c0_i32_0 = arith.constant 0 : i32
    return %c0_i32, %arg1 : i32, i32
  }
  func.func @transform_4(%arg0: i32, %arg1: i32, %arg2: i32) -> (i32, i32) {
    %c0_i32 = arith.constant 0 : i32
    %c0_i32_0 = arith.constant 0 : i32
    return %c0_i32, %arg1 : i32, i32
  }
  func.func @transform_5(%arg0: i32, %arg1: i32, %arg2: i32) -> (i32, i32) {
    %c0_i32 = arith.constant 0 : i32
    return %arg0, %arg1 : i32, i32
  }
}

module attributes {stable_mosaic.version = 11 : i64} {
  func.func @_matmul_kernel(%arg0: i32, %arg1: i32, %arg2: i32, %arg3: memref<16x384xbf16, #tpu.memory_space<vmem>>, %arg4: memref<384x128xbf16, #tpu.memory_space<vmem>>, %arg5: memref<1x128xf32, #tpu.memory_space<vmem>>, %arg6: memref<1x128xf32, #tpu.memory_space<vmem>>, %arg7: memref<1x128xf32, #tpu.memory_space<vmem>>, %arg8: memref<16x128xf32, #tpu.memory_space<vmem>>, %arg9: memref<16x128xf32, #tpu.memory_space<vmem>>) attributes {dimension_semantics = [#tpu.dimension_semantics<parallel>, #tpu.dimension_semantics<parallel>, #tpu.dimension_semantics<arbitrary>], iteration_bounds = array<i64: 1, 1, 1>, scalar_prefetch = 0 : i64, scratch_operands = 1 : i64, tpu.core_type = #tpu.core_type<tc>, window_params = [{transform_indices = @transform_0, window_bounds = array<i64: 16, 384>}, {transform_indices = @transform_1, window_bounds = array<i64: 384, 128>}, {transform_indices = @transform_2, window_bounds = array<i64: 1, 128>}, {transform_indices = @transform_3, window_bounds = array<i64: 1, 128>}, {transform_indices = @transform_4, window_bounds = array<i64: 1, 128>}, {transform_indices = @transform_5, window_bounds = array<i64: 16, 128>}]} {
    %c0_i32 = arith.constant 0 : i32
    %0 = arith.cmpi eq, %arg2, %c0_i32 : i32
    %1 = arith.extui %0 : i1 to i32
    %c0_i32_0 = arith.constant 0 : i32
    %2 = arith.cmpi ne, %1, %c0_i32_0 : i32
    scf.if %2 {
      %cst_10 = arith.constant 0.000000e+00 : f32
      %12 = vector.broadcast %cst_10 : f32 to vector<16x128xf32>
      %c0_11 = arith.constant 0 : index
      %c0_12 = arith.constant 0 : index
      %13 = vector.load %arg9[%c0_11, %c0_12] : memref<16x128xf32, #tpu.memory_space<vmem>>, vector<16x128xf32>
      tpu.vector_store %arg9[%c0_11, %c0_12], %12 {strides = array<i32>} : memref<16x128xf32, #tpu.memory_space<vmem>>, vector<16x128xf32>,
    } else {
    }
    %c0 = arith.constant 0 : index
    %c0_1 = arith.constant 0 : index
    %3 = vector.load %arg9[%c0, %c0_1] : memref<16x128xf32, #tpu.memory_space<vmem>>, vector<16x128xf32>
    %c0_2 = arith.constant 0 : index
    %c0_3 = arith.constant 0 : index
    %4 = vector.load %arg3[%c0_2, %c0_3] : memref<16x384xbf16, #tpu.memory_space<vmem>>, vector<16x384xbf16>
    %c0_4 = arith.constant 0 : index
    %c0_5 = arith.constant 0 : index
    %5 = vector.load %arg4[%c0_4, %c0_5] : memref<384x128xbf16, #tpu.memory_space<vmem>>, vector<384x128xbf16>
    %cst = arith.constant dense<0.000000e+00> : vector<16x128xf32>
    %6 = tpu.matmul %4, %5, %cst {dimension_numbers = #tpu.dot_dimension_numbers<[1], [0], [0], [1], [0, 0, 1, 1], [], []>} : vector<16x384xbf16>, vector<384x128xbf16>, vector<16x128xf32> -> vector<16x128xf32>
    %7 = arith.addf %3, %6 : vector<16x128xf32>
    %c0_6 = arith.constant 0 : index
    %c0_7 = arith.constant 0 : index
    %8 = vector.load %arg9[%c0_6, %c0_7] : memref<16x128xf32, #tpu.memory_space<vmem>>, vector<16x128xf32>
    tpu.vector_store %arg9[%c0_6, %c0_7], %7 {strides = array<i32>} : memref<16x128xf32, #tpu.memory_space<vmem>>, vector<16x128xf32>,
    %c0_i32_8 = arith.constant 0 : i32
    %9 = arith.cmpi eq, %arg2, %c0_i32_8 : i32
    %10 = arith.extui %9 : i1 to i32
    %c0_i32_9 = arith.constant 0 : i32
    %11 = arith.cmpi ne, %10, %c0_i32_9 : i32
    scf.if %11 {
      %c0_10 = arith.constant 0 : index
      %c0_11 = arith.constant 0 : index
      %12 = vector.load %arg9[%c0_10, %c0_11] : memref<16x128xf32, #tpu.memory_space<vmem>>, vector<16x128xf32>
      %c0_12 = arith.constant 0 : index
      %c0_13 = arith.constant 0 : index
      %13 = vector.load %arg5[%c0_12, %c0_13] : memref<1x128xf32, #tpu.memory_space<vmem>>, vector<1x128xf32>
      %14 = vector.broadcast %13 : vector<1x128xf32> to vector<16x128xf32>
      %15 = arith.addf %12, %14 : vector<16x128xf32>
      %c0_14 = arith.constant 0 : index
      %c0_15 = arith.constant 0 : index
      %16 = vector.load %arg6[%c0_14, %c0_15] : memref<1x128xf32, #tpu.memory_space<vmem>>, vector<1x128xf32>
      %17 = vector.broadcast %16 : vector<1x128xf32> to vector<16x128xf32>
      %18 = arith.mulf %15, %17 : vector<16x128xf32>
      %c0_16 = arith.constant 0 : index
      %c0_17 = arith.constant 0 : index
      %19 = vector.load %arg7[%c0_16, %c0_17] : memref<1x128xf32, #tpu.memory_space<vmem>>, vector<1x128xf32>
      %20 = vector.broadcast %19 : vector<1x128xf32> to vector<16x128xf32>
      %21 = arith.addf %18, %20 : vector<16x128xf32>
      %cst_18 = arith.constant 0.000000e+00 : f32
      %22 = vector.broadcast %cst_18 : f32 to vector<16x128xf32>
      %23 = arith.cmpf ogt, %21, %22 : vector<16x128xf32>
      %cst_19 = arith.constant 0.00999999977 : f32
      %24 = vector.broadcast %cst_19 : f32 to vector<16x128xf32>
      %25 = arith.mulf %24, %21 : vector<16x128xf32>
      %26 = arith.select %23, %21, %25 : vector<16x128xi1>, vector<16x128xf32>
      %c0_20 = arith.constant 0 : index
      %c0_21 = arith.constant 0 : index
      %27 = vector.load %arg8[%c0_20, %c0_21] : memref<16x128xf32, #tpu.memory_space<vmem>>, vector<16x128xf32>
      tpu.vector_store %arg8[%c0_20, %c0_21], %26 {strides = array<i32>} : memref<16x128xf32, #tpu.memory_space<vmem>>, vector<16x128xf32>,
    } else {
    }
    return
  }
  func.func @transform_0(%arg0: i32, %arg1: i32, %arg2: i32) -> (i32, i32) {
    %c0_i32 = arith.constant 0 : i32
    return %arg0, %arg2 : i32, i32
  }
  func.func @transform_1(%arg0: i32, %arg1: i32, %arg2: i32) -> (i32, i32) {
    %c0_i32 = arith.constant 0 : i32
    return %arg2, %arg1 : i32, i32
  }
  func.func @transform_2(%arg0: i32, %arg1: i32, %arg2: i32) -> (i32, i32) {
    %c0_i32 = arith.constant 0 : i32
    %c0_i32_0 = arith.constant 0 : i32
    return %c0_i32, %arg1 : i32, i32
  }
  func.func @transform_3(%arg0: i32, %arg1: i32, %arg2: i32) -> (i32, i32) {
    %c0_i32 = arith.constant 0 : i32
    %c0_i32_0 = arith.constant 0 : i32
    return %c0_i32, %arg1 : i32, i32
  }
  func.func @transform_4(%arg0: i32, %arg1: i32, %arg2: i32) -> (i32, i32) {
    %c0_i32 = arith.constant 0 : i32
    %c0_i32_0 = arith.constant 0 : i32
    return %c0_i32, %arg1 : i32, i32
  }
  func.func @transform_5(%arg0: i32, %arg1: i32, %arg2: i32) -> (i32, i32) {
    %c0_i32 = arith.constant 0 : i32
    return %arg0, %arg1 : i32, i32
  }
}

module attributes {stable_mosaic.version = 11 : i64} {
  func.func @_matmul_kernel(%arg0: i32, %arg1: i32, %arg2: i32, %arg3: memref<32x256xbf16, #tpu.memory_space<vmem>>, %arg4: memref<256x128xbf16, #tpu.memory_space<vmem>>, %arg5: memref<1x128xf32, #tpu.memory_space<vmem>>, %arg6: memref<1x128xf32, #tpu.memory_space<vmem>>, %arg7: memref<1x128xf32, #tpu.memory_space<vmem>>, %arg8: memref<32x128xf32, #tpu.memory_space<vmem>>, %arg9: memref<32x128xf32, #tpu.memory_space<vmem>>) attributes {dimension_semantics = [#tpu.dimension_semantics<parallel>, #tpu.dimension_semantics<parallel>, #tpu.dimension_semantics<arbitrary>], iteration_bounds = array<i64: 1, 1, 1>, scalar_prefetch = 0 : i64, scratch_operands = 1 : i64, tpu.core_type = #tpu.core_type<tc>, window_params = [{transform_indices = @transform_0, window_bounds = array<i64: 32, 256>}, {transform_indices = @transform_1, window_bounds = array<i64: 256, 128>}, {transform_indices = @transform_2, window_bounds = array<i64: 1, 128>}, {transform_indices = @transform_3, window_bounds = array<i64: 1, 128>}, {transform_indices = @transform_4, window_bounds = array<i64: 1, 128>}, {transform_indices = @transform_5, window_bounds = array<i64: 32, 128>}]} {
    %c0_i32 = arith.constant 0 : i32
    %0 = arith.cmpi eq, %arg2, %c0_i32 : i32
    %1 = arith.extui %0 : i1 to i32
    %c0_i32_0 = arith.constant 0 : i32
    %2 = arith.cmpi ne, %1, %c0_i32_0 : i32
    scf.if %2 {
      %cst_10 = arith.constant 0.000000e+00 : f32
      %12 = vector.broadcast %cst_10 : f32 to vector<32x128xf32>
      %c0_11 = arith.constant 0 : index
      %c0_12 = arith.constant 0 : index
      %13 = vector.load %arg9[%c0_11, %c0_12] : memref<32x128xf32, #tpu.memory_space<vmem>>, vector<32x128xf32>
      tpu.vector_store %arg9[%c0_11, %c0_12], %12 {strides = array<i32>} : memref<32x128xf32, #tpu.memory_space<vmem>>, vector<32x128xf32>,
    } else {
    }
    %c0 = arith.constant 0 : index
    %c0_1 = arith.constant 0 : index
    %3 = vector.load %arg9[%c0, %c0_1] : memref<32x128xf32, #tpu.memory_space<vmem>>, vector<32x128xf32>
    %c0_2 = arith.constant 0 : index
    %c0_3 = arith.constant 0 : index
    %4 = vector.load %arg3[%c0_2, %c0_3] : memref<32x256xbf16, #tpu.memory_space<vmem>>, vector<32x256xbf16>
    %c0_4 = arith.constant 0 : index
    %c0_5 = arith.constant 0 : index
    %5 = vector.load %arg4[%c0_4, %c0_5] : memref<256x128xbf16, #tpu.memory_space<vmem>>, vector<256x128xbf16>
    %cst = arith.constant dense<0.000000e+00> : vector<32x128xf32>
    %6 = tpu.matmul %4, %5, %cst {dimension_numbers = #tpu.dot_dimension_numbers<[1], [0], [0], [1], [0, 0, 1, 1], [], []>} : vector<32x256xbf16>, vector<256x128xbf16>, vector<32x128xf32> -> vector<32x128xf32>
    %7 = arith.addf %3, %6 : vector<32x128xf32>
    %c0_6 = arith.constant 0 : index
    %c0_7 = arith.constant 0 : index
    %8 = vector.load %arg9[%c0_6, %c0_7] : memref<32x128xf32, #tpu.memory_space<vmem>>, vector<32x128xf32>
    tpu.vector_store %arg9[%c0_6, %c0_7], %7 {strides = array<i32>} : memref<32x128xf32, #tpu.memory_space<vmem>>, vector<32x128xf32>,
    %c0_i32_8 = arith.constant 0 : i32
    %9 = arith.cmpi eq, %arg2, %c0_i32_8 : i32
    %10 = arith.extui %9 : i1 to i32
    %c0_i32_9 = arith.constant 0 : i32
    %11 = arith.cmpi ne, %10, %c0_i32_9 : i32
    scf.if %11 {
      %c0_10 = arith.constant 0 : index
      %c0_11 = arith.constant 0 : index
      %12 = vector.load %arg9[%c0_10, %c0_11] : memref<32x128xf32, #tpu.memory_space<vmem>>, vector<32x128xf32>
      %c0_12 = arith.constant 0 : index
      %c0_13 = arith.constant 0 : index
      %13 = vector.load %arg5[%c0_12, %c0_13] : memref<1x128xf32, #tpu.memory_space<vmem>>, vector<1x128xf32>
      %14 = vector.broadcast %13 : vector<1x128xf32> to vector<32x128xf32>
      %15 = arith.addf %12, %14 : vector<32x128xf32>
      %c0_14 = arith.constant 0 : index
      %c0_15 = arith.constant 0 : index
      %16 = vector.load %arg6[%c0_14, %c0_15] : memref<1x128xf32, #tpu.memory_space<vmem>>, vector<1x128xf32>
      %17 = vector.broadcast %16 : vector<1x128xf32> to vector<32x128xf32>
      %18 = arith.mulf %15, %17 : vector<32x128xf32>
      %c0_16 = arith.constant 0 : index
      %c0_17 = arith.constant 0 : index
      %19 = vector.load %arg7[%c0_16, %c0_17] : memref<1x128xf32, #tpu.memory_space<vmem>>, vector<1x128xf32>
      %20 = vector.broadcast %19 : vector<1x128xf32> to vector<32x128xf32>
      %21 = arith.addf %18, %20 : vector<32x128xf32>
      %cst_18 = arith.constant 0.000000e+00 : f32
      %22 = vector.broadcast %cst_18 : f32 to vector<32x128xf32>
      %23 = arith.cmpf ogt, %21, %22 : vector<32x128xf32>
      %cst_19 = arith.constant 0.00999999977 : f32
      %24 = vector.broadcast %cst_19 : f32 to vector<32x128xf32>
      %25 = arith.mulf %24, %21 : vector<32x128xf32>
      %26 = arith.select %23, %21, %25 : vector<32x128xi1>, vector<32x128xf32>
      %c0_20 = arith.constant 0 : index
      %c0_21 = arith.constant 0 : index
      %27 = vector.load %arg8[%c0_20, %c0_21] : memref<32x128xf32, #tpu.memory_space<vmem>>, vector<32x128xf32>
      tpu.vector_store %arg8[%c0_20, %c0_21], %26 {strides = array<i32>} : memref<32x128xf32, #tpu.memory_space<vmem>>, vector<32x128xf32>,
    } else {
    }
    return
  }
  func.func @transform_0(%arg0: i32, %arg1: i32, %arg2: i32) -> (i32, i32) {
    %c0_i32 = arith.constant 0 : i32
    return %arg0, %arg2 : i32, i32
  }
  func.func @transform_1(%arg0: i32, %arg1: i32, %arg2: i32) -> (i32, i32) {
    %c0_i32 = arith.constant 0 : i32
    return %arg2, %arg1 : i32, i32
  }
  func.func @transform_2(%arg0: i32, %arg1: i32, %arg2: i32) -> (i32, i32) {
    %c0_i32 = arith.constant 0 : i32
    %c0_i32_0 = arith.constant 0 : i32
    return %c0_i32, %arg1 : i32, i32
  }
  func.func @transform_3(%arg0: i32, %arg1: i32, %arg2: i32) -> (i32, i32) {
    %c0_i32 = arith.constant 0 : i32
    %c0_i32_0 = arith.constant 0 : i32
    return %c0_i32, %arg1 : i32, i32
  }
  func.func @transform_4(%arg0: i32, %arg1: i32, %arg2: i32) -> (i32, i32) {
    %c0_i32 = arith.constant 0 : i32
    %c0_i32_0 = arith.constant 0 : i32
    return %c0_i32, %arg1 : i32, i32
  }
  func.func @transform_5(%arg0: i32, %arg1: i32, %arg2: i32) -> (i32, i32) {
    %c0_i32 = arith.constant 0 : i32
    return %arg0, %arg1 : i32, i32
  }
}

module attributes {stable_mosaic.version = 11 : i64} {
  func.func @_final_kernel(%arg0: i32, %arg1: memref<16x384xbf16, #tpu.memory_space<vmem>>, %arg2: memref<384x128xbf16, #tpu.memory_space<vmem>>, %arg3: memref<1x128xf32, #tpu.memory_space<vmem>>, %arg4: memref<128x128xbf16, #tpu.memory_space<vmem>>, %arg5: memref<1x128xf32, #tpu.memory_space<vmem>>, %arg6: memref<16x128xf32, #tpu.memory_space<vmem>>, %arg7: memref<16x128xf32, #tpu.memory_space<vmem>>) attributes {dimension_semantics = [#tpu.dimension_semantics<arbitrary>], iteration_bounds = array<i64: 1>, scalar_prefetch = 0 : i64, scratch_operands = 1 : i64, tpu.core_type = #tpu.core_type<tc>, window_params = [{transform_indices = @transform_0, window_bounds = array<i64: 16, 384>}, {transform_indices = @transform_1, window_bounds = array<i64: 384, 128>}, {pipeline_mode = #tpu.pipeline_mode<synchronous>, transform_indices = @transform_2, window_bounds = array<i64: 1, 128>}, {pipeline_mode = #tpu.pipeline_mode<synchronous>, transform_indices = @transform_3, window_bounds = array<i64: 128, 128>}, {pipeline_mode = #tpu.pipeline_mode<synchronous>, transform_indices = @transform_4, window_bounds = array<i64: 1, 128>}, {pipeline_mode = #tpu.pipeline_mode<synchronous>, transform_indices = @transform_5, window_bounds = array<i64: 16, 128>}]} {
    %c0_i32 = arith.constant 0 : i32
    %0 = arith.cmpi eq, %arg0, %c0_i32 : i32
    %1 = arith.extui %0 : i1 to i32
    %c0_i32_0 = arith.constant 0 : i32
    %2 = arith.cmpi ne, %1, %c0_i32_0 : i32
    scf.if %2 {
      %cst_10 = arith.constant 0.000000e+00 : f32
      %12 = vector.broadcast %cst_10 : f32 to vector<16x128xf32>
      %c0_11 = arith.constant 0 : index
      %c0_12 = arith.constant 0 : index
      %13 = vector.load %arg7[%c0_11, %c0_12] : memref<16x128xf32, #tpu.memory_space<vmem>>, vector<16x128xf32>
      tpu.vector_store %arg7[%c0_11, %c0_12], %12 {strides = array<i32>} : memref<16x128xf32, #tpu.memory_space<vmem>>, vector<16x128xf32>,
    } else {
    }
    %c0 = arith.constant 0 : index
    %c0_1 = arith.constant 0 : index
    %3 = vector.load %arg7[%c0, %c0_1] : memref<16x128xf32, #tpu.memory_space<vmem>>, vector<16x128xf32>
    %c0_2 = arith.constant 0 : index
    %c0_3 = arith.constant 0 : index
    %4 = vector.load %arg1[%c0_2, %c0_3] : memref<16x384xbf16, #tpu.memory_space<vmem>>, vector<16x384xbf16>
    %c0_4 = arith.constant 0 : index
    %c0_5 = arith.constant 0 : index
    %5 = vector.load %arg2[%c0_4, %c0_5] : memref<384x128xbf16, #tpu.memory_space<vmem>>, vector<384x128xbf16>
    %cst = arith.constant dense<0.000000e+00> : vector<16x128xf32>
    %6 = tpu.matmul %4, %5, %cst {dimension_numbers = #tpu.dot_dimension_numbers<[1], [0], [0], [1], [0, 0, 1, 1], [], []>} : vector<16x384xbf16>, vector<384x128xbf16>, vector<16x128xf32> -> vector<16x128xf32>
    %7 = arith.addf %3, %6 : vector<16x128xf32>
    %c0_6 = arith.constant 0 : index
    %c0_7 = arith.constant 0 : index
    %8 = vector.load %arg7[%c0_6, %c0_7] : memref<16x128xf32, #tpu.memory_space<vmem>>, vector<16x128xf32>
    tpu.vector_store %arg7[%c0_6, %c0_7], %7 {strides = array<i32>} : memref<16x128xf32, #tpu.memory_space<vmem>>, vector<16x128xf32>,
    %c0_i32_8 = arith.constant 0 : i32
    %9 = arith.cmpi eq, %arg0, %c0_i32_8 : i32
    %10 = arith.extui %9 : i1 to i32
    %c0_i32_9 = arith.constant 0 : i32
    %11 = arith.cmpi ne, %10, %c0_i32_9 : i32
    scf.if %11 {
      %c0_10 = arith.constant 0 : index
      %c0_11 = arith.constant 0 : index
      %12 = vector.load %arg7[%c0_10, %c0_11] : memref<16x128xf32, #tpu.memory_space<vmem>>, vector<16x128xf32>
      %c0_12 = arith.constant 0 : index
      %c0_13 = arith.constant 0 : index
      %13 = vector.load %arg3[%c0_12, %c0_13] : memref<1x128xf32, #tpu.memory_space<vmem>>, vector<1x128xf32>
      %14 = vector.broadcast %13 : vector<1x128xf32> to vector<16x128xf32>
      %15 = arith.addf %12, %14 : vector<16x128xf32>
      %16 = arith.truncf %15 : vector<16x128xf32> to vector<16x128xbf16>
      %c0_14 = arith.constant 0 : index
      %c0_15 = arith.constant 0 : index
      %17 = vector.load %arg4[%c0_14, %c0_15] : memref<128x128xbf16, #tpu.memory_space<vmem>>, vector<128x128xbf16>
      %cst_16 = arith.constant dense<0.000000e+00> : vector<16x128xf32>
      %18 = tpu.matmul %16, %17, %cst_16 {dimension_numbers = #tpu.dot_dimension_numbers<[1], [0], [0], [1], [0, 0, 1, 1], [], []>} : vector<16x128xbf16>, vector<128x128xbf16>, vector<16x128xf32> -> vector<16x128xf32>
      %c0_17 = arith.constant 0 : index
      %c0_18 = arith.constant 0 : index
      %19 = vector.load %arg5[%c0_17, %c0_18] : memref<1x128xf32, #tpu.memory_space<vmem>>, vector<1x128xf32>
      %20 = vector.broadcast %19 : vector<1x128xf32> to vector<16x128xf32>
      %21 = arith.addf %18, %20 : vector<16x128xf32>
      %c0_19 = arith.constant 0 : index
      %c0_20 = arith.constant 0 : index
      %22 = vector.load %arg6[%c0_19, %c0_20] : memref<16x128xf32, #tpu.memory_space<vmem>>, vector<16x128xf32>
      tpu.vector_store %arg6[%c0_19, %c0_20], %21 {strides = array<i32>} : memref<16x128xf32, #tpu.memory_space<vmem>>, vector<16x128xf32>,
    } else {
    }
    return
  }
  func.func @transform_0(%arg0: i32) -> (i32, i32) {
    %c0_i32 = arith.constant 0 : i32
    %c0_i32_0 = arith.constant 0 : i32
    return %c0_i32, %arg0 : i32, i32
  }
  func.func @transform_1(%arg0: i32) -> (i32, i32) {
    %c0_i32 = arith.constant 0 : i32
    %c0_i32_0 = arith.constant 0 : i32
    return %arg0, %c0_i32 : i32, i32
  }
  func.func @transform_2(%arg0: i32) -> (i32, i32) {
    %c0_i32 = arith.constant 0 : i32
    %c0_i32_0 = arith.constant 0 : i32
    %c0_i32_1 = arith.constant 0 : i32
    return %c0_i32, %c0_i32_0 : i32, i32
  }
  func.func @transform_3(%arg0: i32) -> (i32, i32) {
    %c0_i32 = arith.constant 0 : i32
    %c0_i32_0 = arith.constant 0 : i32
    %c0_i32_1 = arith.constant 0 : i32
    return %c0_i32, %c0_i32_0 : i32, i32
  }
  func.func @transform_4(%arg0: i32) -> (i32, i32) {
    %c0_i32 = arith.constant 0 : i32
    %c0_i32_0 = arith.constant 0 : i32
    %c0_i32_1 = arith.constant 0 : i32
    return %c0_i32, %c0_i32_0 : i32, i32
  }
  func.func @transform_5(%arg0: i32) -> (i32, i32) {
    %c0_i32 = arith.constant 0 : i32
    %c0_i32_0 = arith.constant 0 : i32
    %c0_i32_1 = arith.constant 0 : i32
    return %c0_i32, %c0_i32_0 : i32, i32
  }
}

</mosaic_0001>

<llo_original>
// kernel: vae_forward.9
$region0: #{vae_forward.9}
  #allocation0 [shape = 'u32[]', space=smem, size = 0x4, offset = 0x4, fixed_abs, tag = 'smem constant byte address 0x4 - core index']
  #allocation1 [shape = 'u32[144,128]{1,0:T(1,128)}', space=vmem, size = 0x12000, scoped, tag = 'internal scratch']
  #allocation2 [shape = 'f32[16,128]{1,0:T(8,128)}', space=vmem, size = 0x2000, scoped, tag = 'scratch operand']
  %s0 = inlined_call_operand.vmem [shape: bf16[16,256], index: 0, kind: input, shape index: {}]
  %s1 = inlined_call_operand.vmem [shape: bf16[256,128], index: 1, kind: input, shape index: {}]
  %s2 = inlined_call_operand.vmem [shape: f32[1,128], index: 2, kind: input, shape index: {}]
  %s3 = inlined_call_operand.vmem [shape: f32[1,128], index: 3, kind: input, shape index: {}]
  %s4 = inlined_call_operand.vmem [shape: f32[1,128], index: 4, kind: input, shape index: {}]
  %s5 = inlined_call_operand.vmem [shape: f32[16,128], index: 5, kind: output, shape index: {}]
  %s6 = sld [smem:[#allocation0]]
  $region38: #{vae_forward.9} parent=0
    _
  %s8 = ssub.s32 1, %s6
  %s9 = scalar_select 0, %s8, %s6
  // Predicated region
  $region2: #{vae_forward.9} parent=0 // pred_check
    _
  $region3: #{vae_forward.9} parent=0 // pred_check_branch
    %11 = sbr.rel (0) target = $region5
  $region4: #{vae_forward.9} parent=0 // pred_region
    _
  $region5: #{vae_forward.9} parent=0 // pred_fallthru
    _
  // Predicated region
  $region6: #{vae_forward.9} parent=0 // pred_check
    _
  $region7: #{vae_forward.9} parent=0 // pred_check_branch
    %13 = sbr.rel (0) target = $region9
  $region8: #{vae_forward.9} parent=0 // pred_region
    _
  $region9: #{vae_forward.9} parent=0 // pred_fallthru
    _
  // Predicated region
  $region10: #{vae_forward.9} parent=0 // pred_check
    _
  $region11: #{vae_forward.9} parent=0 // pred_check_branch
    %15 = sbr.rel (0) target = $region13
  $region12: #{vae_forward.9} parent=0 // pred_region
    _
  $region13: #{vae_forward.9} parent=0 // pred_fallthru
    _
  // Predicated region
  $region14: #{vae_forward.9} parent=0 // pred_check
    _
  $region15: #{vae_forward.9} parent=0 // pred_check_branch
    %17 = sbr.rel (0) target = $region17
  $region16: #{vae_forward.9} parent=0 // pred_region
    _
  $region17: #{vae_forward.9} parent=0 // pred_fallthru
    _
  // Predicated region
  $region18: #{vae_forward.9} parent=0 // pred_check
    _
  $region19: #{vae_forward.9} parent=0 // pred_check_branch
    %19 = sbr.rel (0) target = $region21
  $region20: #{vae_forward.9} parent=0 // pred_region
    _
  $region21: #{vae_forward.9} parent=0 // pred_fallthru
    _
  %p21 = scmp.eq.s32.totalorder 0, 0
  // Predicated region
  $region22: #{vae_forward.9} parent=0 // pred_check
    %p22 = pneg %p21
  $region23: #{vae_forward.9} parent=0 // pred_check_branch
    %24 = sbr.rel (%p22) target = $region25
  $region24: #{vae_forward.9} parent=0 // pred_region
    %25 = vst [vmem:[#allocation2] sm:$0xff] 0.0
    %26 = vst [vmem:[#allocation2 + $0x8] sm:$0xff] 0.0
  $region25: #{vae_forward.9} parent=0 // pred_fallthru
    _
  %v27 = vld [vmem:[#allocation2] sm:$0xff]
  %v28 = vld [vmem:[#allocation2 + $0x8] sm:$0xff]
  %v29 = vld [vmem:[%s0] sm:$0xff]
  %v30 = vld [vmem:[%s0 + $0x8] sm:$0xff]
  %v31 = vld [vmem:[%s1] sm:$0xf]
  %v32 = vld [vmem:[%s1 + $0x4] sm:$0xf]
  %v33 = vld [vmem:[%s1 + $0x8] sm:$0xf]
  %v34 = vld [vmem:[%s1 + $0xc] sm:$0xf]
  %v35 = vld [vmem:[%s1 + $0x10] sm:$0xf]
  %v36 = vld [vmem:[%s1 + $0x14] sm:$0xf]
  %v37 = vld [vmem:[%s1 + $0x18] sm:$0xf]
  %v38 = vld [vmem:[%s1 + $0x1c] sm:$0xf]
  %v39 = vld [vmem:[%s1 + $0x20] sm:$0xf]
  %v40 = vld [vmem:[%s1 + $0x24] sm:$0xf]
  %v41 = vld [vmem:[%s1 + $0x28] sm:$0xf]
  %v42 = vld [vmem:[%s1 + $0x2c] sm:$0xf]
  %v43 = vld [vmem:[%s1 + $0x30] sm:$0xf]
  %v44 = vld [vmem:[%s1 + $0x34] sm:$0xf]
  %v45 = vld [vmem:[%s1 + $0x38] sm:$0xf]
  %v46 = vld [vmem:[%s1 + $0x3c] sm:$0xf]
  %v47 = vld [vmem:[%s1 + $0x40] sm:$0xf]
  %v48 = vld [vmem:[%s1 + $0x44] sm:$0xf]
  %v49 = vld [vmem:[%s1 + $0x48] sm:$0xf]
  %v50 = vld [vmem:[%s1 + $0x4c] sm:$0xf]
  %v51 = vld [vmem:[%s1 + $0x50] sm:$0xf]
  %v52 = vld [vmem:[%s1 + $0x54] sm:$0xf]
  %v53 = vld [vmem:[%s1 + $0x58] sm:$0xf]
  %v54 = vld [vmem:[%s1 + $0x5c] sm:$0xf]
  %v55 = vld [vmem:[%s1 + $0x60] sm:$0xf]
  %v56 = vld [vmem:[%s1 + $0x64] sm:$0xf]
  %v57 = vld [vmem:[%s1 + $0x68] sm:$0xf]
  %v58 = vld [vmem:[%s1 + $0x6c] sm:$0xf]
  %v59 = vld [vmem:[%s1 + $0x70] sm:$0xf]
  %v60 = vld [vmem:[%s1 + $0x74] sm:$0xf]
  %v61 = vld [vmem:[%s1 + $0x78] sm:$0xf]
  %v62 = vld [vmem:[%s1 + $0x7c] sm:$0xf]
  %v65 = vunpack.c.l.b16 %v29
  %v66 = vunpack.c.h.b16 %v29
  %v67 = vunpack.c.l.b16 %v30
  %v68 = vunpack.c.h.b16 %v30
  %v69 = vpack.c.b16 %v67, %v65
  %v70 = vpack.c.b16 %v68, %v66
  %v105 = vunpack.c.l.b16 %v31
  %v106 = vunpack.c.l.b16 %v32
  %v107 = vunpack.c.l.b16 %v33
  %v108 = vunpack.c.l.b16 %v34
  %v109 = vunpack.c.l.b16 %v35
  %v110 = vunpack.c.l.b16 %v36
  %v111 = vunpack.c.l.b16 %v37
  %v112 = vunpack.c.l.b16 %v38
  %v113 = vunpack.c.l.b16 %v39
  %v114 = vunpack.c.l.b16 %v40
  %v115 = vunpack.c.l.b16 %v41
  %v116 = vunpack.c.l.b16 %v42
  %v117 = vunpack.c.l.b16 %v43
  %v118 = vunpack.c.l.b16 %v44
  %v119 = vunpack.c.l.b16 %v45
  %v120 = vunpack.c.l.b16 %v46
  %v121 = vunpack.c.l.b16 %v47
  %v122 = vunpack.c.l.b16 %v48
  %v123 = vunpack.c.l.b16 %v49
  %v124 = vunpack.c.l.b16 %v50
  %v125 = vunpack.c.l.b16 %v51
  %v126 = vunpack.c.l.b16 %v52
  %v127 = vunpack.c.l.b16 %v53
  %v128 = vunpack.c.l.b16 %v54
  %v129 = vunpack.c.l.b16 %v55
  %v130 = vunpack.c.l.b16 %v56
  %v131 = vunpack.c.l.b16 %v57
  %v132 = vunpack.c.l.b16 %v58
  %v133 = vunpack.c.l.b16 %v59
  %v134 = vunpack.c.l.b16 %v60
  %v135 = vunpack.c.l.b16 %v61
  %v136 = vunpack.c.l.b16 %v62
  %v137 = vpack.c.b16 %v106, %v105
  %v138 = vpack.c.b16 %v108, %v107
  %v139 = vpack.c.b16 %v110, %v109
  %v140 = vpack.c.b16 %v112, %v111
  %v141 = vpack.c.b16 %v114, %v113
  %v142 = vpack.c.b16 %v116, %v115
  %v143 = vpack.c.b16 %v118, %v117
  %v144 = vpack.c.b16 %v120, %v119
  %v145 = vpack.c.b16 %v122, %v121
  %v146 = vpack.c.b16 %v124, %v123
  %v147 = vpack.c.b16 %v126, %v125
  %v148 = vpack.c.b16 %v128, %v127
  %v149 = vpack.c.b16 %v130, %v129
  %v150 = vpack.c.b16 %v132, %v131
  %v151 = vpack.c.b16 %v134, %v133
  %v152 = vpack.c.b16 %v136, %v135
  %169 = vmatprep.subr.bf16.mxu0 0
  %170 = vmatpush1.bf16.msra.mxu0 %v137
  %171 = vmatprep.subr.bf16.mxu0 0
  %172 = vmatpush1.bf16.msra.mxu0 %v138
  %173 = vmatprep.subr.bf16.mxu0 0
  %174 = vmatpush1.bf16.msra.mxu0 %v139
  %175 = vmatprep.subr.bf16.mxu0 0
  %176 = vmatpush1.bf16.msra.mxu0 %v140
  %177 = vmatprep.subr.bf16.mxu0 0
  %178 = vmatpush1.bf16.msra.mxu0 %v141
  %179 = vmatprep.subr.bf16.mxu0 0
  %180 = vmatpush1.bf16.msra.mxu0 %v142
  %181 = vmatprep.subr.bf16.mxu0 0
  %182 = vmatpush1.bf16.msra.mxu0 %v143
  %183 = vmatprep.subr.bf16.mxu0 0
  %184 = vmatpush1.bf16.msra.mxu0 %v144
  %185 = vmatprep.subr.bf16.mxu0 0
  %186 = vmatpush1.bf16.msra.mxu0 %v145
  %187 = vmatprep.subr.bf16.mxu0 0
  %188 = vmatpush1.bf16.msra.mxu0 %v146
  %189 = vmatprep.subr.bf16.mxu0 0
  %190 = vmatpush1.bf16.msra.mxu0 %v147
  %191 = vmatprep.subr.bf16.mxu0 0
  %192 = vmatpush1.bf16.msra.mxu0 %v148
  %193 = vmatprep.subr.bf16.mxu0 0
  %194 = vmatpush1.bf16.msra.mxu0 %v149
  %195 = vmatprep.subr.bf16.mxu0 0
  %196 = vmatpush1.bf16.msra.mxu0 %v150
  %197 = vmatprep.subr.bf16.mxu0 0
  %198 = vmatpush1.bf16.msra.mxu0 %v151
  %199 = vmatprep.subr.bf16.mxu0 0
  %200 = vmatpush1.bf16.msra.mxu0 %v152
  %201 = vmatprep.mubr.bf16.mxu0 %v70
  %202 = vmatmul.mubr.bf16.gmra.mrb[0].mxu0 %v69
  %v203 = vpop.f32.mrb[0].mxu0
  %v204 = vadd.f32 0.0, %v203
  %v205 = vpop.f32.mrb[0].mxu0
  %v206 = vpop.f32.mrb[0].mxu0
  %v207 = vadd.f32 0.0, %v206
  %v208 = vpop.f32.mrb[0].mxu0
  %209 = vdwg.mxu0
  %v210 = vadd.f32 %v27, %v204
  %v211 = vadd.f32 %v28, %v207
  %212 = vst [vmem:[#allocation2] sm:$0xff] %v210
  %213 = vst [vmem:[#allocation2 + $0x8] sm:$0xff] %v211
  // Predicated region
  $region26: #{vae_forward.9} parent=0 // pred_check
    %p214 = pneg %p21
  $region27: #{vae_forward.9} parent=0 // pred_check_branch
    %216 = sbr.rel (%p214) target = $region29
  $region28: #{vae_forward.9} parent=0 // pred_region
    %v217 = vld [vmem:[#allocation2] sm:$0xff]
    %v218 = vld [vmem:[#allocation2 + $0x8] sm:$0xff]
    %v219 = vld [vmem:[%s2] sm:$0x1]
    %v221 = vlaneseq
    %v222 = vshrl.u32 %v221, 7
    %v223 = vsub.s32 0, %v222
    %v224 = vrot.slane %v219, %v223
    %v226 = vadd.f32 %v217, %v224
    %v227 = vadd.f32 %v218, %v224
    %v228 = vld [vmem:[%s3] sm:$0x1]
    %v230 = vlaneseq
    %v231 = vshrl.u32 %v230, 7
    %v232 = vsub.s32 0, %v231
    %v233 = vrot.slane %v228, %v232
    %v235 = vmul.f32 %v226, %v233
    %v236 = vmul.f32 %v227, %v233
    %v237 = vld [vmem:[%s4] sm:$0x1]
    %v239 = vlaneseq
    %v240 = vshrl.u32 %v239, 7
    %v241 = vsub.s32 0, %v240
    %v242 = vrot.slane %v237, %v241
    %v244 = vadd.f32 %v235, %v242
    %v245 = vadd.f32 %v236, %v242
    %vm246 = vcmp.gt.f32.partialorder %v244, 0.0
    %vm247 = vcmp.gt.f32.partialorder %v245, 0.0
    %v248 = vmul.f32 %v244, 0.01
    %v249 = vmul.f32 %v245, 0.01
    %v250 = vsel %vm246, %v244, %v248
    %v251 = vsel %vm247, %v245, %v249
    %252 = vst [vmem:[%s5] sm:$0xff] %v250
    %253 = vst [vmem:[%s5 + $0x8] sm:$0xff] %v251
  $region29: #{vae_forward.9} parent=0 // pred_fallthru
    _
  // Predicated region
  $region30: #{vae_forward.9} parent=0 // pred_check
    _
  $region31: #{vae_forward.9} parent=0 // pred_check_branch
    %255 = sbr.rel (0) target = $region33
  $region32: #{vae_forward.9} parent=0 // pred_region
    _
  $region33: #{vae_forward.9} parent=0 // pred_fallthru
    _
  // Predicated region
  $region34: #{vae_forward.9} parent=0 // pred_check
    _
  $region35: #{vae_forward.9} parent=0 // pred_check_branch
    %257 = sbr.rel (0) target = $region37
  $region36: #{vae_forward.9} parent=0 // pred_region
    _
  $region37: #{vae_forward.9} parent=0 // pred_fallthru
    _

// kernel: vae_forward.8
$region0: #{vae_forward.8}
  #allocation0 [shape = 'u32[]', space=smem, size = 0x4, offset = 0x4, fixed_abs, tag = 'smem constant byte address 0x4 - core index']
  #allocation1 [shape = 'u32[144,128]{1,0:T(1,128)}', space=vmem, size = 0x12000, scoped, tag = 'internal scratch']
  #allocation2 [shape = 'f32[16,128]{1,0:T(8,128)}', space=vmem, size = 0x2000, scoped, tag = 'scratch operand']
  %s0 = inlined_call_operand.vmem [shape: bf16[16,128], index: 0, kind: input, shape index: {}]
  %s1 = inlined_call_operand.vmem [shape: bf16[128,128], index: 1, kind: input, shape index: {}]
  %s2 = inlined_call_operand.vmem [shape: f32[1,128], index: 2, kind: input, shape index: {}]
  %s3 = inlined_call_operand.vmem [shape: f32[1,128], index: 3, kind: input, shape index: {}]
  %s4 = inlined_call_operand.vmem [shape: f32[1,128], index: 4, kind: input, shape index: {}]
  %s5 = inlined_call_operand.vmem [shape: f32[16,128], index: 5, kind: output, shape index: {}]
  %s6 = sld [smem:[#allocation0]]
  $region38: #{vae_forward.8} parent=0
    _
  %s8 = ssub.s32 1, %s6
  %s9 = scalar_select 0, %s8, %s6
  // Predicated region
  $region2: #{vae_forward.8} parent=0 // pred_check
    _
  $region3: #{vae_forward.8} parent=0 // pred_check_branch
    %11 = sbr.rel (0) target = $region5
  $region4: #{vae_forward.8} parent=0 // pred_region
    _
  $region5: #{vae_forward.8} parent=0 // pred_fallthru
    _
  // Predicated region
  $region6: #{vae_forward.8} parent=0 // pred_check
    _
  $region7: #{vae_forward.8} parent=0 // pred_check_branch
    %13 = sbr.rel (0) target = $region9
  $region8: #{vae_forward.8} parent=0 // pred_region
    _
  $region9: #{vae_forward.8} parent=0 // pred_fallthru
    _
  // Predicated region
  $region10: #{vae_forward.8} parent=0 // pred_check
    _
  $region11: #{vae_forward.8} parent=0 // pred_check_branch
    %15 = sbr.rel (0) target = $region13
  $region12: #{vae_forward.8} parent=0 // pred_region
    _
  $region13: #{vae_forward.8} parent=0 // pred_fallthru
    _
  // Predicated region
  $region14: #{vae_forward.8} parent=0 // pred_check
    _
  $region15: #{vae_forward.8} parent=0 // pred_check_branch
    %17 = sbr.rel (0) target = $region17
  $region16: #{vae_forward.8} parent=0 // pred_region
    _
  $region17: #{vae_forward.8} parent=0 // pred_fallthru
    _
  // Predicated region
  $region18: #{vae_forward.8} parent=0 // pred_check
    _
  $region19: #{vae_forward.8} parent=0 // pred_check_branch
    %19 = sbr.rel (0) target = $region21
  $region20: #{vae_forward.8} parent=0 // pred_region
    _
  $region21: #{vae_forward.8} parent=0 // pred_fallthru
    _
  %p21 = scmp.eq.s32.totalorder 0, 0
  // Predicated region
  $region22: #{vae_forward.8} parent=0 // pred_check
    %p22 = pneg %p21
  $region23: #{vae_forward.8} parent=0 // pred_check_branch
    %24 = sbr.rel (%p22) target = $region25
  $region24: #{vae_forward.8} parent=0 // pred_region
    %25 = vst [vmem:[#allocation2] sm:$0xff] 0.0
    %26 = vst [vmem:[#allocation2 + $0x8] sm:$0xff] 0.0
  $region25: #{vae_forward.8} parent=0 // pred_fallthru
    _
  %v27 = vld [vmem:[#allocation2] sm:$0xff]
  %v28 = vld [vmem:[#allocation2 + $0x8] sm:$0xff]
  %v29 = vld [vmem:[%s0] sm:$0xf]
  %v30 = vld [vmem:[%s0 + $0x4] sm:$0xf]
  %v31 = vld [vmem:[%s1] sm:$0xf]
  %v32 = vld [vmem:[%s1 + $0x4] sm:$0xf]
  %v33 = vld [vmem:[%s1 + $0x8] sm:$0xf]
  %v34 = vld [vmem:[%s1 + $0xc] sm:$0xf]
  %v35 = vld [vmem:[%s1 + $0x10] sm:$0xf]
  %v36 = vld [vmem:[%s1 + $0x14] sm:$0xf]
  %v37 = vld [vmem:[%s1 + $0x18] sm:$0xf]
  %v38 = vld [vmem:[%s1 + $0x1c] sm:$0xf]
  %v39 = vld [vmem:[%s1 + $0x20] sm:$0xf]
  %v40 = vld [vmem:[%s1 + $0x24] sm:$0xf]
  %v41 = vld [vmem:[%s1 + $0x28] sm:$0xf]
  %v42 = vld [vmem:[%s1 + $0x2c] sm:$0xf]
  %v43 = vld [vmem:[%s1 + $0x30] sm:$0xf]
  %v44 = vld [vmem:[%s1 + $0x34] sm:$0xf]
  %v45 = vld [vmem:[%s1 + $0x38] sm:$0xf]
  %v46 = vld [vmem:[%s1 + $0x3c] sm:$0xf]
  %v49 = vunpack.c.l.b16 %v29
  %v50 = vunpack.c.l.b16 %v30
  %v51 = vpack.c.b16 %v50, %v49
  %v69 = vunpack.c.l.b16 %v31
  %v70 = vunpack.c.l.b16 %v32
  %v71 = vunpack.c.l.b16 %v33
  %v72 = vunpack.c.l.b16 %v34
  %v73 = vunpack.c.l.b16 %v35
  %v74 = vunpack.c.l.b16 %v36
  %v75 = vunpack.c.l.b16 %v37
  %v76 = vunpack.c.l.b16 %v38
  %v77 = vunpack.c.l.b16 %v39
  %v78 = vunpack.c.l.b16 %v40
  %v79 = vunpack.c.l.b16 %v41
  %v80 = vunpack.c.l.b16 %v42
  %v81 = vunpack.c.l.b16 %v43
  %v82 = vunpack.c.l.b16 %v44
  %v83 = vunpack.c.l.b16 %v45
  %v84 = vunpack.c.l.b16 %v46
  %v85 = vpack.c.b16 %v70, %v69
  %v86 = vpack.c.b16 %v72, %v71
  %v87 = vpack.c.b16 %v74, %v73
  %v88 = vpack.c.b16 %v76, %v75
  %v89 = vpack.c.b16 %v78, %v77
  %v90 = vpack.c.b16 %v80, %v79
  %v91 = vpack.c.b16 %v82, %v81
  %v92 = vpack.c.b16 %v84, %v83
  %101 = vmatprep.subr.bf16.mxu0 0
  %102 = vmatpush1.bf16.msra.mxu0 %v85
  %103 = vmatprep.subr.bf16.mxu0 0
  %104 = vmatpush1.bf16.msra.mxu0 %v86
  %105 = vmatprep.subr.bf16.mxu0 0
  %106 = vmatpush1.bf16.msra.mxu0 %v87
  %107 = vmatprep.subr.bf16.mxu0 0
  %108 = vmatpush1.bf16.msra.mxu0 %v88
  %109 = vmatprep.subr.bf16.mxu0 0
  %110 = vmatpush1.bf16.msra.mxu0 %v89
  %111 = vmatprep.subr.bf16.mxu0 0
  %112 = vmatpush1.bf16.msra.mxu0 %v90
  %113 = vmatprep.subr.bf16.mxu0 0
  %114 = vmatpush1.bf16.msra.mxu0 %v91
  %115 = vmatprep.subr.bf16.mxu0 0
  %116 = vmatpush1.bf16.msra.mxu0 %v92
  %117 = vmatprep.subr.bf16.mxu0 0
  %118 = vmatpush1.bf16.msra.mxu0 0
  %119 = vmatprep.subr.bf16.mxu0 0
  %120 = vmatpush1.bf16.msra.mxu0 0
  %121 = vmatprep.subr.bf16.mxu0 0
  %122 = vmatpush1.bf16.msra.mxu0 0
  %123 = vmatprep.subr.bf16.mxu0 0
  %124 = vmatpush1.bf16.msra.mxu0 0
  %125 = vmatprep.subr.bf16.mxu0 0
  %126 = vmatpush1.bf16.msra.mxu0 0
  %127 = vmatprep.subr.bf16.mxu0 0
  %128 = vmatpush1.bf16.msra.mxu0 0
  %129 = vmatprep.subr.bf16.mxu0 0
  %130 = vmatpush1.bf16.msra.mxu0 0
  %131 = vmatprep.subr.bf16.mxu0 0
  %132 = vmatpush1.bf16.msra.mxu0 0
  %133 = vmatprep.mubr.bf16.mxu0 0
  %134 = vmatmul.mubr.bf16.gmra.mrb[0].mxu0 %v51
  %v135 = vpop.f32.mrb[0].mxu0
  %v136 = vadd.f32 0.0, %v135
  %v137 = vpop.f32.mrb[0].mxu0
  %v138 = vpop.f32.mrb[0].mxu0
  %v139 = vadd.f32 0.0, %v138
  %v140 = vpop.f32.mrb[0].mxu0
  %141 = vdwg.mxu0
  %v142 = vadd.f32 %v27, %v136
  %v143 = vadd.f32 %v28, %v139
  %144 = vst [vmem:[#allocation2] sm:$0xff] %v142
  %145 = vst [vmem:[#allocation2 + $0x8] sm:$0xff] %v143
  // Predicated region
  $region26: #{vae_forward.8} parent=0 // pred_check
    %p146 = pneg %p21
  $region27: #{vae_forward.8} parent=0 // pred_check_branch
    %148 = sbr.rel (%p146) target = $region29
  $region28: #{vae_forward.8} parent=0 // pred_region
    %v149 = vld [vmem:[#allocation2] sm:$0xff]
    %v150 = vld [vmem:[#allocation2 + $0x8] sm:$0xff]
    %v151 = vld [vmem:[%s2] sm:$0x1]
    %v153 = vlaneseq
    %v154 = vshrl.u32 %v153, 7
    %v155 = vsub.s32 0, %v154
    %v156 = vrot.slane %v151, %v155
    %v158 = vadd.f32 %v149, %v156
    %v159 = vadd.f32 %v150, %v156
    %v160 = vld [vmem:[%s3] sm:$0x1]
    %v162 = vlaneseq
    %v163 = vshrl.u32 %v162, 7
    %v164 = vsub.s32 0, %v163
    %v165 = vrot.slane %v160, %v164
    %v167 = vmul.f32 %v158, %v165
    %v168 = vmul.f32 %v159, %v165
    %v169 = vld [vmem:[%s4] sm:$0x1]
    %v171 = vlaneseq
    %v172 = vshrl.u32 %v171, 7
    %v173 = vsub.s32 0, %v172
    %v174 = vrot.slane %v169, %v173
    %v176 = vadd.f32 %v167, %v174
    %v177 = vadd.f32 %v168, %v174
    %vm178 = vcmp.gt.f32.partialorder %v176, 0.0
    %vm179 = vcmp.gt.f32.partialorder %v177, 0.0
    %v180 = vmul.f32 %v176, 0.01
    %v181 = vmul.f32 %v177, 0.01
    %v182 = vsel %vm178, %v176, %v180
    %v183 = vsel %vm179, %v177, %v181
    %184 = vst [vmem:[%s5] sm:$0xff] %v182
    %185 = vst [vmem:[%s5 + $0x8] sm:$0xff] %v183
  $region29: #{vae_forward.8} parent=0 // pred_fallthru
    _
  // Predicated region
  $region30: #{vae_forward.8} parent=0 // pred_check
    _
  $region31: #{vae_forward.8} parent=0 // pred_check_branch
    %187 = sbr.rel (0) target = $region33
  $region32: #{vae_forward.8} parent=0 // pred_region
    _
  $region33: #{vae_forward.8} parent=0 // pred_fallthru
    _
  // Predicated region
  $region34: #{vae_forward.8} parent=0 // pred_check
    _
  $region35: #{vae_forward.8} parent=0 // pred_check_branch
    %189 = sbr.rel (0) target = $region37
  $region36: #{vae_forward.8} parent=0 // pred_region
    _
  $region37: #{vae_forward.8} parent=0 // pred_fallthru
    _

// kernel: vae_forward.10
$region0: #{vae_forward.10}
  #allocation0 [shape = 'u32[]', space=smem, size = 0x4, offset = 0x4, fixed_abs, tag = 'smem constant byte address 0x4 - core index']
  #allocation1 [shape = 'u32[144,128]{1,0:T(1,128)}', space=vmem, size = 0x12000, scoped, tag = 'internal scratch']
  #allocation2 [shape = 'f32[16,256]{1,0:T(8,128)}', space=vmem, size = 0x4000, scoped, tag = 'scratch operand']
  %s0 = inlined_call_operand.vmem [shape: bf16[16,384], index: 0, kind: input, shape index: {}]
  %s1 = inlined_call_operand.vmem [shape: bf16[384,256], index: 1, kind: input, shape index: {}]
  %s2 = inlined_call_operand.vmem [shape: f32[1,256], index: 2, kind: input, shape index: {}]
  %s3 = inlined_call_operand.vmem [shape: f32[1,256], index: 3, kind: input, shape index: {}]
  %s4 = inlined_call_operand.vmem [shape: f32[1,256], index: 4, kind: input, shape index: {}]
  %s5 = inlined_call_operand.vmem [shape: f32[16,256], index: 5, kind: output, shape index: {}]
  %s6 = sld [smem:[#allocation0]]
  $region38: #{vae_forward.10} parent=0
    _
  %s8 = ssub.s32 1, %s6
  %s9 = scalar_select 0, %s8, %s6
  // Predicated region
  $region2: #{vae_forward.10} parent=0 // pred_check
    _
  $region3: #{vae_forward.10} parent=0 // pred_check_branch
    %11 = sbr.rel (0) target = $region5
  $region4: #{vae_forward.10} parent=0 // pred_region
    _
  $region5: #{vae_forward.10} parent=0 // pred_fallthru
    _
  // Predicated region
  $region6: #{vae_forward.10} parent=0 // pred_check
    _
  $region7: #{vae_forward.10} parent=0 // pred_check_branch
    %13 = sbr.rel (0) target = $region9
  $region8: #{vae_forward.10} parent=0 // pred_region
    _
  $region9: #{vae_forward.10} parent=0 // pred_fallthru
    _
  // Predicated region
  $region10: #{vae_forward.10} parent=0 // pred_check
    _
  $region11: #{vae_forward.10} parent=0 // pred_check_branch
    %15 = sbr.rel (0) target = $region13
  $region12: #{vae_forward.10} parent=0 // pred_region
    _
  $region13: #{vae_forward.10} parent=0 // pred_fallthru
    _
  // Predicated region
  $region14: #{vae_forward.10} parent=0 // pred_check
    _
  $region15: #{vae_forward.10} parent=0 // pred_check_branch
    %17 = sbr.rel (0) target = $region17
  $region16: #{vae_forward.10} parent=0 // pred_region
    _
  $region17: #{vae_forward.10} parent=0 // pred_fallthru
    _
  // Predicated region
  $region18: #{vae_forward.10} parent=0 // pred_check
    _
  $region19: #{vae_forward.10} parent=0 // pred_check_branch
    %19 = sbr.rel (0) target = $region21
  $region20: #{vae_forward.10} parent=0 // pred_region
    _
  $region21: #{vae_forward.10} parent=0 // pred_fallthru
    _
  %p21 = scmp.eq.s32.totalorder 0, 0
  // Predicated region
  $region22: #{vae_forward.10} parent=0 // pred_check
    %p22 = pneg %p21
  $region23: #{vae_forward.10} parent=0 // pred_check_branch
    %24 = sbr.rel (%p22) target = $region25
  $region24: #{vae_forward.10} parent=0 // pred_region
    %25 = vst [vmem:[#allocation2] sm:$0xff] 0.0
    %26 = vst [vmem:[#allocation2 + $0x8] sm:$0xff] 0.0
    %27 = vst [vmem:[#allocation2 + $0x10] sm:$0xff] 0.0
    %28 = vst [vmem:[#allocation2 + $0x18] sm:$0xff] 0.0
  $region25: #{vae_forward.10} parent=0 // pred_fallthru
    _
  %v29 = vld [vmem:[#allocation2] sm:$0xff]
  %v30 = vld [vmem:[#allocation2 + $0x8] sm:$0xff]
  %v31 = vld [vmem:[#allocation2 + $0x10] sm:$0xff]
  %v32 = vld [vmem:[#allocation2 + $0x18] sm:$0xff]
  %v33 = vld [vmem:[%s0] sm:$0xff]
  %v34 = vld [vmem:[%s0 + $0x8] sm:$0xf]
  %v35 = vld [vmem:[%s0 + $0xc] sm:$0xff]
  %v36 = vld [vmem:[%s0 + $0x14] sm:$0xf]
  %v37 = vld [vmem:[%s1] sm:$0xff]
  %v38 = vld [vmem:[%s1 + $0x8] sm:$0xff]
  %v39 = vld [vmem:[%s1 + $0x10] sm:$0xff]
  %v40 = vld [vmem:[%s1 + $0x18] sm:$0xff]
  %v41 = vld [vmem:[%s1 + $0x20] sm:$0xff]
  %v42 = vld [vmem:[%s1 + $0x28] sm:$0xff]
  %v43 = vld [vmem:[%s1 + $0x30] sm:$0xff]
  %v44 = vld [vmem:[%s1 + $0x38] sm:$0xff]
  %v45 = vld [vmem:[%s1 + $0x40] sm:$0xff]
  %v46 = vld [vmem:[%s1 + $0x48] sm:$0xff]
  %v47 = vld [vmem:[%s1 + $0x50] sm:$0xff]
  %v48 = vld [vmem:[%s1 + $0x58] sm:$0xff]
  %v49 = vld [vmem:[%s1 + $0x60] sm:$0xff]
  %v50 = vld [vmem:[%s1 + $0x68] sm:$0xff]
  %v51 = vld [vmem:[%s1 + $0x70] sm:$0xff]
  %v52 = vld [vmem:[%s1 + $0x78] sm:$0xff]
  %v53 = vld [vmem:[%s1 + $0x80] sm:$0xff]
  %v54 = vld [vmem:[%s1 + $0x88] sm:$0xff]
  %v55 = vld [vmem:[%s1 + $0x90] sm:$0xff]
  %v56 = vld [vmem:[%s1 + $0x98] sm:$0xff]
  %v57 = vld [vmem:[%s1 + $0xa0] sm:$0xff]
  %v58 = vld [vmem:[%s1 + $0xa8] sm:$0xff]
  %v59 = vld [vmem:[%s1 + $0xb0] sm:$0xff]
  %v60 = vld [vmem:[%s1 + $0xb8] sm:$0xff]
  %v61 = vld [vmem:[%s1 + $0xc0] sm:$0xff]
  %v62 = vld [vmem:[%s1 + $0xc8] sm:$0xff]
  %v63 = vld [vmem:[%s1 + $0xd0] sm:$0xff]
  %v64 = vld [vmem:[%s1 + $0xd8] sm:$0xff]
  %v65 = vld [vmem:[%s1 + $0xe0] sm:$0xff]
  %v66 = vld [vmem:[%s1 + $0xe8] sm:$0xff]
  %v67 = vld [vmem:[%s1 + $0xf0] sm:$0xff]
  %v68 = vld [vmem:[%s1 + $0xf8] sm:$0xff]
  %v69 = vld [vmem:[%s1 + $0x100] sm:$0xff]
  %v70 = vld [vmem:[%s1 + $0x108] sm:$0xff]
  %v71 = vld [vmem:[%s1 + $0x110] sm:$0xff]
  %v72 = vld [vmem:[%s1 + $0x118] sm:$0xff]
  %v73 = vld [vmem:[%s1 + $0x120] sm:$0xff]
  %v74 = vld [vmem:[%s1 + $0x128] sm:$0xff]
  %v75 = vld [vmem:[%s1 + $0x130] sm:$0xff]
  %v76 = vld [vmem:[%s1 + $0x138] sm:$0xff]
  %v77 = vld [vmem:[%s1 + $0x140] sm:$0xff]
  %v78 = vld [vmem:[%s1 + $0x148] sm:$0xff]
  %v79 = vld [vmem:[%s1 + $0x150] sm:$0xff]
  %v80 = vld [vmem:[%s1 + $0x158] sm:$0xff]
  %v81 = vld [vmem:[%s1 + $0x160] sm:$0xff]
  %v82 = vld [vmem:[%s1 + $0x168] sm:$0xff]
  %v83 = vld [vmem:[%s1 + $0x170] sm:$0xff]
  %v84 = vld [vmem:[%s1 + $0x178] sm:$0xff]
  %v89 = vunpack.c.l.b16 %v33
  %v90 = vunpack.c.h.b16 %v33
  %v91 = vunpack.c.l.b16 %v34
  %v92 = vunpack.c.l.b16 %v35
  %v93 = vunpack.c.h.b16 %v35
  %v94 = vunpack.c.l.b16 %v36
  %v95 = vpack.c.b16 %v92, %v89
  %v96 = vpack.c.b16 %v93, %v90
  %v97 = vpack.c.b16 %v94, %v91
  %v149 = vunpack.c.l.b16 %v37
  %v150 = vunpack.c.h.b16 %v37
  %v151 = vunpack.c.l.b16 %v38
  %v152 = vunpack.c.h.b16 %v38
  %v153 = vunpack.c.l.b16 %v39
  %v154 = vunpack.c.h.b16 %v39
  %v155 = vunpack.c.l.b16 %v40
  %v156 = vunpack.c.h.b16 %v40
  %v157 = vunpack.c.l.b16 %v41
  %v158 = vunpack.c.h.b16 %v41
  %v159 = vunpack.c.l.b16 %v42
  %v160 = vunpack.c.h.b16 %v42
  %v161 = vunpack.c.l.b16 %v43
  %v162 = vunpack.c.h.b16 %v43
  %v163 = vunpack.c.l.b16 %v44
  %v164 = vunpack.c.h.b16 %v44
  %v165 = vunpack.c.l.b16 %v45
  %v166 = vunpack.c.h.b16 %v45
  %v167 = vunpack.c.l.b16 %v46
  %v168 = vunpack.c.h.b16 %v46
  %v169 = vunpack.c.l.b16 %v47
  %v170 = vunpack.c.h.b16 %v47
  %v171 = vunpack.c.l.b16 %v48
  %v172 = vunpack.c.h.b16 %v48
  %v173 = vunpack.c.l.b16 %v49
  %v174 = vunpack.c.h.b16 %v49
  %v175 = vunpack.c.l.b16 %v50
  %v176 = vunpack.c.h.b16 %v50
  %v177 = vunpack.c.l.b16 %v51
  %v178 = vunpack.c.h.b16 %v51
  %v179 = vunpack.c.l.b16 %v52
  %v180 = vunpack.c.h.b16 %v52
  %v181 = vunpack.c.l.b16 %v53
  %v182 = vunpack.c.h.b16 %v53
  %v183 = vunpack.c.l.b16 %v54
  %v184 = vunpack.c.h.b16 %v54
  %v185 = vunpack.c.l.b16 %v55
  %v186 = vunpack.c.h.b16 %v55
  %v187 = vunpack.c.l.b16 %v56
  %v188 = vunpack.c.h.b16 %v56
  %v189 = vunpack.c.l.b16 %v57
  %v190 = vunpack.c.h.b16 %v57
  %v191 = vunpack.c.l.b16 %v58
  %v192 = vunpack.c.h.b16 %v58
  %v193 = vunpack.c.l.b16 %v59
  %v194 = vunpack.c.h.b16 %v59
  %v195 = vunpack.c.l.b16 %v60
  %v196 = vunpack.c.h.b16 %v60
  %v197 = vunpack.c.l.b16 %v61
  %v198 = vunpack.c.h.b16 %v61
  %v199 = vunpack.c.l.b16 %v62
  %v200 = vunpack.c.h.b16 %v62
  %v201 = vunpack.c.l.b16 %v63
  %v202 = vunpack.c.h.b16 %v63
  %v203 = vunpack.c.l.b16 %v64
  %v204 = vunpack.c.h.b16 %v64
  %v205 = vunpack.c.l.b16 %v65
  %v206 = vunpack.c.h.b16 %v65
  %v207 = vunpack.c.l.b16 %v66
  %v208 = vunpack.c.h.b16 %v66
  %v209 = vunpack.c.l.b16 %v67
  %v210 = vunpack.c.h.b16 %v67
  %v211 = vunpack.c.l.b16 %v68
  %v212 = vunpack.c.h.b16 %v68
  %v213 = vunpack.c.l.b16 %v69
  %v214 = vunpack.c.h.b16 %v69
  %v215 = vunpack.c.l.b16 %v70
  %v216 = vunpack.c.h.b16 %v70
  %v217 = vunpack.c.l.b16 %v71
  %v218 = vunpack.c.h.b16 %v71
  %v219 = vunpack.c.l.b16 %v72
  %v220 = vunpack.c.h.b16 %v72
  %v221 = vunpack.c.l.b16 %v73
  %v222 = vunpack.c.h.b16 %v73
  %v223 = vunpack.c.l.b16 %v74
  %v224 = vunpack.c.h.b16 %v74
  %v225 = vunpack.c.l.b16 %v75
  %v226 = vunpack.c.h.b16 %v75
  %v227 = vunpack.c.l.b16 %v76
  %v228 = vunpack.c.h.b16 %v76
  %v229 = vunpack.c.l.b16 %v77
  %v230 = vunpack.c.h.b16 %v77
  %v231 = vunpack.c.l.b16 %v78
  %v232 = vunpack.c.h.b16 %v78
  %v233 = vunpack.c.l.b16 %v79
  %v234 = vunpack.c.h.b16 %v79
  %v235 = vunpack.c.l.b16 %v80
  %v236 = vunpack.c.h.b16 %v80
  %v237 = vunpack.c.l.b16 %v81
  %v238 = vunpack.c.h.b16 %v81
  %v239 = vunpack.c.l.b16 %v82
  %v240 = vunpack.c.h.b16 %v82
  %v241 = vunpack.c.l.b16 %v83
  %v242 = vunpack.c.h.b16 %v83
  %v243 = vunpack.c.l.b16 %v84
  %v244 = vunpack.c.h.b16 %v84
  %v245 = vpack.c.b16 %v151, %v149
  %v246 = vpack.c.b16 %v152, %v150
  %v247 = vpack.c.b16 %v155, %v153
  %v248 = vpack.c.b16 %v156, %v154
  %v249 = vpack.c.b16 %v159, %v157
  %v250 = vpack.c.b16 %v160, %v158
  %v251 = vpack.c.b16 %v163, %v161
  %v252 = vpack.c.b16 %v164, %v162
  %v253 = vpack.c.b16 %v167, %v165
  %v254 = vpack.c.b16 %v168, %v166
  %v255 = vpack.c.b16 %v171, %v169
  %v256 = vpack.c.b16 %v172, %v170
  %v257 = vpack.c.b16 %v175, %v173
  %v258 = vpack.c.b16 %v176, %v174
  %v259 = vpack.c.b16 %v179, %v177
  %v260 = vpack.c.b16 %v180, %v178
  %v261 = vpack.c.b16 %v183, %v181
  %v262 = vpack.c.b16 %v184, %v182
  %v263 = vpack.c.b16 %v187, %v185
  %v264 = vpack.c.b16 %v188, %v186
  %v265 = vpack.c.b16 %v191, %v189
  %v266 = vpack.c.b16 %v192, %v190
  %v267 = vpack.c.b16 %v195, %v193
  %v268 = vpack.c.b16 %v196, %v194
  %v269 = vpack.c.b16 %v199, %v197
  %v270 = vpack.c.b16 %v200, %v198
  %v271 = vpack.c.b16 %v203, %v201
  %v272 = vpack.c.b16 %v204, %v202
  %v273 = vpack.c.b16 %v207, %v205
  %v274 = vpack.c.b16 %v208, %v206
  %v275 = vpack.c.b16 %v211, %v209
  %v276 = vpack.c.b16 %v212, %v210
  %v277 = vpack.c.b16 %v215, %v213
  %v278 = vpack.c.b16 %v216, %v214
  %v279 = vpack.c.b16 %v219, %v217
  %v280 = vpack.c.b16 %v220, %v218
  %v281 = vpack.c.b16 %v223, %v221
  %v282 = vpack.c.b16 %v224, %v222
  %v283 = vpack.c.b16 %v227, %v225
  %v284 = vpack.c.b16 %v228, %v226
  %v285 = vpack.c.b16 %v231, %v229
  %v286 = vpack.c.b16 %v232, %v230
  %v287 = vpack.c.b16 %v235, %v233
  %v288 = vpack.c.b16 %v236, %v234
  %v289 = vpack.c.b16 %v239, %v237
  %v290 = vpack.c.b16 %v240, %v238
  %v291 = vpack.c.b16 %v243, %v241
  %v292 = vpack.c.b16 %v244, %v242
  %341 = vmatprep.subr.bf16.mxu0 %v246
  %342 = vmatpush1.bf16.msra.mxu0 %v245
  %343 = vmatprep.subr.bf16.mxu0 %v248
  %344 = vmatpush1.bf16.msra.mxu0 %v247
  %345 = vmatprep.subr.bf16.mxu0 %v250
  %346 = vmatpush1.bf16.msra.mxu0 %v249
  %347 = vmatprep.subr.bf16.mxu0 %v252
  %348 = vmatpush1.bf16.msra.mxu0 %v251
  %349 = vmatprep.subr.bf16.mxu0 %v254
  %350 = vmatpush1.bf16.msra.mxu0 %v253
  %351 = vmatprep.subr.bf16.mxu0 %v256
  %352 = vmatpush1.bf16.msra.mxu0 %v255
  %353 = vmatprep.subr.bf16.mxu0 %v258
  %354 = vmatpush1.bf16.msra.mxu0 %v257
  %355 = vmatprep.subr.bf16.mxu0 %v260
  %356 = vmatpush1.bf16.msra.mxu0 %v259
  %357 = vmatprep.subr.bf16.mxu0 %v262
  %358 = vmatpush1.bf16.msra.mxu0 %v261
  %359 = vmatprep.subr.bf16.mxu0 %v264
  %360 = vmatpush1.bf16.msra.mxu0 %v263
  %361 = vmatprep.subr.bf16.mxu0 %v266
  %362 = vmatpush1.bf16.msra.mxu0 %v265
  %363 = vmatprep.subr.bf16.mxu0 %v268
  %364 = vmatpush1.bf16.msra.mxu0 %v267
  %365 = vmatprep.subr.bf16.mxu0 %v270
  %366 = vmatpush1.bf16.msra.mxu0 %v269
  %367 = vmatprep.subr.bf16.mxu0 %v272
  %368 = vmatpush1.bf16.msra.mxu0 %v271
  %369 = vmatprep.subr.bf16.mxu0 %v274
  %370 = vmatpush1.bf16.msra.mxu0 %v273
  %371 = vmatprep.subr.bf16.mxu0 %v276
  %372 = vmatpush1.bf16.msra.mxu0 %v275
  %373 = vmatprep.mubr.bf16.mxu0 %v96
  %374 = vmatmul.mubr.bf16.gmra.mrb[0].mxu0 %v95
  %v375 = vpop.f32.mrb[0].mxu0
  %v376 = vadd.f32 0.0, %v375
  %v377 = vpop.f32.mrb[0].mxu0
  %v378 = vadd.f32 0.0, %v377
  %v379 = vpop.f32.mrb[0].mxu0
  %v380 = vadd.f32 0.0, %v379
  %v381 = vpop.f32.mrb[0].mxu0
  %v382 = vadd.f32 0.0, %v381
  %383 = vdwg.mxu0
  %384 = vmatprep.subr.bf16.mxu0 %v278
  %385 = vmatpush1.bf16.msra.mxu0 %v277
  %386 = vmatprep.subr.bf16.mxu0 %v280
  %387 = vmatpush1.bf16.msra.mxu0 %v279
  %388 = vmatprep.subr.bf16.mxu0 %v282
  %389 = vmatpush1.bf16.msra.mxu0 %v281
  %390 = vmatprep.subr.bf16.mxu0 %v284
  %391 = vmatpush1.bf16.msra.mxu0 %v283
  %392 = vmatprep.subr.bf16.mxu0 %v286
  %393 = vmatpush1.bf16.msra.mxu0 %v285
  %394 = vmatprep.subr.bf16.mxu0 %v288
  %395 = vmatpush1.bf16.msra.mxu0 %v287
  %396 = vmatprep.subr.bf16.mxu0 %v290
  %397 = vmatpush1.bf16.msra.mxu0 %v289
  %398 = vmatprep.subr.bf16.mxu0 %v292
  %399 = vmatpush1.bf16.msra.mxu0 %v291
  %400 = vmatprep.subr.bf16.mxu0 0
  %401 = vmatpush1.bf16.msra.mxu0 0
  %402 = vmatprep.subr.bf16.mxu0 0
  %403 = vmatpush1.bf16.msra.mxu0 0
  %404 = vmatprep.subr.bf16.mxu0 0
  %405 = vmatpush1.bf16.msra.mxu0 0
  %406 = vmatprep.subr.bf16.mxu0 0
  %407 = vmatpush1.bf16.msra.mxu0 0
  %408 = vmatprep.subr.bf16.mxu0 0
  %409 = vmatpush1.bf16.msra.mxu0 0
  %410 = vmatprep.subr.bf16.mxu0 0
  %411 = vmatpush1.bf16.msra.mxu0 0
  %412 = vmatprep.subr.bf16.mxu0 0
  %413 = vmatpush1.bf16.msra.mxu0 0
  %414 = vmatprep.subr.bf16.mxu0 0
  %415 = vmatpush1.bf16.msra.mxu0 0
  %416 = vmatprep.mubr.bf16.mxu0 0
  %417 = vmatmul.mubr.bf16.gmra.mrb[0].mxu0 %v97
  %v418 = vpop.f32.mrb[0].mxu0
  %v419 = vadd.f32 %v376, %v418
  %v420 = vpop.f32.mrb[0].mxu0
  %v421 = vadd.f32 %v378, %v420
  %v422 = vpop.f32.mrb[0].mxu0
  %v423 = vadd.f32 %v380, %v422
  %v424 = vpop.f32.mrb[0].mxu0
  %v425 = vadd.f32 %v382, %v424
  %426 = vdwg.mxu0
  %v427 = vadd.f32 %v29, %v419
  %v428 = vadd.f32 %v30, %v421
  %v429 = vadd.f32 %v31, %v423
  %v430 = vadd.f32 %v32, %v425
  %431 = vst [vmem:[#allocation2] sm:$0xff] %v427
  %432 = vst [vmem:[#allocation2 + $0x8] sm:$0xff] %v428
  %433 = vst [vmem:[#allocation2 + $0x10] sm:$0xff] %v429
  %434 = vst [vmem:[#allocation2 + $0x18] sm:$0xff] %v430
  // Predicated region
  $region26: #{vae_forward.10} parent=0 // pred_check
    %p435 = pneg %p21
  $region27: #{vae_forward.10} parent=0 // pred_check_branch
    %437 = sbr.rel (%p435) target = $region29
  $region28: #{vae_forward.10} parent=0 // pred_region
    %v438 = vld [vmem:[#allocation2] sm:$0xff]
    %v439 = vld [vmem:[#allocation2 + $0x8] sm:$0xff]
    %v440 = vld [vmem:[#allocation2 + $0x10] sm:$0xff]
    %v441 = vld [vmem:[#allocation2 + $0x18] sm:$0xff]
    %v442 = vld [vmem:[%s2] sm:$0x3]
    %v444 = vlaneseq
    %v445 = vshrl.u32 %v444, 7
    %v446 = vsub.s32 0, %v445
    %v447 = vrot.slane %v442, %v446
    %v448 = vlaneseq
    %v449 = vshrl.u32 %v448, 7
    %v450 = vsub.s32 1, %v449
    %v451 = vrot.slane %v442, %v450
    %v454 = vadd.f32 %v438, %v447
    %v455 = vadd.f32 %v439, %v451
    %v456 = vadd.f32 %v440, %v447
    %v457 = vadd.f32 %v441, %v451
    %v458 = vld [vmem:[%s3] sm:$0x3]
    %v460 = vlaneseq
    %v461 = vshrl.u32 %v460, 7
    %v462 = vsub.s32 0, %v461
    %v463 = vrot.slane %v458, %v462
    %v464 = vlaneseq
    %v465 = vshrl.u32 %v464, 7
    %v466 = vsub.s32 1, %v465
    %v467 = vrot.slane %v458, %v466
    %v470 = vmul.f32 %v454, %v463
    %v471 = vmul.f32 %v455, %v467
    %v472 = vmul.f32 %v456, %v463
    %v473 = vmul.f32 %v457, %v467
    %v474 = vld [vmem:[%s4] sm:$0x3]
    %v476 = vlaneseq
    %v477 = vshrl.u32 %v476, 7
    %v478 = vsub.s32 0, %v477
    %v479 = vrot.slane %v474, %v478
    %v480 = vlaneseq
    %v481 = vshrl.u32 %v480, 7
    %v482 = vsub.s32 1, %v481
    %v483 = vrot.slane %v474, %v482
    %v486 = vadd.f32 %v470, %v479
    %v487 = vadd.f32 %v471, %v483
    %v488 = vadd.f32 %v472, %v479
    %v489 = vadd.f32 %v473, %v483
    %vm490 = vcmp.gt.f32.partialorder %v486, 0.0
    %vm491 = vcmp.gt.f32.partialorder %v487, 0.0
    %vm492 = vcmp.gt.f32.partialorder %v488, 0.0
    %vm493 = vcmp.gt.f32.partialorder %v489, 0.0
    %v494 = vmul.f32 %v486, 0.01
    %v495 = vmul.f32 %v487, 0.01
    %v496 = vmul.f32 %v488, 0.01
    %v497 = vmul.f32 %v489, 0.01
    %v498 = vsel %vm490, %v486, %v494
    %v499 = vsel %vm491, %v487, %v495
    %v500 = vsel %vm492, %v488, %v496
    %v501 = vsel %vm493, %v489, %v497
    %502 = vst [vmem:[%s5] sm:$0xff] %v498
    %503 = vst [vmem:[%s5 + $0x8] sm:$0xff] %v499
    %504 = vst [vmem:[%s5 + $0x10] sm:$0xff] %v500
    %505 = vst [vmem:[%s5 + $0x18] sm:$0xff] %v501
  $region29: #{vae_forward.10} parent=0 // pred_fallthru
    _
  // Predicated region
  $region30: #{vae_forward.10} parent=0 // pred_check
    _
  $region31: #{vae_forward.10} parent=0 // pred_check_branch
    %507 = sbr.rel (0) target = $region33
  $region32: #{vae_forward.10} parent=0 // pred_region
    _
  $region33: #{vae_forward.10} parent=0 // pred_fallthru
    _
  // Predicated region
  $region34: #{vae_forward.10} parent=0 // pred_check
    _
  $region35: #{vae_forward.10} parent=0 // pred_check_branch
    %509 = sbr.rel (0) target = $region37
  $region36: #{vae_forward.10} parent=0 // pred_region
    _
  $region37: #{vae_forward.10} parent=0 // pred_fallthru
    _

// kernel: vae_forward.11
$region0: #{vae_forward.11}
  #allocation0 [shape = 'u32[]', space=smem, size = 0x4, offset = 0x4, fixed_abs, tag = 'smem constant byte address 0x4 - core index']
  #allocation1 [shape = 'u32[144,128]{1,0:T(1,128)}', space=vmem, size = 0x12000, scoped, tag = 'internal scratch']
  #allocation2 [shape = 'f32[16,256]{1,0:T(8,128)}', space=vmem, size = 0x4000, scoped, tag = 'scratch operand']
  %s0 = inlined_call_operand.vmem [shape: bf16[16,512], index: 0, kind: input, shape index: {}]
  %s1 = inlined_call_operand.vmem [shape: bf16[512,256], index: 1, kind: input, shape index: {}]
  %s2 = inlined_call_operand.vmem [shape: f32[1,256], index: 2, kind: input, shape index: {}]
  %s3 = inlined_call_operand.vmem [shape: f32[16,128], index: 3, kind: input, shape index: {}]
  %s4 = inlined_call_operand.vmem [shape: bf16[128,512], index: 4, kind: input, shape index: {}]
  %s5 = inlined_call_operand.vmem [shape: f32[1,512], index: 5, kind: input, shape index: {}]
  %s6 = inlined_call_operand.vmem [shape: f32[16,128], index: 6, kind: output, shape index: {0}]
  %s7 = inlined_call_operand.vmem [shape: f32[16,128], index: 7, kind: output, shape index: {1}]
  %s8 = inlined_call_operand.vmem [shape: f32[16,512], index: 8, kind: output, shape index: {2}]
  %9 = xla_tuple %s6, %s7, %s8
  %s10 = sld [smem:[#allocation0]]
  $region58: #{vae_forward.11} parent=0
    _
  %s12 = ssub.s32 1, %s10
  %s13 = scalar_select 0, %s12, %s10
  // Predicated region
  $region2: #{vae_forward.11} parent=0 // pred_check
    _
  $region3: #{vae_forward.11} parent=0 // pred_check_branch
    %15 = sbr.rel (0) target = $region5
  $region4: #{vae_forward.11} parent=0 // pred_region
    _
  $region5: #{vae_forward.11} parent=0 // pred_fallthru
    _
  // Predicated region
  $region6: #{vae_forward.11} parent=0 // pred_check
    _
  $region7: #{vae_forward.11} parent=0 // pred_check_branch
    %17 = sbr.rel (0) target = $region9
  $region8: #{vae_forward.11} parent=0 // pred_region
    _
  $region9: #{vae_forward.11} parent=0 // pred_fallthru
    _
  // Predicated region
  $region10: #{vae_forward.11} parent=0 // pred_check
    _
  $region11: #{vae_forward.11} parent=0 // pred_check_branch
    %19 = sbr.rel (0) target = $region13
  $region12: #{vae_forward.11} parent=0 // pred_region
    _
  $region13: #{vae_forward.11} parent=0 // pred_fallthru
    _
  // Predicated region
  $region14: #{vae_forward.11} parent=0 // pred_check
    _
  $region15: #{vae_forward.11} parent=0 // pred_check_branch
    %21 = sbr.rel (0) target = $region17
  $region16: #{vae_forward.11} parent=0 // pred_region
    _
  $region17: #{vae_forward.11} parent=0 // pred_fallthru
    _
  // Predicated region
  $region18: #{vae_forward.11} parent=0 // pred_check
    _
  $region19: #{vae_forward.11} parent=0 // pred_check_branch
    %23 = sbr.rel (0) target = $region21
  $region20: #{vae_forward.11} parent=0 // pred_region
    _
  $region21: #{vae_forward.11} parent=0 // pred_fallthru
    _
  // Predicated region
  $region22: #{vae_forward.11} parent=0 // pred_check
    _
  $region23: #{vae_forward.11} parent=0 // pred_check_branch
    %25 = sbr.rel (0) target = $region25
  $region24: #{vae_forward.11} parent=0 // pred_region
    _
  $region25: #{vae_forward.11} parent=0 // pred_fallthru
    _
  %p27 = scmp.eq.s32.totalorder 0, 0
  // Predicated region
  $region26: #{vae_forward.11} parent=0 // pred_check
    %p28 = pneg %p27
  $region27: #{vae_forward.11} parent=0 // pred_check_branch
    %30 = sbr.rel (%p28) target = $region29
  $region28: #{vae_forward.11} parent=0 // pred_region
    %31 = vst [vmem:[#allocation2] sm:$0xff] 0.0
    %32 = vst [vmem:[#allocation2 + $0x8] sm:$0xff] 0.0
    %33 = vst [vmem:[#allocation2 + $0x10] sm:$0xff] 0.0
    %34 = vst [vmem:[#allocation2 + $0x18] sm:$0xff] 0.0
  $region29: #{vae_forward.11} parent=0 // pred_fallthru
    _
  %v35 = vld [vmem:[#allocation2] sm:$0xff]
  %v36 = vld [vmem:[#allocation2 + $0x8] sm:$0xff]
  %v37 = vld [vmem:[#allocation2 + $0x10] sm:$0xff]
  %v38 = vld [vmem:[#allocation2 + $0x18] sm:$0xff]
  %v39 = vld [vmem:[%s0] sm:$0xff]
  %v40 = vld [vmem:[%s0 + $0x8] sm:$0xff]
  %v41 = vld [vmem:[%s0 + $0x10] sm:$0xff]
  %v42 = vld [vmem:[%s0 + $0x18] sm:$0xff]
  %v43 = vld [vmem:[%s1] sm:$0xff]
  %v44 = vld [vmem:[%s1 + $0x8] sm:$0xff]
  %v45 = vld [vmem:[%s1 + $0x10] sm:$0xff]
  %v46 = vld [vmem:[%s1 + $0x18] sm:$0xff]
  %v47 = vld [vmem:[%s1 + $0x20] sm:$0xff]
  %v48 = vld [vmem:[%s1 + $0x28] sm:$0xff]
  %v49 = vld [vmem:[%s1 + $0x30] sm:$0xff]
  %v50 = vld [vmem:[%s1 + $0x38] sm:$0xff]
  %v51 = vld [vmem:[%s1 + $0x40] sm:$0xff]
  %v52 = vld [vmem:[%s1 + $0x48] sm:$0xff]
  %v53 = vld [vmem:[%s1 + $0x50] sm:$0xff]
  %v54 = vld [vmem:[%s1 + $0x58] sm:$0xff]
  %v55 = vld [vmem:[%s1 + $0x60] sm:$0xff]
  %v56 = vld [vmem:[%s1 + $0x68] sm:$0xff]
  %v57 = vld [vmem:[%s1 + $0x70] sm:$0xff]
  %v58 = vld [vmem:[%s1 + $0x78] sm:$0xff]
  %v59 = vld [vmem:[%s1 + $0x80] sm:$0xff]
  %v60 = vld [vmem:[%s1 + $0x88] sm:$0xff]
  %v61 = vld [vmem:[%s1 + $0x90] sm:$0xff]
  %v62 = vld [vmem:[%s1 + $0x98] sm:$0xff]
  %v63 = vld [vmem:[%s1 + $0xa0] sm:$0xff]
  %v64 = vld [vmem:[%s1 + $0xa8] sm:$0xff]
  %v65 = vld [vmem:[%s1 + $0xb0] sm:$0xff]
  %v66 = vld [vmem:[%s1 + $0xb8] sm:$0xff]
  %v67 = vld [vmem:[%s1 + $0xc0] sm:$0xff]
  %v68 = vld [vmem:[%s1 + $0xc8] sm:$0xff]
  %v69 = vld [vmem:[%s1 + $0xd0] sm:$0xff]
  %v70 = vld [vmem:[%s1 + $0xd8] sm:$0xff]
  %v71 = vld [vmem:[%s1 + $0xe0] sm:$0xff]
  %v72 = vld [vmem:[%s1 + $0xe8] sm:$0xff]
  %v73 = vld [vmem:[%s1 + $0xf0] sm:$0xff]
  %v74 = vld [vmem:[%s1 + $0xf8] sm:$0xff]
  %v75 = vld [vmem:[%s1 + $0x100] sm:$0xff]
  %v76 = vld [vmem:[%s1 + $0x108] sm:$0xff]
  %v77 = vld [vmem:[%s1 + $0x110] sm:$0xff]
  %v78 = vld [vmem:[%s1 + $0x118] sm:$0xff]
  %v79 = vld [vmem:[%s1 + $0x120] sm:$0xff]
  %v80 = vld [vmem:[%s1 + $0x128] sm:$0xff]
  %v81 = vld [vmem:[%s1 + $0x130] sm:$0xff]
  %v82 = vld [vmem:[%s1 + $0x138] sm:$0xff]
  %v83 = vld [vmem:[%s1 + $0x140] sm:$0xff]
  %v84 = vld [vmem:[%s1 + $0x148] sm:$0xff]
  %v85 = vld [vmem:[%s1 + $0x150] sm:$0xff]
  %v86 = vld [vmem:[%s1 + $0x158] sm:$0xff]
  %v87 = vld [vmem:[%s1 + $0x160] sm:$0xff]
  %v88 = vld [vmem:[%s1 + $0x168] sm:$0xff]
  %v89 = vld [vmem:[%s1 + $0x170] sm:$0xff]
  %v90 = vld [vmem:[%s1 + $0x178] sm:$0xff]
  %v91 = vld [vmem:[%s1 + $0x180] sm:$0xff]
  %v92 = vld [vmem:[%s1 + $0x188] sm:$0xff]
  %v93 = vld [vmem:[%s1 + $0x190] sm:$0xff]
  %v94 = vld [vmem:[%s1 + $0x198] sm:$0xff]
  %v95 = vld [vmem:[%s1 + $0x1a0] sm:$0xff]
  %v96 = vld [vmem:[%s1 + $0x1a8] sm:$0xff]
  %v97 = vld [vmem:[%s1 + $0x1b0] sm:$0xff]
  %v98 = vld [vmem:[%s1 + $0x1b8] sm:$0xff]
  %v99 = vld [vmem:[%s1 + $0x1c0] sm:$0xff]
  %v100 = vld [vmem:[%s1 + $0x1c8] sm:$0xff]
  %v101 = vld [vmem:[%s1 + $0x1d0] sm:$0xff]
  %v102 = vld [vmem:[%s1 + $0x1d8] sm:$0xff]
  %v103 = vld [vmem:[%s1 + $0x1e0] sm:$0xff]
  %v104 = vld [vmem:[%s1 + $0x1e8] sm:$0xff]
  %v105 = vld [vmem:[%s1 + $0x1f0] sm:$0xff]
  %v106 = vld [vmem:[%s1 + $0x1f8] sm:$0xff]
  %v111 = vunpack.c.l.b16 %v39
  %v112 = vunpack.c.h.b16 %v39
  %v113 = vunpack.c.l.b16 %v40
  %v114 = vunpack.c.h.b16 %v40
  %v115 = vunpack.c.l.b16 %v41
  %v116 = vunpack.c.h.b16 %v41
  %v117 = vunpack.c.l.b16 %v42
  %v118 = vunpack.c.h.b16 %v42
  %v119 = vpack.c.b16 %v115, %v111
  %v120 = vpack.c.b16 %v116, %v112
  %v121 = vpack.c.b16 %v117, %v113
  %v122 = vpack.c.b16 %v118, %v114
  %v191 = vunpack.c.l.b16 %v43
  %v192 = vunpack.c.h.b16 %v43
  %v193 = vunpack.c.l.b16 %v44
  %v194 = vunpack.c.h.b16 %v44
  %v195 = vunpack.c.l.b16 %v45
  %v196 = vunpack.c.h.b16 %v45
  %v197 = vunpack.c.l.b16 %v46
  %v198 = vunpack.c.h.b16 %v46
  %v199 = vunpack.c.l.b16 %v47
  %v200 = vunpack.c.h.b16 %v47
  %v201 = vunpack.c.l.b16 %v48
  %v202 = vunpack.c.h.b16 %v48
  %v203 = vunpack.c.l.b16 %v49
  %v204 = vunpack.c.h.b16 %v49
  %v205 = vunpack.c.l.b16 %v50
  %v206 = vunpack.c.h.b16 %v50
  %v207 = vunpack.c.l.b16 %v51
  %v208 = vunpack.c.h.b16 %v51
  %v209 = vunpack.c.l.b16 %v52
  %v210 = vunpack.c.h.b16 %v52
  %v211 = vunpack.c.l.b16 %v53
  %v212 = vunpack.c.h.b16 %v53
  %v213 = vunpack.c.l.b16 %v54
  %v214 = vunpack.c.h.b16 %v54
  %v215 = vunpack.c.l.b16 %v55
  %v216 = vunpack.c.h.b16 %v55
  %v217 = vunpack.c.l.b16 %v56
  %v218 = vunpack.c.h.b16 %v56
  %v219 = vunpack.c.l.b16 %v57
  %v220 = vunpack.c.h.b16 %v57
  %v221 = vunpack.c.l.b16 %v58
  %v222 = vunpack.c.h.b16 %v58
  %v223 = vunpack.c.l.b16 %v59
  %v224 = vunpack.c.h.b16 %v59
  %v225 = vunpack.c.l.b16 %v60
  %v226 = vunpack.c.h.b16 %v60
  %v227 = vunpack.c.l.b16 %v61
  %v228 = vunpack.c.h.b16 %v61
  %v229 = vunpack.c.l.b16 %v62
  %v230 = vunpack.c.h.b16 %v62
  %v231 = vunpack.c.l.b16 %v63
  %v232 = vunpack.c.h.b16 %v63
  %v233 = vunpack.c.l.b16 %v64
  %v234 = vunpack.c.h.b16 %v64
  %v235 = vunpack.c.l.b16 %v65
  %v236 = vunpack.c.h.b16 %v65
  %v237 = vunpack.c.l.b16 %v66
  %v238 = vunpack.c.h.b16 %v66
  %v239 = vunpack.c.l.b16 %v67
  %v240 = vunpack.c.h.b16 %v67
  %v241 = vunpack.c.l.b16 %v68
  %v242 = vunpack.c.h.b16 %v68
  %v243 = vunpack.c.l.b16 %v69
  %v244 = vunpack.c.h.b16 %v69
  %v245 = vunpack.c.l.b16 %v70
  %v246 = vunpack.c.h.b16 %v70
  %v247 = vunpack.c.l.b16 %v71
  %v248 = vunpack.c.h.b16 %v71
  %v249 = vunpack.c.l.b16 %v72
  %v250 = vunpack.c.h.b16 %v72
  %v251 = vunpack.c.l.b16 %v73
  %v252 = vunpack.c.h.b16 %v73
  %v253 = vunpack.c.l.b16 %v74
  %v254 = vunpack.c.h.b16 %v74
  %v255 = vunpack.c.l.b16 %v75
  %v256 = vunpack.c.h.b16 %v75
  %v257 = vunpack.c.l.b16 %v76
  %v258 = vunpack.c.h.b16 %v76
  %v259 = vunpack.c.l.b16 %v77
  %v260 = vunpack.c.h.b16 %v77
  %v261 = vunpack.c.l.b16 %v78
  %v262 = vunpack.c.h.b16 %v78
  %v263 = vunpack.c.l.b16 %v79
  %v264 = vunpack.c.h.b16 %v79
  %v265 = vunpack.c.l.b16 %v80
  %v266 = vunpack.c.h.b16 %v80
  %v267 = vunpack.c.l.b16 %v81
  %v268 = vunpack.c.h.b16 %v81
  %v269 = vunpack.c.l.b16 %v82
  %v270 = vunpack.c.h.b16 %v82
  %v271 = vunpack.c.l.b16 %v83
  %v272 = vunpack.c.h.b16 %v83
  %v273 = vunpack.c.l.b16 %v84
  %v274 = vunpack.c.h.b16 %v84
  %v275 = vunpack.c.l.b16 %v85
  %v276 = vunpack.c.h.b16 %v85
  %v277 = vunpack.c.l.b16 %v86
  %v278 = vunpack.c.h.b16 %v86
  %v279 = vunpack.c.l.b16 %v87
  %v280 = vunpack.c.h.b16 %v87
  %v281 = vunpack.c.l.b16 %v88
  %v282 = vunpack.c.h.b16 %v88
  %v283 = vunpack.c.l.b16 %v89
  %v284 = vunpack.c.h.b16 %v89
  %v285 = vunpack.c.l.b16 %v90
  %v286 = vunpack.c.h.b16 %v90
  %v287 = vunpack.c.l.b16 %v91
  %v288 = vunpack.c.h.b16 %v91
  %v289 = vunpack.c.l.b16 %v92
  %v290 = vunpack.c.h.b16 %v92
  %v291 = vunpack.c.l.b16 %v93
  %v292 = vunpack.c.h.b16 %v93
  %v293 = vunpack.c.l.b16 %v94
  %v294 = vunpack.c.h.b16 %v94
  %v295 = vunpack.c.l.b16 %v95
  %v296 = vunpack.c.h.b16 %v95
  %v297 = vunpack.c.l.b16 %v96
  %v298 = vunpack.c.h.b16 %v96
  %v299 = vunpack.c.l.b16 %v97
  %v300 = vunpack.c.h.b16 %v97
  %v301 = vunpack.c.l.b16 %v98
  %v302 = vunpack.c.h.b16 %v98
  %v303 = vunpack.c.l.b16 %v99
  %v304 = vunpack.c.h.b16 %v99
  %v305 = vunpack.c.l.b16 %v100
  %v306 = vunpack.c.h.b16 %v100
  %v307 = vunpack.c.l.b16 %v101
  %v308 = vunpack.c.h.b16 %v101
  %v309 = vunpack.c.l.b16 %v102
  %v310 = vunpack.c.h.b16 %v102
  %v311 = vunpack.c.l.b16 %v103
  %v312 = vunpack.c.h.b16 %v103
  %v313 = vunpack.c.l.b16 %v104
  %v314 = vunpack.c.h.b16 %v104
  %v315 = vunpack.c.l.b16 %v105
  %v316 = vunpack.c.h.b16 %v105
  %v317 = vunpack.c.l.b16 %v106
  %v318 = vunpack.c.h.b16 %v106
  %v319 = vpack.c.b16 %v193, %v191
  %v320 = vpack.c.b16 %v194, %v192
  %v321 = vpack.c.b16 %v197, %v195
  %v322 = vpack.c.b16 %v198, %v196
  %v323 = vpack.c.b16 %v201, %v199
  %v324 = vpack.c.b16 %v202, %v200
  %v325 = vpack.c.b16 %v205, %v203
  %v326 = vpack.c.b16 %v206, %v204
  %v327 = vpack.c.b16 %v209, %v207
  %v328 = vpack.c.b16 %v210, %v208
  %v329 = vpack.c.b16 %v213, %v211
  %v330 = vpack.c.b16 %v214, %v212
  %v331 = vpack.c.b16 %v217, %v215
  %v332 = vpack.c.b16 %v218, %v216
  %v333 = vpack.c.b16 %v221, %v219
  %v334 = vpack.c.b16 %v222, %v220
  %v335 = vpack.c.b16 %v225, %v223
  %v336 = vpack.c.b16 %v226, %v224
  %v337 = vpack.c.b16 %v229, %v227
  %v338 = vpack.c.b16 %v230, %v228
  %v339 = vpack.c.b16 %v233, %v231
  %v340 = vpack.c.b16 %v234, %v232
  %v341 = vpack.c.b16 %v237, %v235
  %v342 = vpack.c.b16 %v238, %v236
  %v343 = vpack.c.b16 %v241, %v239
  %v344 = vpack.c.b16 %v242, %v240
  %v345 = vpack.c.b16 %v245, %v243
  %v346 = vpack.c.b16 %v246, %v244
  %v347 = vpack.c.b16 %v249, %v247
  %v348 = vpack.c.b16 %v250, %v248
  %v349 = vpack.c.b16 %v253, %v251
  %v350 = vpack.c.b16 %v254, %v252
  %v351 = vpack.c.b16 %v257, %v255
  %v352 = vpack.c.b16 %v258, %v256
  %v353 = vpack.c.b16 %v261, %v259
  %v354 = vpack.c.b16 %v262, %v260
  %v355 = vpack.c.b16 %v265, %v263
  %v356 = vpack.c.b16 %v266, %v264
  %v357 = vpack.c.b16 %v269, %v267
  %v358 = vpack.c.b16 %v270, %v268
  %v359 = vpack.c.b16 %v273, %v271
  %v360 = vpack.c.b16 %v274, %v272
  %v361 = vpack.c.b16 %v277, %v275
  %v362 = vpack.c.b16 %v278, %v276
  %v363 = vpack.c.b16 %v281, %v279
  %v364 = vpack.c.b16 %v282, %v280
  %v365 = vpack.c.b16 %v285, %v283
  %v366 = vpack.c.b16 %v286, %v284
  %v367 = vpack.c.b16 %v289, %v287
  %v368 = vpack.c.b16 %v290, %v288
  %v369 = vpack.c.b16 %v293, %v291
  %v370 = vpack.c.b16 %v294, %v292
  %v371 = vpack.c.b16 %v297, %v295
  %v372 = vpack.c.b16 %v298, %v296
  %v373 = vpack.c.b16 %v301, %v299
  %v374 = vpack.c.b16 %v302, %v300
  %v375 = vpack.c.b16 %v305, %v303
  %v376 = vpack.c.b16 %v306, %v304
  %v377 = vpack.c.b16 %v309, %v307
  %v378 = vpack.c.b16 %v310, %v308
  %v379 = vpack.c.b16 %v313, %v311
  %v380 = vpack.c.b16 %v314, %v312
  %v381 = vpack.c.b16 %v317, %v315
  %v382 = vpack.c.b16 %v318, %v316
  %447 = vmatprep.subr.bf16.mxu0 %v320
  %448 = vmatpush1.bf16.msra.mxu0 %v319
  %449 = vmatprep.subr.bf16.mxu0 %v322
  %450 = vmatpush1.bf16.msra.mxu0 %v321
  %451 = vmatprep.subr.bf16.mxu0 %v324
  %452 = vmatpush1.bf16.msra.mxu0 %v323
  %453 = vmatprep.subr.bf16.mxu0 %v326
  %454 = vmatpush1.bf16.msra.mxu0 %v325
  %455 = vmatprep.subr.bf16.mxu0 %v328
  %456 = vmatpush1.bf16.msra.mxu0 %v327
  %457 = vmatprep.subr.bf16.mxu0 %v330
  %458 = vmatpush1.bf16.msra.mxu0 %v329
  %459 = vmatprep.subr.bf16.mxu0 %v332
  %460 = vmatpush1.bf16.msra.mxu0 %v331
  %461 = vmatprep.subr.bf16.mxu0 %v334
  %462 = vmatpush1.bf16.msra.mxu0 %v333
  %463 = vmatprep.subr.bf16.mxu0 %v336
  %464 = vmatpush1.bf16.msra.mxu0 %v335
  %465 = vmatprep.subr.bf16.mxu0 %v338
  %466 = vmatpush1.bf16.msra.mxu0 %v337
  %467 = vmatprep.subr.bf16.mxu0 %v340
  %468 = vmatpush1.bf16.msra.mxu0 %v339
  %469 = vmatprep.subr.bf16.mxu0 %v342
  %470 = vmatpush1.bf16.msra.mxu0 %v341
  %471 = vmatprep.subr.bf16.mxu0 %v344
  %472 = vmatpush1.bf16.msra.mxu0 %v343
  %473 = vmatprep.subr.bf16.mxu0 %v346
  %474 = vmatpush1.bf16.msra.mxu0 %v345
  %475 = vmatprep.subr.bf16.mxu0 %v348
  %476 = vmatpush1.bf16.msra.mxu0 %v347
  %477 = vmatprep.subr.bf16.mxu0 %v350
  %478 = vmatpush1.bf16.msra.mxu0 %v349
  %479 = vmatprep.mubr.bf16.mxu0 %v120
  %480 = vmatmul.mubr.bf16.gmra.mrb[0].mxu0 %v119
  %v481 = vpop.f32.mrb[0].mxu0
  %v482 = vadd.f32 0.0, %v481
  %v483 = vpop.f32.mrb[0].mxu0
  %v484 = vadd.f32 0.0, %v483
  %v485 = vpop.f32.mrb[0].mxu0
  %v486 = vadd.f32 0.0, %v485
  %v487 = vpop.f32.mrb[0].mxu0
  %v488 = vadd.f32 0.0, %v487
  %489 = vdwg.mxu0
  %490 = vmatprep.subr.bf16.mxu0 %v352
  %491 = vmatpush1.bf16.msra.mxu0 %v351
  %492 = vmatprep.subr.bf16.mxu0 %v354
  %493 = vmatpush1.bf16.msra.mxu0 %v353
  %494 = vmatprep.subr.bf16.mxu0 %v356
  %495 = vmatpush1.bf16.msra.mxu0 %v355
  %496 = vmatprep.subr.bf16.mxu0 %v358
  %497 = vmatpush1.bf16.msra.mxu0 %v357
  %498 = vmatprep.subr.bf16.mxu0 %v360
  %499 = vmatpush1.bf16.msra.mxu0 %v359
  %500 = vmatprep.subr.bf16.mxu0 %v362
  %501 = vmatpush1.bf16.msra.mxu0 %v361
  %502 = vmatprep.subr.bf16.mxu0 %v364
  %503 = vmatpush1.bf16.msra.mxu0 %v363
  %504 = vmatprep.subr.bf16.mxu0 %v366
  %505 = vmatpush1.bf16.msra.mxu0 %v365
  %506 = vmatprep.subr.bf16.mxu0 %v368
  %507 = vmatpush1.bf16.msra.mxu0 %v367
  %508 = vmatprep.subr.bf16.mxu0 %v370
  %509 = vmatpush1.bf16.msra.mxu0 %v369
  %510 = vmatprep.subr.bf16.mxu0 %v372
  %511 = vmatpush1.bf16.msra.mxu0 %v371
  %512 = vmatprep.subr.bf16.mxu0 %v374
  %513 = vmatpush1.bf16.msra.mxu0 %v373
  %514 = vmatprep.subr.bf16.mxu0 %v376
  %515 = vmatpush1.bf16.msra.mxu0 %v375
  %516 = vmatprep.subr.bf16.mxu0 %v378
  %517 = vmatpush1.bf16.msra.mxu0 %v377
  %518 = vmatprep.subr.bf16.mxu0 %v380
  %519 = vmatpush1.bf16.msra.mxu0 %v379
  %520 = vmatprep.subr.bf16.mxu0 %v382
  %521 = vmatpush1.bf16.msra.mxu0 %v381
  %522 = vmatprep.mubr.bf16.mxu0 %v122
  %523 = vmatmul.mubr.bf16.gmra.mrb[0].mxu0 %v121
  %v524 = vpop.f32.mrb[0].mxu0
  %v525 = vadd.f32 %v482, %v524
  %v526 = vpop.f32.mrb[0].mxu0
  %v527 = vadd.f32 %v484, %v526
  %v528 = vpop.f32.mrb[0].mxu0
  %v529 = vadd.f32 %v486, %v528
  %v530 = vpop.f32.mrb[0].mxu0
  %v531 = vadd.f32 %v488, %v530
  %532 = vdwg.mxu0
  %v533 = vadd.f32 %v35, %v525
  %v534 = vadd.f32 %v36, %v527
  %v535 = vadd.f32 %v37, %v529
  %v536 = vadd.f32 %v38, %v531
  %537 = vst [vmem:[#allocation2] sm:$0xff] %v533
  %538 = vst [vmem:[#allocation2 + $0x8] sm:$0xff] %v534
  %539 = vst [vmem:[#allocation2 + $0x10] sm:$0xff] %v535
  %540 = vst [vmem:[#allocation2 + $0x18] sm:$0xff] %v536
  // Predicated region
  $region30: #{vae_forward.11} parent=0 // pred_check
    %p541 = pneg %p27
  $region31: #{vae_forward.11} parent=0 // pred_check_branch
    %543 = sbr.rel (%p541) target = $region33
  $region32: #{vae_forward.11} parent=0 // pred_region
    %v544 = vld [vmem:[#allocation2] sm:$0xff]
    %v545 = vld [vmem:[#allocation2 + $0x8] sm:$0xff]
    %v546 = vld [vmem:[#allocation2 + $0x10] sm:$0xff]
    %v547 = vld [vmem:[#allocation2 + $0x18] sm:$0xff]
    %v548 = vld [vmem:[%s2] sm:$0x3]
    %v550 = vlaneseq
    %v551 = vshrl.u32 %v550, 7
    %v552 = vsub.s32 0, %v551
    %v553 = vrot.slane %v548, %v552
    %v554 = vlaneseq
    %v555 = vshrl.u32 %v554, 7
    %v556 = vsub.s32 1, %v555
    %v557 = vrot.slane %v548, %v556
    %v560 = vadd.f32 %v544, %v553
    %v561 = vadd.f32 %v545, %v557
    %v562 = vadd.f32 %v546, %v553
    %v563 = vadd.f32 %v547, %v557
    %564 = vst [vmem:[%s6] sm:$0xff] %v560
    %565 = vst [vmem:[%s6 + $0x8] sm:$0xff] %v562
    %566 = vst [vmem:[%s7] sm:$0xff] %v561
    %567 = vst [vmem:[%s7 + $0x8] sm:$0xff] %v563
    %v568 = vld [vmem:[%s3] sm:$0xff]
    %v569 = vld [vmem:[%s3 + $0x8] sm:$0xff]
    %v570 = vmul.f32 %v561, 0.5
    %v571 = vmul.f32 %v563, 0.5
    %v572 = vmul.f32 %v570, 1.442695
    %v573 = vpow.pop %v572
    %v574 = vmul.f32 %v571, 1.442695
    %v575 = vpow.pop %v574
    %v576 = vmul.f32 %v568, %v573
    %v577 = vmul.f32 %v569, %v575
    %v578 = vadd.f32 %v576, %v560
    %v579 = vadd.f32 %v577, %v562
    %v580 = vpack.c.bf16 %v579, %v578
    %v581 = vld [vmem:[%s4] sm:$0xff]
    %v582 = vld [vmem:[%s4 + $0x8] sm:$0xff]
    %v583 = vld [vmem:[%s4 + $0x10] sm:$0xff]
    %v584 = vld [vmem:[%s4 + $0x18] sm:$0xff]
    %v585 = vld [vmem:[%s4 + $0x20] sm:$0xff]
    %v586 = vld [vmem:[%s4 + $0x28] sm:$0xff]
    %v587 = vld [vmem:[%s4 + $0x30] sm:$0xff]
    %v588 = vld [vmem:[%s4 + $0x38] sm:$0xff]
    %v589 = vld [vmem:[%s4 + $0x40] sm:$0xff]
    %v590 = vld [vmem:[%s4 + $0x48] sm:$0xff]
    %v591 = vld [vmem:[%s4 + $0x50] sm:$0xff]
    %v592 = vld [vmem:[%s4 + $0x58] sm:$0xff]
    %v593 = vld [vmem:[%s4 + $0x60] sm:$0xff]
    %v594 = vld [vmem:[%s4 + $0x68] sm:$0xff]
    %v595 = vld [vmem:[%s4 + $0x70] sm:$0xff]
    %v596 = vld [vmem:[%s4 + $0x78] sm:$0xff]
    %v597 = vld [vmem:[%s4 + $0x80] sm:$0xff]
    %v598 = vld [vmem:[%s4 + $0x88] sm:$0xff]
    %v599 = vld [vmem:[%s4 + $0x90] sm:$0xff]
    %v600 = vld [vmem:[%s4 + $0x98] sm:$0xff]
    %v601 = vld [vmem:[%s4 + $0xa0] sm:$0xff]
    %v602 = vld [vmem:[%s4 + $0xa8] sm:$0xff]
    %v603 = vld [vmem:[%s4 + $0xb0] sm:$0xff]
    %v604 = vld [vmem:[%s4 + $0xb8] sm:$0xff]
    %v605 = vld [vmem:[%s4 + $0xc0] sm:$0xff]
    %v606 = vld [vmem:[%s4 + $0xc8] sm:$0xff]
    %v607 = vld [vmem:[%s4 + $0xd0] sm:$0xff]
    %v608 = vld [vmem:[%s4 + $0xd8] sm:$0xff]
    %v609 = vld [vmem:[%s4 + $0xe0] sm:$0xff]
    %v610 = vld [vmem:[%s4 + $0xe8] sm:$0xff]
    %v611 = vld [vmem:[%s4 + $0xf0] sm:$0xff]
    %v612 = vld [vmem:[%s4 + $0xf8] sm:$0xff]
    %v613 = vld [vmem:[%s5] sm:$0xf]
    %v615 = vlaneseq
    %v616 = vshrl.u32 %v615, 7
    %v617 = vsub.s32 0, %v616
    %v618 = vrot.slane %v613, %v617
    %v619 = vlaneseq
    %v620 = vshrl.u32 %v619, 7
    %v621 = vsub.s32 1, %v620
    %v622 = vrot.slane %v613, %v621
    %v623 = vlaneseq
    %v624 = vshrl.u32 %v623, 7
    %v625 = vsub.s32 2, %v624
    %v626 = vrot.slane %v613, %v625
    %v627 = vlaneseq
    %v628 = vshrl.u32 %v627, 7
    %v629 = vsub.s32 3, %v628
    %v630 = vrot.slane %v613, %v629
    %v667 = vunpack.c.l.b16 %v581
    %v668 = vunpack.c.h.b16 %v581
    %v669 = vunpack.c.l.b16 %v582
    %v670 = vunpack.c.h.b16 %v582
    %v671 = vunpack.c.l.b16 %v583
    %v672 = vunpack.c.h.b16 %v583
    %v673 = vunpack.c.l.b16 %v584
    %v674 = vunpack.c.h.b16 %v584
    %v675 = vunpack.c.l.b16 %v585
    %v676 = vunpack.c.h.b16 %v585
    %v677 = vunpack.c.l.b16 %v586
    %v678 = vunpack.c.h.b16 %v586
    %v679 = vunpack.c.l.b16 %v587
    %v680 = vunpack.c.h.b16 %v587
    %v681 = vunpack.c.l.b16 %v588
    %v682 = vunpack.c.h.b16 %v588
    %v683 = vunpack.c.l.b16 %v589
    %v684 = vunpack.c.h.b16 %v589
    %v685 = vunpack.c.l.b16 %v590
    %v686 = vunpack.c.h.b16 %v590
    %v687 = vunpack.c.l.b16 %v591
    %v688 = vunpack.c.h.b16 %v591
    %v689 = vunpack.c.l.b16 %v592
    %v690 = vunpack.c.h.b16 %v592
    %v691 = vunpack.c.l.b16 %v593
    %v692 = vunpack.c.h.b16 %v593
    %v693 = vunpack.c.l.b16 %v594
    %v694 = vunpack.c.h.b16 %v594
    %v695 = vunpack.c.l.b16 %v595
    %v696 = vunpack.c.h.b16 %v595
    %v697 = vunpack.c.l.b16 %v596
    %v698 = vunpack.c.h.b16 %v596
    %v699 = vunpack.c.l.b16 %v597
    %v700 = vunpack.c.h.b16 %v597
    %v701 = vunpack.c.l.b16 %v598
    %v702 = vunpack.c.h.b16 %v598
    %v703 = vunpack.c.l.b16 %v599
    %v704 = vunpack.c.h.b16 %v599
    %v705 = vunpack.c.l.b16 %v600
    %v706 = vunpack.c.h.b16 %v600
    %v707 = vunpack.c.l.b16 %v601
    %v708 = vunpack.c.h.b16 %v601
    %v709 = vunpack.c.l.b16 %v602
    %v710 = vunpack.c.h.b16 %v602
    %v711 = vunpack.c.l.b16 %v603
    %v712 = vunpack.c.h.b16 %v603
    %v713 = vunpack.c.l.b16 %v604
    %v714 = vunpack.c.h.b16 %v604
    %v715 = vunpack.c.l.b16 %v605
    %v716 = vunpack.c.h.b16 %v605
    %v717 = vunpack.c.l.b16 %v606
    %v718 = vunpack.c.h.b16 %v606
    %v719 = vunpack.c.l.b16 %v607
    %v720 = vunpack.c.h.b16 %v607
    %v721 = vunpack.c.l.b16 %v608
    %v722 = vunpack.c.h.b16 %v608
    %v723 = vunpack.c.l.b16 %v609
    %v724 = vunpack.c.h.b16 %v609
    %v725 = vunpack.c.l.b16 %v610
    %v726 = vunpack.c.h.b16 %v610
    %v727 = vunpack.c.l.b16 %v611
    %v728 = vunpack.c.h.b16 %v611
    %v729 = vunpack.c.l.b16 %v612
    %v730 = vunpack.c.h.b16 %v612
    %v731 = vpack.c.b16 %v671, %v667
    %v732 = vpack.c.b16 %v672, %v668
    %v733 = vpack.c.b16 %v673, %v669
    %v734 = vpack.c.b16 %v674, %v670
    %v735 = vpack.c.b16 %v679, %v675
    %v736 = vpack.c.b16 %v680, %v676
    %v737 = vpack.c.b16 %v681, %v677
    %v738 = vpack.c.b16 %v682, %v678
    %v739 = vpack.c.b16 %v687, %v683
    %v740 = vpack.c.b16 %v688, %v684
    %v741 = vpack.c.b16 %v689, %v685
    %v742 = vpack.c.b16 %v690, %v686
    %v743 = vpack.c.b16 %v695, %v691
    %v744 = vpack.c.b16 %v696, %v692
    %v745 = vpack.c.b16 %v697, %v693
    %v746 = vpack.c.b16 %v698, %v694
    %v747 = vpack.c.b16 %v703, %v699
    %v748 = vpack.c.b16 %v704, %v700
    %v749 = vpack.c.b16 %v705, %v701
    %v750 = vpack.c.b16 %v706, %v702
    %v751 = vpack.c.b16 %v711, %v707
    %v752 = vpack.c.b16 %v712, %v708
    %v753 = vpack.c.b16 %v713, %v709
    %v754 = vpack.c.b16 %v714, %v710
    %v755 = vpack.c.b16 %v719, %v715
    %v756 = vpack.c.b16 %v720, %v716
    %v757 = vpack.c.b16 %v721, %v717
    %v758 = vpack.c.b16 %v722, %v718
    %v759 = vpack.c.b16 %v727, %v723
    %v760 = vpack.c.b16 %v728, %v724
    %v761 = vpack.c.b16 %v729, %v725
    %v762 = vpack.c.b16 %v730, %v726
    %795 = vmatprep.subr.bf16.mxu0 %v732
    %796 = vmatpush1.bf16.msra.mxu0 %v731
    %797 = vmatprep.subr.bf16.mxu0 %v736
    %798 = vmatpush1.bf16.msra.mxu0 %v735
    %799 = vmatprep.subr.bf16.mxu0 %v740
    %800 = vmatpush1.bf16.msra.mxu0 %v739
    %801 = vmatprep.subr.bf16.mxu0 %v744
    %802 = vmatpush1.bf16.msra.mxu0 %v743
    %803 = vmatprep.subr.bf16.mxu0 %v748
    %804 = vmatpush1.bf16.msra.mxu0 %v747
    %805 = vmatprep.subr.bf16.mxu0 %v752
    %806 = vmatpush1.bf16.msra.mxu0 %v751
    %807 = vmatprep.subr.bf16.mxu0 %v756
    %808 = vmatpush1.bf16.msra.mxu0 %v755
    %809 = vmatprep.subr.bf16.mxu0 %v760
    %810 = vmatpush1.bf16.msra.mxu0 %v759
    %811 = vmatprep.subr.bf16.mxu0 0
    %812 = vmatpush1.bf16.msra.mxu0 0
    %813 = vmatprep.subr.bf16.mxu0 0
    %814 = vmatpush1.bf16.msra.mxu0 0
    %815 = vmatprep.subr.bf16.mxu0 0
    %816 = vmatpush1.bf16.msra.mxu0 0
    %817 = vmatprep.subr.bf16.mxu0 0
    %818 = vmatpush1.bf16.msra.mxu0 0
    %819 = vmatprep.subr.bf16.mxu0 0
    %820 = vmatpush1.bf16.msra.mxu0 0
    %821 = vmatprep.subr.bf16.mxu0 0
    %822 = vmatpush1.bf16.msra.mxu0 0
    %823 = vmatprep.subr.bf16.mxu0 0
    %824 = vmatpush1.bf16.msra.mxu0 0
    %825 = vmatprep.subr.bf16.mxu0 0
    %826 = vmatpush1.bf16.msra.mxu0 0
    %827 = vmatprep.mubr.bf16.mxu0 0
    %828 = vmatmul.mubr.bf16.gmra.mrb[0].mxu0 %v580
    %v829 = vpop.f32.mrb[0].mxu0
    %v830 = vadd.f32 %v618, %v829
    %v831 = vpop.f32.mrb[0].mxu0
    %v832 = vadd.f32 %v622, %v831
    %v833 = vpop.f32.mrb[0].mxu0
    %v834 = vadd.f32 %v618, %v833
    %v835 = vpop.f32.mrb[0].mxu0
    %v836 = vadd.f32 %v622, %v835
    %837 = vdwg.mxu0
    %838 = vmatprep.subr.bf16.mxu0 %v734
    %839 = vmatpush1.bf16.msra.mxu0 %v733
    %840 = vmatprep.subr.bf16.mxu0 %v738
    %841 = vmatpush1.bf16.msra.mxu0 %v737
    %842 = vmatprep.subr.bf16.mxu0 %v742
    %843 = vmatpush1.bf16.msra.mxu0 %v741
    %844 = vmatprep.subr.bf16.mxu0 %v746
    %845 = vmatpush1.bf16.msra.mxu0 %v745
    %846 = vmatprep.subr.bf16.mxu0 %v750
    %847 = vmatpush1.bf16.msra.mxu0 %v749
    %848 = vmatprep.subr.bf16.mxu0 %v754
    %849 = vmatpush1.bf16.msra.mxu0 %v753
    %850 = vmatprep.subr.bf16.mxu0 %v758
    %851 = vmatpush1.bf16.msra.mxu0 %v757
    %852 = vmatprep.subr.bf16.mxu0 %v762
    %853 = vmatpush1.bf16.msra.mxu0 %v761
    %854 = vmatprep.subr.bf16.mxu0 0
    %855 = vmatpush1.bf16.msra.mxu0 0
    %856 = vmatprep.subr.bf16.mxu0 0
    %857 = vmatpush1.bf16.msra.mxu0 0
    %858 = vmatprep.subr.bf16.mxu0 0
    %859 = vmatpush1.bf16.msra.mxu0 0
    %860 = vmatprep.subr.bf16.mxu0 0
    %861 = vmatpush1.bf16.msra.mxu0 0
    %862 = vmatprep.subr.bf16.mxu0 0
    %863 = vmatpush1.bf16.msra.mxu0 0
    %864 = vmatprep.subr.bf16.mxu0 0
    %865 = vmatpush1.bf16.msra.mxu0 0
    %866 = vmatprep.subr.bf16.mxu0 0
    %867 = vmatpush1.bf16.msra.mxu0 0
    %868 = vmatprep.subr.bf16.mxu0 0
    %869 = vmatpush1.bf16.msra.mxu0 0
    %870 = vmatprep.mubr.bf16.mxu0 0
    %871 = vmatmul.mubr.bf16.gmra.mrb[0].mxu0 %v580
    %v872 = vpop.f32.mrb[0].mxu0
    %v873 = vadd.f32 %v626, %v872
    %v874 = vpop.f32.mrb[0].mxu0
    %v875 = vadd.f32 %v630, %v874
    %v876 = vpop.f32.mrb[0].mxu0
    %v877 = vadd.f32 %v626, %v876
    %v878 = vpop.f32.mrb[0].mxu0
    %v879 = vadd.f32 %v630, %v878
    %880 = vdwg.mxu0
    %881 = vst [vmem:[%s8] sm:$0xff] %v830
    %882 = vst [vmem:[%s8 + $0x8] sm:$0xff] %v832
    %883 = vst [vmem:[%s8 + $0x10] sm:$0xff] %v873
    %884 = vst [vmem:[%s8 + $0x18] sm:$0xff] %v875
    %885 = vst [vmem:[%s8 + $0x20] sm:$0xff] %v834
    %886 = vst [vmem:[%s8 + $0x28] sm:$0xff] %v836
    %887 = vst [vmem:[%s8 + $0x30] sm:$0xff] %v877
    %888 = vst [vmem:[%s8 + $0x38] sm:$0xff] %v879
  $region33: #{vae_forward.11} parent=0 // pred_fallthru
    _
  // Predicated region
  $region34: #{vae_forward.11} parent=0 // pred_check
    _
  $region35: #{vae_forward.11} parent=0 // pred_check_branch
    %890 = sbr.rel (0) target = $region37
  $region36: #{vae_forward.11} parent=0 // pred_region
    _
  $region37: #{vae_forward.11} parent=0 // pred_fallthru
    _
  // Predicated region
  $region38: #{vae_forward.11} parent=0 // pred_check
    _
  $region39: #{vae_forward.11} parent=0 // pred_check_branch
    %892 = sbr.rel (0) target = $region41
  $region40: #{vae_forward.11} parent=0 // pred_region
    _
  $region41: #{vae_forward.11} parent=0 // pred_fallthru
    _
  // Predicated region
  $region42: #{vae_forward.11} parent=0 // pred_check
    _
  $region43: #{vae_forward.11} parent=0 // pred_check_branch
    %894 = sbr.rel (0) target = $region45
  $region44: #{vae_forward.11} parent=0 // pred_region
    _
  $region45: #{vae_forward.11} parent=0 // pred_fallthru
    _
  // Predicated region
  $region46: #{vae_forward.11} parent=0 // pred_check
    _
  $region47: #{vae_forward.11} parent=0 // pred_check_branch
    %896 = sbr.rel (0) target = $region49
  $region48: #{vae_forward.11} parent=0 // pred_region
    _
  $region49: #{vae_forward.11} parent=0 // pred_fallthru
    _
  // Predicated region
  $region50: #{vae_forward.11} parent=0 // pred_check
    _
  $region51: #{vae_forward.11} parent=0 // pred_check_branch
    %898 = sbr.rel (0) target = $region53
  $region52: #{vae_forward.11} parent=0 // pred_region
    _
  $region53: #{vae_forward.11} parent=0 // pred_fallthru
    _
  // Predicated region
  $region54: #{vae_forward.11} parent=0 // pred_check
    _
  $region55: #{vae_forward.11} parent=0 // pred_check_branch
    %900 = sbr.rel (0) target = $region57
  $region56: #{vae_forward.11} parent=0 // pred_region
    _
  $region57: #{vae_forward.11} parent=0 // pred_fallthru
    _

// kernel: vae_forward.12
$region0: #{vae_forward.12}
  #allocation0 [shape = 'u32[]', space=smem, size = 0x4, offset = 0x4, fixed_abs, tag = 'smem constant byte address 0x4 - core index']
  #allocation1 [shape = 'u32[144,128]{1,0:T(1,128)}', space=vmem, size = 0x12000, scoped, tag = 'internal scratch']
  #allocation2 [shape = 'f32[16,128]{1,0:T(8,128)}', space=vmem, size = 0x2000, scoped, tag = 'scratch operand']
  %s0 = inlined_call_operand.vmem [shape: bf16[16,1024], index: 0, kind: input, shape index: {}]
  %s1 = inlined_call_operand.vmem [shape: bf16[1024,128], index: 1, kind: input, shape index: {}]
  %s2 = inlined_call_operand.vmem [shape: f32[1,128], index: 2, kind: input, shape index: {}]
  %s3 = inlined_call_operand.vmem [shape: f32[1,128], index: 3, kind: input, shape index: {}]
  %s4 = inlined_call_operand.vmem [shape: f32[1,128], index: 4, kind: input, shape index: {}]
  %s5 = inlined_call_operand.vmem [shape: f32[16,128], index: 5, kind: output, shape index: {}]
  %s6 = sld [smem:[#allocation0]]
  $region84: #{vae_forward.12} parent=0
    _
  %s8 = ssub.s32 1, %s6
  %s9 = scalar_select 0, %s8, %s6
  $region1: #{vae_forward.12} parent=0
    #allocation3 [shape = 'u8[32768]{0}', space=vmem, size = 0x8000, scoped, tag = 'input window, operand 0']
    loop: start=0, step=1, limit=4
    $region2: #{vae_forward.12} parent=1 // loop_pre_header
      _
    $region3: #{vae_forward.12} parent=1 // loop_header
      %s11 = sphi 0, %s15
      %p12 = scmp.ge.s32.totalorder %s11, 4
      %s18 = sphi 0, %s37
      %s19 = sphi 0, %s33
      %s20 = sphi 0, %s29
      %s21 = sphi 0, %s18
      %s22 = sphi 0, %s19
      %s23 = sphi 0, %s20
      %s24 = sphi 0, %s21
      %s25 = sphi 0, %s22
      %s26 = sphi 0, %s23
      %s42 = sphi 0, %s44
      %s45 = sphi 0, %s42
      %s46 = sphi 0, %s45
      %s62 = sphi 0, %s46
      %s70 = sphi 0, %s72
      %s73 = sphi 0, %s70
      %s74 = sphi 0, %s73
      %s90 = sphi 0, %s74
      %s96 = sphi 0, %s98
      %s99 = sphi 0, %s96
      %s100 = sphi 0, %s99
      %s116 = sphi 0, %s100
      %s122 = sphi 0, %s124
      %s125 = sphi 0, %s122
      %s126 = sphi 0, %s125
      %s142 = sphi 0, %s126
      %s148 = sphi 0, %s150
      %s151 = sphi 0, %s148
      %s152 = sphi 0, %s151
      %s168 = sphi 0, %s152
      %s176 = sphi 0, %s178
      %s179 = sphi 0, %s176
      %s180 = sphi 0, %s179
      %s196 = sphi 0, %s180
    $region4: #{vae_forward.12} parent=1 // loop_header_branch
      %14 = sbr.rel (%p12) target = $region8
    $region5: #{vae_forward.12} parent=1 // loop_body
      %s16 = ssub.s32 %s11, 1
      %s17 = ssub.s32 %s11, 2
      %s27 = sadd.s32 1, %s20
      %p28 = scmp.ge.s32.totalorder %s27, 2
      %s29 = scalar_select %p28, 0, %s27
      %s30 = sadd.s32 1, %s19
      %s31 = scalar_select %p28, %s30, %s19
      %p32 = scmp.ge.s32.totalorder %s31, 1
      %s33 = scalar_select %p32, 0, %s31
      %s34 = sadd.s32 1, %s18
      %s35 = scalar_select %p32, %s34, %s18
      %p36 = scmp.ge.s32.totalorder %s35, 1
      %s37 = scalar_select %p36, 0, %s35
      %s38 = ssub.s32 %s18, %s37
      %s39 = ssub.s32 %s20, %s29
      %s40 = sor.u32 %s38, %s39
      %p41 = scmp.eq.s32.totalorder %s40, 0
      %s43 = sadd.s32 %s42, 1
      %s44 = scalar_select %p41, %s42, %s43
      %p47 = pneg %p41
      %p48 = scmp.eq.s32.totalorder %s11, 1
      %p49 = por %p47, %p48
      %p50 = scmp.ne.s32.totalorder %s42, %s45
      %p51 = scmp.eq.s32.totalorder %s11, 0
      %p52 = por %p50, %p51
      %p53 = scmp.ne.s32.totalorder %s42, %s45
      %p54 = scmp.eq.s32.totalorder %s16, 1
      %p55 = por %p53, %p54
      %p56 = scmp.ne.s32.totalorder %s45, %s46
      %p57 = scmp.eq.s32.totalorder %s16, 0
      %p58 = por %p56, %p57
      %p59 = scmp.ne.s32.totalorder %s45, %s46
      %p60 = scmp.eq.s32.totalorder %s17, 1
      %p61 = por %p59, %p60
      %p63 = scmp.ne.s32.totalorder %s46, %s62
      %p64 = scmp.eq.s32.totalorder %s17, 0
      %p65 = por %p63, %p64
      %s66 = ssub.s32 %s20, %s29
      %s67 = ssub.s32 %s19, %s33
      %s68 = sor.u32 %s66, %s67
      %p69 = scmp.eq.s32.totalorder %s68, 0
      %s71 = sadd.s32 %s70, 1
      %s72 = scalar_select %p69, %s70, %s71
      %p75 = pneg %p69
      %p76 = scmp.eq.s32.totalorder %s11, 1
      %p77 = por %p75, %p76
      %p78 = scmp.ne.s32.totalorder %s70, %s73
      %p79 = scmp.eq.s32.totalorder %s11, 0
      %p80 = por %p78, %p79
      %p81 = scmp.ne.s32.totalorder %s70, %s73
      %p82 = scmp.eq.s32.totalorder %s16, 1
      %p83 = por %p81, %p82
      %p84 = scmp.ne.s32.totalorder %s73, %s74
      %p85 = scmp.eq.s32.totalorder %s16, 0
      %p86 = por %p84, %p85
      %p87 = scmp.ne.s32.totalorder %s73, %s74
      %p88 = scmp.eq.s32.totalorder %s17, 1
      %p89 = por %p87, %p88
      %p91 = scmp.ne.s32.totalorder %s74, %s90
      %p92 = scmp.eq.s32.totalorder %s17, 0
      %p93 = por %p91, %p92
      %s94 = ssub.s32 %s19, %s33
      %p95 = scmp.eq.s32.totalorder %s94, 0
      %s97 = sadd.s32 %s96, 1
      %s98 = scalar_select %p95, %s96, %s97
      %p101 = pneg %p95
      %p102 = scmp.eq.s32.totalorder %s11, 1
      %p103 = por %p101, %p102
      %p104 = scmp.ne.s32.totalorder %s96, %s99
      %p105 = scmp.eq.s32.totalorder %s11, 0
      %p106 = por %p104, %p105
      %p107 = scmp.ne.s32.totalorder %s96, %s99
      %p108 = scmp.eq.s32.totalorder %s16, 1
      %p109 = por %p107, %p108
      %p110 = scmp.ne.s32.totalorder %s99, %s100
      %p111 = scmp.eq.s32.totalorder %s16, 0
      %p112 = por %p110, %p111
      %p113 = scmp.ne.s32.totalorder %s99, %s100
      %p114 = scmp.eq.s32.totalorder %s17, 1
      %p115 = por %p113, %p114
      %p117 = scmp.ne.s32.totalorder %s100, %s116
      %p118 = scmp.eq.s32.totalorder %s17, 0
      %p119 = por %p117, %p118
      %s120 = ssub.s32 %s19, %s33
      %p121 = scmp.eq.s32.totalorder %s120, 0
      %s123 = sadd.s32 %s122, 1
      %s124 = scalar_select %p121, %s122, %s123
      %p127 = pneg %p121
      %p128 = scmp.eq.s32.totalorder %s11, 1
      %p129 = por %p127, %p128
      %p130 = scmp.ne.s32.totalorder %s122, %s125
      %p131 = scmp.eq.s32.totalorder %s11, 0
      %p132 = por %p130, %p131
      %p133 = scmp.ne.s32.totalorder %s122, %s125
      %p134 = scmp.eq.s32.totalorder %s16, 1
      %p135 = por %p133, %p134
      %p136 = scmp.ne.s32.totalorder %s125, %s126
      %p137 = scmp.eq.s32.totalorder %s16, 0
      %p138 = por %p136, %p137
      %p139 = scmp.ne.s32.totalorder %s125, %s126
      %p140 = scmp.eq.s32.totalorder %s17, 1
      %p141 = por %p139, %p140
      %p143 = scmp.ne.s32.totalorder %s126, %s142
      %p144 = scmp.eq.s32.totalorder %s17, 0
      %p145 = por %p143, %p144
      %s146 = ssub.s32 %s19, %s33
      %p147 = scmp.eq.s32.totalorder %s146, 0
      %s149 = sadd.s32 %s148, 1
      %s150 = scalar_select %p147, %s148, %s149
      %p153 = pneg %p147
      %p154 = scmp.eq.s32.totalorder %s11, 1
      %p155 = por %p153, %p154
      %p156 = scmp.ne.s32.totalorder %s148, %s151
      %p157 = scmp.eq.s32.totalorder %s11, 0
      %p158 = por %p156, %p157
      %p159 = scmp.ne.s32.totalorder %s148, %s151
      %p160 = scmp.eq.s32.totalorder %s16, 1
      %p161 = por %p159, %p160
      %p162 = scmp.ne.s32.totalorder %s151, %s152
      %p163 = scmp.eq.s32.totalorder %s16, 0
      %p164 = por %p162, %p163
      %p165 = scmp.ne.s32.totalorder %s151, %s152
      %p166 = scmp.eq.s32.totalorder %s17, 1
      %p167 = por %p165, %p166
      %p169 = scmp.ne.s32.totalorder %s152, %s168
      %p170 = scmp.eq.s32.totalorder %s17, 0
      %p171 = por %p169, %p170
      %s172 = ssub.s32 %s18, %s37
      %s173 = ssub.s32 %s19, %s33
      %s174 = sor.u32 %s172, %s173
      %p175 = scmp.eq.s32.totalorder %s174, 0
      %s177 = sadd.s32 %s176, 1
      %s178 = scalar_select %p175, %s176, %s177
      %p181 = pneg %p175
      %p182 = scmp.eq.s32.totalorder %s11, 1
      %p183 = por %p181, %p182
      %p184 = scmp.ne.s32.totalorder %s176, %s179
      %p185 = scmp.eq.s32.totalorder %s11, 0
      %p186 = por %p184, %p185
      %p187 = scmp.ne.s32.totalorder %s176, %s179
      %p188 = scmp.eq.s32.totalorder %s16, 1
      %p189 = por %p187, %p188
      %p190 = scmp.ne.s32.totalorder %s179, %s180
      %p191 = scmp.eq.s32.totalorder %s16, 0
      %p192 = por %p190, %p191
      %p193 = scmp.ne.s32.totalorder %s179, %s180
      %p194 = scmp.eq.s32.totalorder %s17, 1
      %p195 = por %p193, %p194
      %p197 = scmp.ne.s32.totalorder %s180, %s196
      %p198 = scmp.eq.s32.totalorder %s17, 0
      %p199 = por %p197, %p198
      %p200 = scmp.le.s32.totalorder 1, %s11
      %p201 = scmp.lt.s32.totalorder %s11, 3
      %p202 = pnand %p200, %p201
      %p203 = pneg %p202
      // Predicated region
      $region9: #{vae_forward.12} parent=5 // pred_check
        _
      $region10: #{vae_forward.12} parent=5 // pred_check_branch
        %205 = sbr.rel (%p202) target = $region12
      $region11: #{vae_forward.12} parent=5 // pred_region
        %s206 = ssub.s32 %s11, 1
        // Predicated region
        $region13: #{vae_forward.12} parent=11 // pred_check
          %p207 = pneg %p112
        $region14: #{vae_forward.12} parent=11 // pred_check_branch
          %209 = sbr.rel (%p207) target = $region16
        $region15: #{vae_forward.12} parent=11 // pred_region
          %p210 = scmp.lt.s32.totalorder %s22, 0
          %s211 = scalar_select %p210, %s22, 0
          %s212 = scalar_lea.vmem %s2, %s211
        $region16: #{vae_forward.12} parent=11 // pred_fallthru
          _
        // Predicated region
        $region17: #{vae_forward.12} parent=11 // pred_check
          %p213 = pneg %p138
        $region18: #{vae_forward.12} parent=11 // pred_check_branch
          %215 = sbr.rel (%p213) target = $region20
        $region19: #{vae_forward.12} parent=11 // pred_region
          %p216 = scmp.lt.s32.totalorder %s22, 0
          %s217 = scalar_select %p216, %s22, 0
          %s218 = scalar_lea.vmem %s3, %s217
        $region20: #{vae_forward.12} parent=11 // pred_fallthru
          _
        // Predicated region
        $region21: #{vae_forward.12} parent=11 // pred_check
          %p219 = pneg %p164
        $region22: #{vae_forward.12} parent=11 // pred_check_branch
          %221 = sbr.rel (%p219) target = $region24
        $region23: #{vae_forward.12} parent=11 // pred_region
          %p222 = scmp.lt.s32.totalorder %s22, 0
          %s223 = scalar_select %p222, %s22, 0
          %s224 = scalar_lea.vmem %s4, %s223
        $region24: #{vae_forward.12} parent=11 // pred_fallthru
          _
      $region12: #{vae_forward.12} parent=5 // pred_fallthru
        _
      %p225 = scmp.lt.s32.totalorder %s11, 2
      // Predicated region
      $region25: #{vae_forward.12} parent=5 // pred_check
        %p226 = pneg %p225
      $region26: #{vae_forward.12} parent=5 // pred_check_branch
        %228 = sbr.rel (%p226) target = $region28
      $region27: #{vae_forward.12} parent=5 // pred_region
        // Predicated region
        $region29: #{vae_forward.12} parent=27 // pred_check
          %p229 = pneg %p52
        $region30: #{vae_forward.12} parent=27 // pred_check_branch
          %231 = sbr.rel (%p229) target = $region32
        $region31: #{vae_forward.12} parent=27 // pred_region
          %s232 = sand.u32 %s42, 1
          %s233 = sand.u32 %s42, 1
          %s234 = smul.addr %s233, 32
          %s235 = scalar_lea.vmem [#allocation3], %s234
          %s236 = smul.u32 2, %s18
          %s237 = smul.u32 4, %s20
          %s238 = smul.addr %s236, 8
          %s239 = sadd.s32 %s237, %s238
          %s240 = smul.addr %s239, 4
          %s241 = scalar_lea.vmem %s0, %s240
          // Predicated region
          $region33: #{vae_forward.12} parent=31 // pred_check
            _
          $region34: #{vae_forward.12} parent=31 // pred_check_branch
            %243 = sbr.rel (0) target = $region36
          $region35: #{vae_forward.12} parent=31 // pred_region
            // Predicated region
            $region37: #{vae_forward.12} parent=35 // pred_check
              _
            $region38: #{vae_forward.12} parent=35 // pred_check_branch
              %245 = sbr.rel (0) target = $region40
            $region39: #{vae_forward.12} parent=35 // pred_region
              loop: start=0, step=1, limit=1
              $region41: #{vae_forward.12} parent=39 // loop_pre_header
                _
              $region42: #{vae_forward.12} parent=39 // loop_header
                %s247 = sphi 0, %s251
                %p248 = scmp.ge.s32.totalorder %s247, 1
                %s252 = sphi %s241, %s241
                %s253 = sphi %s235, %s235
              $region43: #{vae_forward.12} parent=39 // loop_header_branch
                %250 = sbr.rel (%p248) target = $region47
              $region44: #{vae_forward.12} parent=39 // loop_body
                %v254 = vld [vmem:[%s252] sm:$0xff]
                %255 = vst [vmem:[%s253] sm:$0xff] %v254
                %v256 = vld [vmem:[%s252 + $0x8] sm:$0xff]
                %257 = vst [vmem:[%s253 + $0x8] sm:$0xff] %v256
                %v258 = vld [vmem:[%s252 + $0x20] sm:$0xff]
                %259 = vst [vmem:[%s253 + $0x10] sm:$0xff] %v258
                %v260 = vld [vmem:[%s252 + $0x28] sm:$0xff]
                %261 = vst [vmem:[%s253 + $0x18] sm:$0xff] %v260
              $region45: #{vae_forward.12} parent=39 // loop_footer
                %s251 = sadd.s32 1, %s247
              $region46: #{vae_forward.12} parent=39 // loop_footer_branch
                %246 = sbr.rel target = $region42
              $region47: #{vae_forward.12} parent=39 // loop_exit
                _
            $region40: #{vae_forward.12} parent=35 // pred_fallthru
              _
            // Predicated region
            $region48: #{vae_forward.12} parent=35 // pred_check
              _
            $region49: #{vae_forward.12} parent=35 // pred_check_branch
              %263 = sbr.rel target = $region51
            $region50: #{vae_forward.12} parent=35 // pred_region
              _
            $region51: #{vae_forward.12} parent=35 // pred_fallthru
              _
          $region36: #{vae_forward.12} parent=31 // pred_fallthru
            _
          %264 = vnop
        $region32: #{vae_forward.12} parent=27 // pred_fallthru
          _
        // Predicated region
        $region52: #{vae_forward.12} parent=27 // pred_check
          %p265 = pneg %p80
        $region53: #{vae_forward.12} parent=27 // pred_check_branch
          %267 = sbr.rel (%p265) target = $region55
        $region54: #{vae_forward.12} parent=27 // pred_region
          %s268 = smul.u32 64, %s20
          %p269 = scmp.lt.s32.totalorder %s268, 127
          %s270 = scalar_select %p269, %s268, 127
          %p271 = scmp.lt.s32.totalorder %s19, 0
          %s272 = scalar_select %p271, %s19, 0
          %s273 = sadd.s32 %s272, %s270
          %s274 = smul.addr %s273, 4
          %s275 = scalar_lea.vmem %s1, %s274
          %s276 = smul.u32 64, %s20
        $region55: #{vae_forward.12} parent=27 // pred_fallthru
          _
      $region28: #{vae_forward.12} parent=5 // pred_fallthru
        _
      %p277 = scmp.le.s32.totalorder 1, %s11
      %p278 = scmp.lt.s32.totalorder %s11, 3
      %p279 = pnand %p277, %p278
      %p280 = pneg %p279
      // Predicated region
      $region56: #{vae_forward.12} parent=5 // pred_check
        _
      $region57: #{vae_forward.12} parent=5 // pred_check_branch
        %282 = sbr.rel (%p279) target = $region59
      $region58: #{vae_forward.12} parent=5 // pred_region
        %s283 = ssub.s32 %s11, 1
        %s284 = sand.u32 %s45, 1
        %s285 = sand.u32 %s45, 1
        %s286 = smul.addr %s285, 32
        %s287 = scalar_lea.vmem [#allocation3], %s286
        // Predicated region
        $region60: #{vae_forward.12} parent=58 // pred_check
          %p288 = pneg %p58
        $region61: #{vae_forward.12} parent=58 // pred_check_branch
          %290 = sbr.rel (%p288) target = $region63
        $region62: #{vae_forward.12} parent=58 // pred_region
          _
        $region63: #{vae_forward.12} parent=58 // pred_fallthru
          _
        %s291 = sand.u32 %s45, 1
        %s292 = sand.u32 %s45, 1
        %s293 = smul.addr %s292, 32
        %s294 = scalar_lea.vmem [#allocation3], %s293
        %p295 = pneg %p58
        %p296 = pneg %p55
        %s297 = smul.u32 64, %s23
        %p298 = scmp.lt.s32.totalorder %s297, 127
        %s299 = scalar_select %p298, %s297, 127
        %p300 = scmp.lt.s32.totalorder %s22, 0
        %s301 = scalar_select %p300, %s22, 0
        %s302 = sadd.s32 %s301, %s299
        %s303 = smul.addr %s302, 4
        %s304 = scalar_lea.vmem %s1, %s303
        %p305 = pneg %p86
        %p306 = pneg %p83
        %p307 = scmp.lt.s32.totalorder %s22, 0
        %s308 = scalar_select %p307, %s22, 0
        %s309 = scalar_lea.vmem %s2, %s308
        %p310 = pneg %p112
        %p311 = pneg %p109
        %p312 = scmp.lt.s32.totalorder %s22, 0
        %s313 = scalar_select %p312, %s22, 0
        %s314 = scalar_lea.vmem %s3, %s313
        %p315 = pneg %p138
        %p316 = pneg %p135
        %p317 = scmp.lt.s32.totalorder %s22, 0
        %s318 = scalar_select %p317, %s22, 0
        %s319 = scalar_lea.vmem %s4, %s318
        %p320 = pneg %p164
        %p321 = pneg %p161
        %p322 = pneg %p192
        %p323 = pneg %p189
        %s324 = smul.u32 2, %s21
        %p325 = scmp.lt.s32.totalorder %s324, 1
        %s326 = scalar_select %p325, %s324, 1
        %p327 = scmp.lt.s32.totalorder %s22, 0
        %s328 = scalar_select %p327, %s22, 0
        %s329 = sadd.s32 %s328, %s326
        %s330 = smul.addr %s329, 8
        %s331 = scalar_lea.vmem %s5, %s330
        %s332 = smul.u32 2, %s21
        %s333 = smul.u32 4, %s23
        %s334 = smul.u32 64, %s23
        %p335 = scmp.lt.s32.totalorder %s334, 127
        %s336 = scalar_select %p335, %s334, 127
        %p337 = scmp.lt.s32.totalorder %s22, 0
        %s338 = scalar_select %p337, %s22, 0
        %s339 = sadd.s32 %s338, %s336
        %s340 = smul.addr %s339, 4
        %s341 = scalar_lea.vmem %s1, %s340
        %s342 = smul.u32 64, %s23
        %p343 = scmp.lt.s32.totalorder %s22, 0
        %s344 = scalar_select %p343, %s22, 0
        %s345 = scalar_lea.vmem %s2, %s344
        %p346 = scmp.lt.s32.totalorder %s22, 0
        %s347 = scalar_select %p346, %s22, 0
        %s348 = scalar_lea.vmem %s3, %s347
        %p349 = scmp.lt.s32.totalorder %s22, 0
        %s350 = scalar_select %p349, %s22, 0
        %s351 = scalar_lea.vmem %s4, %s350
        %s352 = smul.u32 2, %s21
        %p353 = scmp.lt.s32.totalorder %s352, 1
        %s354 = scalar_select %p353, %s352, 1
        %p355 = scmp.lt.s32.totalorder %s22, 0
        %s356 = scalar_select %p355, %s22, 0
        %s357 = sadd.s32 %s356, %s354
        %s358 = smul.addr %s357, 8
        %s359 = scalar_lea.vmem %s5, %s358
        %s360 = smul.u32 2, %s21
        %p362 = scmp.eq.s32.totalorder %s23, 0
        // Predicated region
        $region64: #{vae_forward.12} parent=58 // pred_check
          %p363 = pneg %p362
        $region65: #{vae_forward.12} parent=58 // pred_check_branch
          %365 = sbr.rel (%p363) target = $region67
        $region66: #{vae_forward.12} parent=58 // pred_region
          %366 = vst [vmem:[#allocation2] sm:$0xff] 0.0
          %367 = vst [vmem:[#allocation2 + $0x8] sm:$0xff] 0.0
        $region67: #{vae_forward.12} parent=58 // pred_fallthru
          _
        %v368 = vld [vmem:[#allocation2] sm:$0xff]
        %v369 = vld [vmem:[#allocation2 + $0x8] sm:$0xff]
        %v370 = vld [vmem:[%s287] sm:$0xff]
        %v371 = vld [vmem:[%s287 + $0x8] sm:$0xff]
        %v372 = vld [vmem:[%s287 + $0x10] sm:$0xff]
        %v373 = vld [vmem:[%s287 + $0x18] sm:$0xff]
        %v374 = vld [vmem:[%s341] sm:$0xf]
        %v375 = vld [vmem:[%s341 + $0x4] sm:$0xf]
        %v376 = vld [vmem:[%s341 + $0x8] sm:$0xf]
        %v377 = vld [vmem:[%s341 + $0xc] sm:$0xf]
        %v378 = vld [vmem:[%s341 + $0x10] sm:$0xf]
        %v379 = vld [vmem:[%s341 + $0x14] sm:$0xf]
        %v380 = vld [vmem:[%s341 + $0x18] sm:$0xf]
        %v381 = vld [vmem:[%s341 + $0x1c] sm:$0xf]
        %v382 = vld [vmem:[%s341 + $0x20] sm:$0xf]
        %v383 = vld [vmem:[%s341 + $0x24] sm:$0xf]
        %v384 = vld [vmem:[%s341 + $0x28] sm:$0xf]
        %v385 = vld [vmem:[%s341 + $0x2c] sm:$0xf]
        %v386 = vld [vmem:[%s341 + $0x30] sm:$0xf]
        %v387 = vld [vmem:[%s341 + $0x34] sm:$0xf]
        %v388 = vld [vmem:[%s341 + $0x38] sm:$0xf]
        %v389 = vld [vmem:[%s341 + $0x3c] sm:$0xf]
        %v390 = vld [vmem:[%s341 + $0x40] sm:$0xf]
        %v391 = vld [vmem:[%s341 + $0x44] sm:$0xf]
        %v392 = vld [vmem:[%s341 + $0x48] sm:$0xf]
        %v393 = vld [vmem:[%s341 + $0x4c] sm:$0xf]
        %v394 = vld [vmem:[%s341 + $0x50] sm:$0xf]
        %v395 = vld [vmem:[%s341 + $0x54] sm:$0xf]
        %v396 = vld [vmem:[%s341 + $0x58] sm:$0xf]
        %v397 = vld [vmem:[%s341 + $0x5c] sm:$0xf]
        %v398 = vld [vmem:[%s341 + $0x60] sm:$0xf]
        %v399 = vld [vmem:[%s341 + $0x64] sm:$0xf]
        %v400 = vld [vmem:[%s341 + $0x68] sm:$0xf]
        %v401 = vld [vmem:[%s341 + $0x6c] sm:$0xf]
        %v402 = vld [vmem:[%s341 + $0x70] sm:$0xf]
        %v403 = vld [vmem:[%s341 + $0x74] sm:$0xf]
        %v404 = vld [vmem:[%s341 + $0x78] sm:$0xf]
        %v405 = vld [vmem:[%s341 + $0x7c] sm:$0xf]
        %v406 = vld [vmem:[%s341 + $0x80] sm:$0xf]
        %v407 = vld [vmem:[%s341 + $0x84] sm:$0xf]
        %v408 = vld [vmem:[%s341 + $0x88] sm:$0xf]
        %v409 = vld [vmem:[%s341 + $0x8c] sm:$0xf]
        %v410 = vld [vmem:[%s341 + $0x90] sm:$0xf]
        %v411 = vld [vmem:[%s341 + $0x94] sm:$0xf]
        %v412 = vld [vmem:[%s341 + $0x98] sm:$0xf]
        %v413 = vld [vmem:[%s341 + $0x9c] sm:$0xf]
        %v414 = vld [vmem:[%s341 + $0xa0] sm:$0xf]
        %v415 = vld [vmem:[%s341 + $0xa4] sm:$0xf]
        %v416 = vld [vmem:[%s341 + $0xa8] sm:$0xf]
        %v417 = vld [vmem:[%s341 + $0xac] sm:$0xf]
        %v418 = vld [vmem:[%s341 + $0xb0] sm:$0xf]
        %v419 = vld [vmem:[%s341 + $0xb4] sm:$0xf]
        %v420 = vld [vmem:[%s341 + $0xb8] sm:$0xf]
        %v421 = vld [vmem:[%s341 + $0xbc] sm:$0xf]
        %v422 = vld [vmem:[%s341 + $0xc0] sm:$0xf]
        %v423 = vld [vmem:[%s341 + $0xc4] sm:$0xf]
        %v424 = vld [vmem:[%s341 + $0xc8] sm:$0xf]
        %v425 = vld [vmem:[%s341 + $0xcc] sm:$0xf]
        %v426 = vld [vmem:[%s341 + $0xd0] sm:$0xf]
        %v427 = vld [vmem:[%s341 + $0xd4] sm:$0xf]
        %v428 = vld [vmem:[%s341 + $0xd8] sm:$0xf]
        %v429 = vld [vmem:[%s341 + $0xdc] sm:$0xf]
        %v430 = vld [vmem:[%s341 + $0xe0] sm:$0xf]
        %v431 = vld [vmem:[%s341 + $0xe4] sm:$0xf]
        %v432 = vld [vmem:[%s341 + $0xe8] sm:$0xf]
        %v433 = vld [vmem:[%s341 + $0xec] sm:$0xf]
        %v434 = vld [vmem:[%s341 + $0xf0] sm:$0xf]
        %v435 = vld [vmem:[%s341 + $0xf4] sm:$0xf]
        %v436 = vld [vmem:[%s341 + $0xf8] sm:$0xf]
        %v437 = vld [vmem:[%s341 + $0xfc] sm:$0xf]
        %v442 = vunpack.c.l.b16 %v370
        %v443 = vunpack.c.h.b16 %v370
        %v444 = vunpack.c.l.b16 %v371
        %v445 = vunpack.c.h.b16 %v371
        %v446 = vunpack.c.l.b16 %v372
        %v447 = vunpack.c.h.b16 %v372
        %v448 = vunpack.c.l.b16 %v373
        %v449 = vunpack.c.h.b16 %v373
        %v450 = vpack.c.b16 %v446, %v442
        %v451 = vpack.c.b16 %v447, %v443
        %v452 = vpack.c.b16 %v448, %v444
        %v453 = vpack.c.b16 %v449, %v445
        %v522 = vunpack.c.l.b16 %v374
        %v523 = vunpack.c.l.b16 %v375
        %v524 = vunpack.c.l.b16 %v376
        %v525 = vunpack.c.l.b16 %v377
        %v526 = vunpack.c.l.b16 %v378
        %v527 = vunpack.c.l.b16 %v379
        %v528 = vunpack.c.l.b16 %v380
        %v529 = vunpack.c.l.b16 %v381
        %v530 = vunpack.c.l.b16 %v382
        %v531 = vunpack.c.l.b16 %v383
        %v532 = vunpack.c.l.b16 %v384
        %v533 = vunpack.c.l.b16 %v385
        %v534 = vunpack.c.l.b16 %v386
        %v535 = vunpack.c.l.b16 %v387
        %v536 = vunpack.c.l.b16 %v388
        %v537 = vunpack.c.l.b16 %v389
        %v538 = vunpack.c.l.b16 %v390
        %v539 = vunpack.c.l.b16 %v391
        %v540 = vunpack.c.l.b16 %v392
        %v541 = vunpack.c.l.b16 %v393
        %v542 = vunpack.c.l.b16 %v394
        %v543 = vunpack.c.l.b16 %v395
        %v544 = vunpack.c.l.b16 %v396
        %v545 = vunpack.c.l.b16 %v397
        %v546 = vunpack.c.l.b16 %v398
        %v547 = vunpack.c.l.b16 %v399
        %v548 = vunpack.c.l.b16 %v400
        %v549 = vunpack.c.l.b16 %v401
        %v550 = vunpack.c.l.b16 %v402
        %v551 = vunpack.c.l.b16 %v403
        %v552 = vunpack.c.l.b16 %v404
        %v553 = vunpack.c.l.b16 %v405
        %v554 = vunpack.c.l.b16 %v406
        %v555 = vunpack.c.l.b16 %v407
        %v556 = vunpack.c.l.b16 %v408
        %v557 = vunpack.c.l.b16 %v409
        %v558 = vunpack.c.l.b16 %v410
        %v559 = vunpack.c.l.b16 %v411
        %v560 = vunpack.c.l.b16 %v412
        %v561 = vunpack.c.l.b16 %v413
        %v562 = vunpack.c.l.b16 %v414
        %v563 = vunpack.c.l.b16 %v415
        %v564 = vunpack.c.l.b16 %v416
        %v565 = vunpack.c.l.b16 %v417
        %v566 = vunpack.c.l.b16 %v418
        %v567 = vunpack.c.l.b16 %v419
        %v568 = vunpack.c.l.b16 %v420
        %v569 = vunpack.c.l.b16 %v421
        %v570 = vunpack.c.l.b16 %v422
        %v571 = vunpack.c.l.b16 %v423
        %v572 = vunpack.c.l.b16 %v424
        %v573 = vunpack.c.l.b16 %v425
        %v574 = vunpack.c.l.b16 %v426
        %v575 = vunpack.c.l.b16 %v427
        %v576 = vunpack.c.l.b16 %v428
        %v577 = vunpack.c.l.b16 %v429
        %v578 = vunpack.c.l.b16 %v430
        %v579 = vunpack.c.l.b16 %v431
        %v580 = vunpack.c.l.b16 %v432
        %v581 = vunpack.c.l.b16 %v433
        %v582 = vunpack.c.l.b16 %v434
        %v583 = vunpack.c.l.b16 %v435
        %v584 = vunpack.c.l.b16 %v436
        %v585 = vunpack.c.l.b16 %v437
        %v586 = vpack.c.b16 %v523, %v522
        %v587 = vpack.c.b16 %v525, %v524
        %v588 = vpack.c.b16 %v527, %v526
        %v589 = vpack.c.b16 %v529, %v528
        %v590 = vpack.c.b16 %v531, %v530
        %v591 = vpack.c.b16 %v533, %v532
        %v592 = vpack.c.b16 %v535, %v534
        %v593 = vpack.c.b16 %v537, %v536
        %v594 = vpack.c.b16 %v539, %v538
        %v595 = vpack.c.b16 %v541, %v540
        %v596 = vpack.c.b16 %v543, %v542
        %v597 = vpack.c.b16 %v545, %v544
        %v598 = vpack.c.b16 %v547, %v546
        %v599 = vpack.c.b16 %v549, %v548
        %v600 = vpack.c.b16 %v551, %v550
        %v601 = vpack.c.b16 %v553, %v552
        %v602 = vpack.c.b16 %v555, %v554
        %v603 = vpack.c.b16 %v557, %v556
        %v604 = vpack.c.b16 %v559, %v558
        %v605 = vpack.c.b16 %v561, %v560
        %v606 = vpack.c.b16 %v563, %v562
        %v607 = vpack.c.b16 %v565, %v564
        %v608 = vpack.c.b16 %v567, %v566
        %v609 = vpack.c.b16 %v569, %v568
        %v610 = vpack.c.b16 %v571, %v570
        %v611 = vpack.c.b16 %v573, %v572
        %v612 = vpack.c.b16 %v575, %v574
        %v613 = vpack.c.b16 %v577, %v576
        %v614 = vpack.c.b16 %v579, %v578
        %v615 = vpack.c.b16 %v581, %v580
        %v616 = vpack.c.b16 %v583, %v582
        %v617 = vpack.c.b16 %v585, %v584
        %650 = vmatprep.subr.bf16.mxu0 0
        %651 = vmatpush1.bf16.msra.mxu0 %v586
        %652 = vmatprep.subr.bf16.mxu0 0
        %653 = vmatpush1.bf16.msra.mxu0 %v587
        %654 = vmatprep.subr.bf16.mxu0 0
        %655 = vmatpush1.bf16.msra.mxu0 %v588
        %656 = vmatprep.subr.bf16.mxu0 0
        %657 = vmatpush1.bf16.msra.mxu0 %v589
        %658 = vmatprep.subr.bf16.mxu0 0
        %659 = vmatpush1.bf16.msra.mxu0 %v590
        %660 = vmatprep.subr.bf16.mxu0 0
        %661 = vmatpush1.bf16.msra.mxu0 %v591
        %662 = vmatprep.subr.bf16.mxu0 0
        %663 = vmatpush1.bf16.msra.mxu0 %v592
        %664 = vmatprep.subr.bf16.mxu0 0
        %665 = vmatpush1.bf16.msra.mxu0 %v593
        %666 = vmatprep.subr.bf16.mxu0 0
        %667 = vmatpush1.bf16.msra.mxu0 %v594
        %668 = vmatprep.subr.bf16.mxu0 0
        %669 = vmatpush1.bf16.msra.mxu0 %v595
        %670 = vmatprep.subr.bf16.mxu0 0
        %671 = vmatpush1.bf16.msra.mxu0 %v596
        %672 = vmatprep.subr.bf16.mxu0 0
        %673 = vmatpush1.bf16.msra.mxu0 %v597
        %674 = vmatprep.subr.bf16.mxu0 0
        %675 = vmatpush1.bf16.msra.mxu0 %v598
        %676 = vmatprep.subr.bf16.mxu0 0
        %677 = vmatpush1.bf16.msra.mxu0 %v599
        %678 = vmatprep.subr.bf16.mxu0 0
        %679 = vmatpush1.bf16.msra.mxu0 %v600
        %680 = vmatprep.subr.bf16.mxu0 0
        %681 = vmatpush1.bf16.msra.mxu0 %v601
        %682 = vmatprep.mubr.bf16.mxu0 %v451
        %683 = vmatmul.mubr.bf16.gmra.mrb[0].mxu0 %v450
        %v684 = vpop.f32.mrb[0].mxu0
        %v685 = vadd.f32 0.0, %v684
        %v686 = vpop.f32.mrb[0].mxu0
        %v687 = vpop.f32.mrb[0].mxu0
        %v688 = vadd.f32 0.0, %v687
        %v689 = vpop.f32.mrb[0].mxu0
        %690 = vdwg.mxu0
        %691 = vmatprep.subr.bf16.mxu0 0
        %692 = vmatpush1.bf16.msra.mxu0 %v602
        %693 = vmatprep.subr.bf16.mxu0 0
        %694 = vmatpush1.bf16.msra.mxu0 %v603
        %695 = vmatprep.subr.bf16.mxu0 0
        %696 = vmatpush1.bf16.msra.mxu0 %v604
        %697 = vmatprep.subr.bf16.mxu0 0
        %698 = vmatpush1.bf16.msra.mxu0 %v605
        %699 = vmatprep.subr.bf16.mxu0 0
        %700 = vmatpush1.bf16.msra.mxu0 %v606
        %701 = vmatprep.subr.bf16.mxu0 0
        %702 = vmatpush1.bf16.msra.mxu0 %v607
        %703 = vmatprep.subr.bf16.mxu0 0
        %704 = vmatpush1.bf16.msra.mxu0 %v608
        %705 = vmatprep.subr.bf16.mxu0 0
        %706 = vmatpush1.bf16.msra.mxu0 %v609
        %707 = vmatprep.subr.bf16.mxu0 0
        %708 = vmatpush1.bf16.msra.mxu0 %v610
        %709 = vmatprep.subr.bf16.mxu0 0
        %710 = vmatpush1.bf16.msra.mxu0 %v611
        %711 = vmatprep.subr.bf16.mxu0 0
        %712 = vmatpush1.bf16.msra.mxu0 %v612
        %713 = vmatprep.subr.bf16.mxu0 0
        %714 = vmatpush1.bf16.msra.mxu0 %v613
        %715 = vmatprep.subr.bf16.mxu0 0
        %716 = vmatpush1.bf16.msra.mxu0 %v614
        %717 = vmatprep.subr.bf16.mxu0 0
        %718 = vmatpush1.bf16.msra.mxu0 %v615
        %719 = vmatprep.subr.bf16.mxu0 0
        %720 = vmatpush1.bf16.msra.mxu0 %v616
        %721 = vmatprep.subr.bf16.mxu0 0
        %722 = vmatpush1.bf16.msra.mxu0 %v617
        %723 = vmatprep.mubr.bf16.mxu0 %v453
        %724 = vmatmul.mubr.bf16.gmra.mrb[0].mxu0 %v452
        %v725 = vpop.f32.mrb[0].mxu0
        %v726 = vadd.f32 %v685, %v725
        %v727 = vpop.f32.mrb[0].mxu0
        %v728 = vpop.f32.mrb[0].mxu0
        %v729 = vadd.f32 %v688, %v728
        %v730 = vpop.f32.mrb[0].mxu0
        %731 = vdwg.mxu0
        %v732 = vadd.f32 %v368, %v726
        %v733 = vadd.f32 %v369, %v729
        %734 = vst [vmem:[#allocation2] sm:$0xff] %v732
        %735 = vst [vmem:[#allocation2 + $0x8] sm:$0xff] %v733
        %p736 = scmp.eq.s32.totalorder %s23, 1
        // Predicated region
        $region68: #{vae_forward.12} parent=58 // pred_check
          %p737 = pneg %p736
        $region69: #{vae_forward.12} parent=58 // pred_check_branch
          %739 = sbr.rel (%p737) target = $region71
        $region70: #{vae_forward.12} parent=58 // pred_region
          %v740 = vld [vmem:[#allocation2] sm:$0xff]
          %v741 = vld [vmem:[#allocation2 + $0x8] sm:$0xff]
          %v742 = vld [vmem:[%s345] sm:$0x1]
          %v744 = vlaneseq
          %v745 = vshrl.u32 %v744, 7
          %v746 = vsub.s32 0, %v745
          %v747 = vrot.slane %v742, %v746
          %v749 = vadd.f32 %v740, %v747
          %v750 = vadd.f32 %v741, %v747
          %v751 = vld [vmem:[%s348] sm:$0x1]
          %v753 = vlaneseq
          %v754 = vshrl.u32 %v753, 7
          %v755 = vsub.s32 0, %v754
          %v756 = vrot.slane %v751, %v755
          %v758 = vmul.f32 %v749, %v756
          %v759 = vmul.f32 %v750, %v756
          %v760 = vld [vmem:[%s351] sm:$0x1]
          %v762 = vlaneseq
          %v763 = vshrl.u32 %v762, 7
          %v764 = vsub.s32 0, %v763
          %v765 = vrot.slane %v760, %v764
          %v767 = vadd.f32 %v758, %v765
          %v768 = vadd.f32 %v759, %v765
          %vm769 = vcmp.gt.f32.partialorder %v767, 0.0
          %vm770 = vcmp.gt.f32.partialorder %v768, 0.0
          %v771 = vmul.f32 %v767, 0.01
          %v772 = vmul.f32 %v768, 0.01
          %v773 = vsel %vm769, %v767, %v771
          %v774 = vsel %vm770, %v768, %v772
          %775 = vst [vmem:[%s359] sm:$0xff] %v773
          %776 = vst [vmem:[%s359 + $0x8] sm:$0xff] %v774
        $region71: #{vae_forward.12} parent=58 // pred_fallthru
          _
        %s777 = smul.u32 2, %s21
        %p778 = scmp.lt.s32.totalorder %s777, 1
        %s779 = scalar_select %p778, %s777, 1
        %p780 = scmp.lt.s32.totalorder %s22, 0
        %s781 = scalar_select %p780, %s22, 0
        %s782 = sadd.s32 %s781, %s779
        %s783 = smul.addr %s782, 8
        %s784 = scalar_lea.vmem %s5, %s783
        // Predicated region
        $region72: #{vae_forward.12} parent=58 // pred_check
          %p785 = pneg %p189
        $region73: #{vae_forward.12} parent=58 // pred_check_branch
          %787 = sbr.rel (%p785) target = $region75
        $region74: #{vae_forward.12} parent=58 // pred_region
          %s788 = smul.u32 2, %s21
        $region75: #{vae_forward.12} parent=58 // pred_fallthru
          _
        // Predicated region
        $region76: #{vae_forward.12} parent=58 // pred_check
          %p789 = pneg %p189
        $region77: #{vae_forward.12} parent=58 // pred_check_branch
          %791 = sbr.rel (%p789) target = $region79
        $region78: #{vae_forward.12} parent=58 // pred_region
          %s792 = smul.u32 2, %s21
          %p793 = scmp.lt.s32.totalorder %s792, 1
          %s794 = scalar_select %p793, %s792, 1
          %p795 = scmp.lt.s32.totalorder %s22, 0
          %s796 = scalar_select %p795, %s22, 0
          %s797 = sadd.s32 %s796, %s794
          %s798 = smul.addr %s797, 8
          %s799 = scalar_lea.vmem %s5, %s798
        $region79: #{vae_forward.12} parent=58 // pred_fallthru
          _
      $region59: #{vae_forward.12} parent=5 // pred_fallthru
        _
      %p800 = scmp.le.s32.totalorder 2, %s11
      // Predicated region
      $region80: #{vae_forward.12} parent=5 // pred_check
        %p801 = pneg %p800
      $region81: #{vae_forward.12} parent=5 // pred_check_branch
        %803 = sbr.rel (%p801) target = $region83
      $region82: #{vae_forward.12} parent=5 // pred_region
        %s804 = ssub.s32 %s11, 2
      $region83: #{vae_forward.12} parent=5 // pred_fallthru
        _
    $region6: #{vae_forward.12} parent=1 // loop_footer
      %s15 = sadd.s32 1, %s11
    $region7: #{vae_forward.12} parent=1 // loop_footer_branch
      %10 = sbr.rel target = $region3
    $region8: #{vae_forward.12} parent=1 // loop_exit
      _

// kernel: vae_forward.13
$region0: #{vae_forward.13}
  #allocation0 [shape = 'u32[]', space=smem, size = 0x4, offset = 0x4, fixed_abs, tag = 'smem constant byte address 0x4 - core index']
  #allocation1 [shape = 'u32[144,128]{1,0:T(1,128)}', space=vmem, size = 0x12000, scoped, tag = 'internal scratch']
  #allocation2 [shape = 'f32[16,128]{1,0:T(8,128)}', space=vmem, size = 0x2000, scoped, tag = 'scratch operand']
  %s0 = inlined_call_operand.vmem [shape: bf16[16,384], index: 0, kind: input, shape index: {}]
  %s1 = inlined_call_operand.vmem [shape: bf16[384,128], index: 1, kind: input, shape index: {}]
  %s2 = inlined_call_operand.vmem [shape: f32[1,128], index: 2, kind: input, shape index: {}]
  %s3 = inlined_call_operand.vmem [shape: f32[1,128], index: 3, kind: input, shape index: {}]
  %s4 = inlined_call_operand.vmem [shape: f32[1,128], index: 4, kind: input, shape index: {}]
  %s5 = inlined_call_operand.vmem [shape: f32[16,128], index: 5, kind: output, shape index: {}]
  %s6 = sld [smem:[#allocation0]]
  $region38: #{vae_forward.13} parent=0
    _
  %s8 = ssub.s32 1, %s6
  %s9 = scalar_select 0, %s8, %s6
  // Predicated region
  $region2: #{vae_forward.13} parent=0 // pred_check
    _
  $region3: #{vae_forward.13} parent=0 // pred_check_branch
    %11 = sbr.rel (0) target = $region5
  $region4: #{vae_forward.13} parent=0 // pred_region
    _
  $region5: #{vae_forward.13} parent=0 // pred_fallthru
    _
  // Predicated region
  $region6: #{vae_forward.13} parent=0 // pred_check
    _
  $region7: #{vae_forward.13} parent=0 // pred_check_branch
    %13 = sbr.rel (0) target = $region9
  $region8: #{vae_forward.13} parent=0 // pred_region
    _
  $region9: #{vae_forward.13} parent=0 // pred_fallthru
    _
  // Predicated region
  $region10: #{vae_forward.13} parent=0 // pred_check
    _
  $region11: #{vae_forward.13} parent=0 // pred_check_branch
    %15 = sbr.rel (0) target = $region13
  $region12: #{vae_forward.13} parent=0 // pred_region
    _
  $region13: #{vae_forward.13} parent=0 // pred_fallthru
    _
  // Predicated region
  $region14: #{vae_forward.13} parent=0 // pred_check
    _
  $region15: #{vae_forward.13} parent=0 // pred_check_branch
    %17 = sbr.rel (0) target = $region17
  $region16: #{vae_forward.13} parent=0 // pred_region
    _
  $region17: #{vae_forward.13} parent=0 // pred_fallthru
    _
  // Predicated region
  $region18: #{vae_forward.13} parent=0 // pred_check
    _
  $region19: #{vae_forward.13} parent=0 // pred_check_branch
    %19 = sbr.rel (0) target = $region21
  $region20: #{vae_forward.13} parent=0 // pred_region
    _
  $region21: #{vae_forward.13} parent=0 // pred_fallthru
    _
  %p21 = scmp.eq.s32.totalorder 0, 0
  // Predicated region
  $region22: #{vae_forward.13} parent=0 // pred_check
    %p22 = pneg %p21
  $region23: #{vae_forward.13} parent=0 // pred_check_branch
    %24 = sbr.rel (%p22) target = $region25
  $region24: #{vae_forward.13} parent=0 // pred_region
    %25 = vst [vmem:[#allocation2] sm:$0xff] 0.0
    %26 = vst [vmem:[#allocation2 + $0x8] sm:$0xff] 0.0
  $region25: #{vae_forward.13} parent=0 // pred_fallthru
    _
  %v27 = vld [vmem:[#allocation2] sm:$0xff]
  %v28 = vld [vmem:[#allocation2 + $0x8] sm:$0xff]
  %v29 = vld [vmem:[%s0] sm:$0xff]
  %v30 = vld [vmem:[%s0 + $0x8] sm:$0xf]
  %v31 = vld [vmem:[%s0 + $0xc] sm:$0xff]
  %v32 = vld [vmem:[%s0 + $0x14] sm:$0xf]
  %v33 = vld [vmem:[%s1] sm:$0xf]
  %v34 = vld [vmem:[%s1 + $0x4] sm:$0xf]
  %v35 = vld [vmem:[%s1 + $0x8] sm:$0xf]
  %v36 = vld [vmem:[%s1 + $0xc] sm:$0xf]
  %v37 = vld [vmem:[%s1 + $0x10] sm:$0xf]
  %v38 = vld [vmem:[%s1 + $0x14] sm:$0xf]
  %v39 = vld [vmem:[%s1 + $0x18] sm:$0xf]
  %v40 = vld [vmem:[%s1 + $0x1c] sm:$0xf]
  %v41 = vld [vmem:[%s1 + $0x20] sm:$0xf]
  %v42 = vld [vmem:[%s1 + $0x24] sm:$0xf]
  %v43 = vld [vmem:[%s1 + $0x28] sm:$0xf]
  %v44 = vld [vmem:[%s1 + $0x2c] sm:$0xf]
  %v45 = vld [vmem:[%s1 + $0x30] sm:$0xf]
  %v46 = vld [vmem:[%s1 + $0x34] sm:$0xf]
  %v47 = vld [vmem:[%s1 + $0x38] sm:$0xf]
  %v48 = vld [vmem:[%s1 + $0x3c] sm:$0xf]
  %v49 = vld [vmem:[%s1 + $0x40] sm:$0xf]
  %v50 = vld [vmem:[%s1 + $0x44] sm:$0xf]
  %v51 = vld [vmem:[%s1 + $0x48] sm:$0xf]
  %v52 = vld [vmem:[%s1 + $0x4c] sm:$0xf]
  %v53 = vld [vmem:[%s1 + $0x50] sm:$0xf]
  %v54 = vld [vmem:[%s1 + $0x54] sm:$0xf]
  %v55 = vld [vmem:[%s1 + $0x58] sm:$0xf]
  %v56 = vld [vmem:[%s1 + $0x5c] sm:$0xf]
  %v57 = vld [vmem:[%s1 + $0x60] sm:$0xf]
  %v58 = vld [vmem:[%s1 + $0x64] sm:$0xf]
  %v59 = vld [vmem:[%s1 + $0x68] sm:$0xf]
  %v60 = vld [vmem:[%s1 + $0x6c] sm:$0xf]
  %v61 = vld [vmem:[%s1 + $0x70] sm:$0xf]
  %v62 = vld [vmem:[%s1 + $0x74] sm:$0xf]
  %v63 = vld [vmem:[%s1 + $0x78] sm:$0xf]
  %v64 = vld [vmem:[%s1 + $0x7c] sm:$0xf]
  %v65 = vld [vmem:[%s1 + $0x80] sm:$0xf]
  %v66 = vld [vmem:[%s1 + $0x84] sm:$0xf]
  %v67 = vld [vmem:[%s1 + $0x88] sm:$0xf]
  %v68 = vld [vmem:[%s1 + $0x8c] sm:$0xf]
  %v69 = vld [vmem:[%s1 + $0x90] sm:$0xf]
  %v70 = vld [vmem:[%s1 + $0x94] sm:$0xf]
  %v71 = vld [vmem:[%s1 + $0x98] sm:$0xf]
  %v72 = vld [vmem:[%s1 + $0x9c] sm:$0xf]
  %v73 = vld [vmem:[%s1 + $0xa0] sm:$0xf]
  %v74 = vld [vmem:[%s1 + $0xa4] sm:$0xf]
  %v75 = vld [vmem:[%s1 + $0xa8] sm:$0xf]
  %v76 = vld [vmem:[%s1 + $0xac] sm:$0xf]
  %v77 = vld [vmem:[%s1 + $0xb0] sm:$0xf]
  %v78 = vld [vmem:[%s1 + $0xb4] sm:$0xf]
  %v79 = vld [vmem:[%s1 + $0xb8] sm:$0xf]
  %v80 = vld [vmem:[%s1 + $0xbc] sm:$0xf]
  %v85 = vunpack.c.l.b16 %v29
  %v86 = vunpack.c.h.b16 %v29
  %v87 = vunpack.c.l.b16 %v30
  %v88 = vunpack.c.l.b16 %v31
  %v89 = vunpack.c.h.b16 %v31
  %v90 = vunpack.c.l.b16 %v32
  %v91 = vpack.c.b16 %v88, %v85
  %v92 = vpack.c.b16 %v89, %v86
  %v93 = vpack.c.b16 %v90, %v87
  %v145 = vunpack.c.l.b16 %v33
  %v146 = vunpack.c.l.b16 %v34
  %v147 = vunpack.c.l.b16 %v35
  %v148 = vunpack.c.l.b16 %v36
  %v149 = vunpack.c.l.b16 %v37
  %v150 = vunpack.c.l.b16 %v38
  %v151 = vunpack.c.l.b16 %v39
  %v152 = vunpack.c.l.b16 %v40
  %v153 = vunpack.c.l.b16 %v41
  %v154 = vunpack.c.l.b16 %v42
  %v155 = vunpack.c.l.b16 %v43
  %v156 = vunpack.c.l.b16 %v44
  %v157 = vunpack.c.l.b16 %v45
  %v158 = vunpack.c.l.b16 %v46
  %v159 = vunpack.c.l.b16 %v47
  %v160 = vunpack.c.l.b16 %v48
  %v161 = vunpack.c.l.b16 %v49
  %v162 = vunpack.c.l.b16 %v50
  %v163 = vunpack.c.l.b16 %v51
  %v164 = vunpack.c.l.b16 %v52
  %v165 = vunpack.c.l.b16 %v53
  %v166 = vunpack.c.l.b16 %v54
  %v167 = vunpack.c.l.b16 %v55
  %v168 = vunpack.c.l.b16 %v56
  %v169 = vunpack.c.l.b16 %v57
  %v170 = vunpack.c.l.b16 %v58
  %v171 = vunpack.c.l.b16 %v59
  %v172 = vunpack.c.l.b16 %v60
  %v173 = vunpack.c.l.b16 %v61
  %v174 = vunpack.c.l.b16 %v62
  %v175 = vunpack.c.l.b16 %v63
  %v176 = vunpack.c.l.b16 %v64
  %v177 = vunpack.c.l.b16 %v65
  %v178 = vunpack.c.l.b16 %v66
  %v179 = vunpack.c.l.b16 %v67
  %v180 = vunpack.c.l.b16 %v68
  %v181 = vunpack.c.l.b16 %v69
  %v182 = vunpack.c.l.b16 %v70
  %v183 = vunpack.c.l.b16 %v71
  %v184 = vunpack.c.l.b16 %v72
  %v185 = vunpack.c.l.b16 %v73
  %v186 = vunpack.c.l.b16 %v74
  %v187 = vunpack.c.l.b16 %v75
  %v188 = vunpack.c.l.b16 %v76
  %v189 = vunpack.c.l.b16 %v77
  %v190 = vunpack.c.l.b16 %v78
  %v191 = vunpack.c.l.b16 %v79
  %v192 = vunpack.c.l.b16 %v80
  %v193 = vpack.c.b16 %v146, %v145
  %v194 = vpack.c.b16 %v148, %v147
  %v195 = vpack.c.b16 %v150, %v149
  %v196 = vpack.c.b16 %v152, %v151
  %v197 = vpack.c.b16 %v154, %v153
  %v198 = vpack.c.b16 %v156, %v155
  %v199 = vpack.c.b16 %v158, %v157
  %v200 = vpack.c.b16 %v160, %v159
  %v201 = vpack.c.b16 %v162, %v161
  %v202 = vpack.c.b16 %v164, %v163
  %v203 = vpack.c.b16 %v166, %v165
  %v204 = vpack.c.b16 %v168, %v167
  %v205 = vpack.c.b16 %v170, %v169
  %v206 = vpack.c.b16 %v172, %v171
  %v207 = vpack.c.b16 %v174, %v173
  %v208 = vpack.c.b16 %v176, %v175
  %v209 = vpack.c.b16 %v178, %v177
  %v210 = vpack.c.b16 %v180, %v179
  %v211 = vpack.c.b16 %v182, %v181
  %v212 = vpack.c.b16 %v184, %v183
  %v213 = vpack.c.b16 %v186, %v185
  %v214 = vpack.c.b16 %v188, %v187
  %v215 = vpack.c.b16 %v190, %v189
  %v216 = vpack.c.b16 %v192, %v191
  %241 = vmatprep.subr.bf16.mxu0 0
  %242 = vmatpush1.bf16.msra.mxu0 %v193
  %243 = vmatprep.subr.bf16.mxu0 0
  %244 = vmatpush1.bf16.msra.mxu0 %v194
  %245 = vmatprep.subr.bf16.mxu0 0
  %246 = vmatpush1.bf16.msra.mxu0 %v195
  %247 = vmatprep.subr.bf16.mxu0 0
  %248 = vmatpush1.bf16.msra.mxu0 %v196
  %249 = vmatprep.subr.bf16.mxu0 0
  %250 = vmatpush1.bf16.msra.mxu0 %v197
  %251 = vmatprep.subr.bf16.mxu0 0
  %252 = vmatpush1.bf16.msra.mxu0 %v198
  %253 = vmatprep.subr.bf16.mxu0 0
  %254 = vmatpush1.bf16.msra.mxu0 %v199
  %255 = vmatprep.subr.bf16.mxu0 0
  %256 = vmatpush1.bf16.msra.mxu0 %v200
  %257 = vmatprep.subr.bf16.mxu0 0
  %258 = vmatpush1.bf16.msra.mxu0 %v201
  %259 = vmatprep.subr.bf16.mxu0 0
  %260 = vmatpush1.bf16.msra.mxu0 %v202
  %261 = vmatprep.subr.bf16.mxu0 0
  %262 = vmatpush1.bf16.msra.mxu0 %v203
  %263 = vmatprep.subr.bf16.mxu0 0
  %264 = vmatpush1.bf16.msra.mxu0 %v204
  %265 = vmatprep.subr.bf16.mxu0 0
  %266 = vmatpush1.bf16.msra.mxu0 %v205
  %267 = vmatprep.subr.bf16.mxu0 0
  %268 = vmatpush1.bf16.msra.mxu0 %v206
  %269 = vmatprep.subr.bf16.mxu0 0
  %270 = vmatpush1.bf16.msra.mxu0 %v207
  %271 = vmatprep.subr.bf16.mxu0 0
  %272 = vmatpush1.bf16.msra.mxu0 %v208
  %273 = vmatprep.mubr.bf16.mxu0 %v92
  %274 = vmatmul.mubr.bf16.gmra.mrb[0].mxu0 %v91
  %v275 = vpop.f32.mrb[0].mxu0
  %v276 = vadd.f32 0.0, %v275
  %v277 = vpop.f32.mrb[0].mxu0
  %v278 = vpop.f32.mrb[0].mxu0
  %v279 = vadd.f32 0.0, %v278
  %v280 = vpop.f32.mrb[0].mxu0
  %281 = vdwg.mxu0
  %282 = vmatprep.subr.bf16.mxu0 0
  %283 = vmatpush1.bf16.msra.mxu0 %v209
  %284 = vmatprep.subr.bf16.mxu0 0
  %285 = vmatpush1.bf16.msra.mxu0 %v210
  %286 = vmatprep.subr.bf16.mxu0 0
  %287 = vmatpush1.bf16.msra.mxu0 %v211
  %288 = vmatprep.subr.bf16.mxu0 0
  %289 = vmatpush1.bf16.msra.mxu0 %v212
  %290 = vmatprep.subr.bf16.mxu0 0
  %291 = vmatpush1.bf16.msra.mxu0 %v213
  %292 = vmatprep.subr.bf16.mxu0 0
  %293 = vmatpush1.bf16.msra.mxu0 %v214
  %294 = vmatprep.subr.bf16.mxu0 0
  %295 = vmatpush1.bf16.msra.mxu0 %v215
  %296 = vmatprep.subr.bf16.mxu0 0
  %297 = vmatpush1.bf16.msra.mxu0 %v216
  %298 = vmatprep.subr.bf16.mxu0 0
  %299 = vmatpush1.bf16.msra.mxu0 0
  %300 = vmatprep.subr.bf16.mxu0 0
  %301 = vmatpush1.bf16.msra.mxu0 0
  %302 = vmatprep.subr.bf16.mxu0 0
  %303 = vmatpush1.bf16.msra.mxu0 0
  %304 = vmatprep.subr.bf16.mxu0 0
  %305 = vmatpush1.bf16.msra.mxu0 0
  %306 = vmatprep.subr.bf16.mxu0 0
  %307 = vmatpush1.bf16.msra.mxu0 0
  %308 = vmatprep.subr.bf16.mxu0 0
  %309 = vmatpush1.bf16.msra.mxu0 0
  %310 = vmatprep.subr.bf16.mxu0 0
  %311 = vmatpush1.bf16.msra.mxu0 0
  %312 = vmatprep.subr.bf16.mxu0 0
  %313 = vmatpush1.bf16.msra.mxu0 0
  %314 = vmatprep.mubr.bf16.mxu0 0
  %315 = vmatmul.mubr.bf16.gmra.mrb[0].mxu0 %v93
  %v316 = vpop.f32.mrb[0].mxu0
  %v317 = vadd.f32 %v276, %v316
  %v318 = vpop.f32.mrb[0].mxu0
  %v319 = vpop.f32.mrb[0].mxu0
  %v320 = vadd.f32 %v279, %v319
  %v321 = vpop.f32.mrb[0].mxu0
  %322 = vdwg.mxu0
  %v323 = vadd.f32 %v27, %v317
  %v324 = vadd.f32 %v28, %v320
  %325 = vst [vmem:[#allocation2] sm:$0xff] %v323
  %326 = vst [vmem:[#allocation2 + $0x8] sm:$0xff] %v324
  // Predicated region
  $region26: #{vae_forward.13} parent=0 // pred_check
    %p327 = pneg %p21
  $region27: #{vae_forward.13} parent=0 // pred_check_branch
    %329 = sbr.rel (%p327) target = $region29
  $region28: #{vae_forward.13} parent=0 // pred_region
    %v330 = vld [vmem:[#allocation2] sm:$0xff]
    %v331 = vld [vmem:[#allocation2 + $0x8] sm:$0xff]
    %v332 = vld [vmem:[%s2] sm:$0x1]
    %v334 = vlaneseq
    %v335 = vshrl.u32 %v334, 7
    %v336 = vsub.s32 0, %v335
    %v337 = vrot.slane %v332, %v336
    %v339 = vadd.f32 %v330, %v337
    %v340 = vadd.f32 %v331, %v337
    %v341 = vld [vmem:[%s3] sm:$0x1]
    %v343 = vlaneseq
    %v344 = vshrl.u32 %v343, 7
    %v345 = vsub.s32 0, %v344
    %v346 = vrot.slane %v341, %v345
    %v348 = vmul.f32 %v339, %v346
    %v349 = vmul.f32 %v340, %v346
    %v350 = vld [vmem:[%s4] sm:$0x1]
    %v352 = vlaneseq
    %v353 = vshrl.u32 %v352, 7
    %v354 = vsub.s32 0, %v353
    %v355 = vrot.slane %v350, %v354
    %v357 = vadd.f32 %v348, %v355
    %v358 = vadd.f32 %v349, %v355
    %vm359 = vcmp.gt.f32.partialorder %v357, 0.0
    %vm360 = vcmp.gt.f32.partialorder %v358, 0.0
    %v361 = vmul.f32 %v357, 0.01
    %v362 = vmul.f32 %v358, 0.01
    %v363 = vsel %vm359, %v357, %v361
    %v364 = vsel %vm360, %v358, %v362
    %365 = vst [vmem:[%s5] sm:$0xff] %v363
    %366 = vst [vmem:[%s5 + $0x8] sm:$0xff] %v364
  $region29: #{vae_forward.13} parent=0 // pred_fallthru
    _
  // Predicated region
  $region30: #{vae_forward.13} parent=0 // pred_check
    _
  $region31: #{vae_forward.13} parent=0 // pred_check_branch
    %368 = sbr.rel (0) target = $region33
  $region32: #{vae_forward.13} parent=0 // pred_region
    _
  $region33: #{vae_forward.13} parent=0 // pred_fallthru
    _
  // Predicated region
  $region34: #{vae_forward.13} parent=0 // pred_check
    _
  $region35: #{vae_forward.13} parent=0 // pred_check_branch
    %370 = sbr.rel (0) target = $region37
  $region36: #{vae_forward.13} parent=0 // pred_region
    _
  $region37: #{vae_forward.13} parent=0 // pred_fallthru
    _

// kernel: vae_forward.14
$region0: #{vae_forward.14}
  #allocation0 [shape = 'u32[]', space=smem, size = 0x4, offset = 0x4, fixed_abs, tag = 'smem constant byte address 0x4 - core index']
  #allocation1 [shape = 'u32[144,128]{1,0:T(1,128)}', space=vmem, size = 0x12000, scoped, tag = 'internal scratch']
  #allocation2 [shape = 'f32[32,128]{1,0:T(8,128)}', space=vmem, size = 0x4000, scoped, tag = 'scratch operand']
  %s0 = inlined_call_operand.vmem [shape: bf16[32,256], index: 0, kind: input, shape index: {}]
  %s1 = inlined_call_operand.vmem [shape: bf16[256,128], index: 1, kind: input, shape index: {}]
  %s2 = inlined_call_operand.vmem [shape: f32[1,128], index: 2, kind: input, shape index: {}]
  %s3 = inlined_call_operand.vmem [shape: f32[1,128], index: 3, kind: input, shape index: {}]
  %s4 = inlined_call_operand.vmem [shape: f32[1,128], index: 4, kind: input, shape index: {}]
  %s5 = inlined_call_operand.vmem [shape: f32[32,128], index: 5, kind: output, shape index: {}]
  %s6 = sld [smem:[#allocation0]]
  $region38: #{vae_forward.14} parent=0
    _
  %s8 = ssub.s32 1, %s6
  %s9 = scalar_select 0, %s8, %s6
  // Predicated region
  $region2: #{vae_forward.14} parent=0 // pred_check
    _
  $region3: #{vae_forward.14} parent=0 // pred_check_branch
    %11 = sbr.rel (0) target = $region5
  $region4: #{vae_forward.14} parent=0 // pred_region
    _
  $region5: #{vae_forward.14} parent=0 // pred_fallthru
    _
  // Predicated region
  $region6: #{vae_forward.14} parent=0 // pred_check
    _
  $region7: #{vae_forward.14} parent=0 // pred_check_branch
    %13 = sbr.rel (0) target = $region9
  $region8: #{vae_forward.14} parent=0 // pred_region
    _
  $region9: #{vae_forward.14} parent=0 // pred_fallthru
    _
  // Predicated region
  $region10: #{vae_forward.14} parent=0 // pred_check
    _
  $region11: #{vae_forward.14} parent=0 // pred_check_branch
    %15 = sbr.rel (0) target = $region13
  $region12: #{vae_forward.14} parent=0 // pred_region
    _
  $region13: #{vae_forward.14} parent=0 // pred_fallthru
    _
  // Predicated region
  $region14: #{vae_forward.14} parent=0 // pred_check
    _
  $region15: #{vae_forward.14} parent=0 // pred_check_branch
    %17 = sbr.rel (0) target = $region17
  $region16: #{vae_forward.14} parent=0 // pred_region
    _
  $region17: #{vae_forward.14} parent=0 // pred_fallthru
    _
  // Predicated region
  $region18: #{vae_forward.14} parent=0 // pred_check
    _
  $region19: #{vae_forward.14} parent=0 // pred_check_branch
    %19 = sbr.rel (0) target = $region21
  $region20: #{vae_forward.14} parent=0 // pred_region
    _
  $region21: #{vae_forward.14} parent=0 // pred_fallthru
    _
  %p21 = scmp.eq.s32.totalorder 0, 0
  // Predicated region
  $region22: #{vae_forward.14} parent=0 // pred_check
    %p22 = pneg %p21
  $region23: #{vae_forward.14} parent=0 // pred_check_branch
    %24 = sbr.rel (%p22) target = $region25
  $region24: #{vae_forward.14} parent=0 // pred_region
    %25 = vst [vmem:[#allocation2] sm:$0xff] 0.0
    %26 = vst [vmem:[#allocation2 + $0x8] sm:$0xff] 0.0
    %27 = vst [vmem:[#allocation2 + $0x10] sm:$0xff] 0.0
    %28 = vst [vmem:[#allocation2 + $0x18] sm:$0xff] 0.0
  $region25: #{vae_forward.14} parent=0 // pred_fallthru
    _
  %v29 = vld [vmem:[#allocation2] sm:$0xff]
  %v30 = vld [vmem:[#allocation2 + $0x8] sm:$0xff]
  %v31 = vld [vmem:[#allocation2 + $0x10] sm:$0xff]
  %v32 = vld [vmem:[#allocation2 + $0x18] sm:$0xff]
  %v33 = vld [vmem:[%s0] sm:$0xff]
  %v34 = vld [vmem:[%s0 + $0x8] sm:$0xff]
  %v35 = vld [vmem:[%s0 + $0x10] sm:$0xff]
  %v36 = vld [vmem:[%s0 + $0x18] sm:$0xff]
  %v37 = vld [vmem:[%s1] sm:$0xf]
  %v38 = vld [vmem:[%s1 + $0x4] sm:$0xf]
  %v39 = vld [vmem:[%s1 + $0x8] sm:$0xf]
  %v40 = vld [vmem:[%s1 + $0xc] sm:$0xf]
  %v41 = vld [vmem:[%s1 + $0x10] sm:$0xf]
  %v42 = vld [vmem:[%s1 + $0x14] sm:$0xf]
  %v43 = vld [vmem:[%s1 + $0x18] sm:$0xf]
  %v44 = vld [vmem:[%s1 + $0x1c] sm:$0xf]
  %v45 = vld [vmem:[%s1 + $0x20] sm:$0xf]
  %v46 = vld [vmem:[%s1 + $0x24] sm:$0xf]
  %v47 = vld [vmem:[%s1 + $0x28] sm:$0xf]
  %v48 = vld [vmem:[%s1 + $0x2c] sm:$0xf]
  %v49 = vld [vmem:[%s1 + $0x30] sm:$0xf]
  %v50 = vld [vmem:[%s1 + $0x34] sm:$0xf]
  %v51 = vld [vmem:[%s1 + $0x38] sm:$0xf]
  %v52 = vld [vmem:[%s1 + $0x3c] sm:$0xf]
  %v53 = vld [vmem:[%s1 + $0x40] sm:$0xf]
  %v54 = vld [vmem:[%s1 + $0x44] sm:$0xf]
  %v55 = vld [vmem:[%s1 + $0x48] sm:$0xf]
  %v56 = vld [vmem:[%s1 + $0x4c] sm:$0xf]
  %v57 = vld [vmem:[%s1 + $0x50] sm:$0xf]
  %v58 = vld [vmem:[%s1 + $0x54] sm:$0xf]
  %v59 = vld [vmem:[%s1 + $0x58] sm:$0xf]
  %v60 = vld [vmem:[%s1 + $0x5c] sm:$0xf]
  %v61 = vld [vmem:[%s1 + $0x60] sm:$0xf]
  %v62 = vld [vmem:[%s1 + $0x64] sm:$0xf]
  %v63 = vld [vmem:[%s1 + $0x68] sm:$0xf]
  %v64 = vld [vmem:[%s1 + $0x6c] sm:$0xf]
  %v65 = vld [vmem:[%s1 + $0x70] sm:$0xf]
  %v66 = vld [vmem:[%s1 + $0x74] sm:$0xf]
  %v67 = vld [vmem:[%s1 + $0x78] sm:$0xf]
  %v68 = vld [vmem:[%s1 + $0x7c] sm:$0xf]
  %v73 = vunpack.c.l.b16 %v33
  %v74 = vunpack.c.h.b16 %v33
  %v75 = vunpack.c.l.b16 %v34
  %v76 = vunpack.c.h.b16 %v34
  %v77 = vunpack.c.l.b16 %v35
  %v78 = vunpack.c.h.b16 %v35
  %v79 = vunpack.c.l.b16 %v36
  %v80 = vunpack.c.h.b16 %v36
  %v81 = vpack.c.b16 %v75, %v73
  %v82 = vpack.c.b16 %v76, %v74
  %v83 = vpack.c.b16 %v79, %v77
  %v84 = vpack.c.b16 %v80, %v78
  %v121 = vunpack.c.l.b16 %v37
  %v122 = vunpack.c.l.b16 %v38
  %v123 = vunpack.c.l.b16 %v39
  %v124 = vunpack.c.l.b16 %v40
  %v125 = vunpack.c.l.b16 %v41
  %v126 = vunpack.c.l.b16 %v42
  %v127 = vunpack.c.l.b16 %v43
  %v128 = vunpack.c.l.b16 %v44
  %v129 = vunpack.c.l.b16 %v45
  %v130 = vunpack.c.l.b16 %v46
  %v131 = vunpack.c.l.b16 %v47
  %v132 = vunpack.c.l.b16 %v48
  %v133 = vunpack.c.l.b16 %v49
  %v134 = vunpack.c.l.b16 %v50
  %v135 = vunpack.c.l.b16 %v51
  %v136 = vunpack.c.l.b16 %v52
  %v137 = vunpack.c.l.b16 %v53
  %v138 = vunpack.c.l.b16 %v54
  %v139 = vunpack.c.l.b16 %v55
  %v140 = vunpack.c.l.b16 %v56
  %v141 = vunpack.c.l.b16 %v57
  %v142 = vunpack.c.l.b16 %v58
  %v143 = vunpack.c.l.b16 %v59
  %v144 = vunpack.c.l.b16 %v60
  %v145 = vunpack.c.l.b16 %v61
  %v146 = vunpack.c.l.b16 %v62
  %v147 = vunpack.c.l.b16 %v63
  %v148 = vunpack.c.l.b16 %v64
  %v149 = vunpack.c.l.b16 %v65
  %v150 = vunpack.c.l.b16 %v66
  %v151 = vunpack.c.l.b16 %v67
  %v152 = vunpack.c.l.b16 %v68
  %v153 = vpack.c.b16 %v122, %v121
  %v154 = vpack.c.b16 %v124, %v123
  %v155 = vpack.c.b16 %v126, %v125
  %v156 = vpack.c.b16 %v128, %v127
  %v157 = vpack.c.b16 %v130, %v129
  %v158 = vpack.c.b16 %v132, %v131
  %v159 = vpack.c.b16 %v134, %v133
  %v160 = vpack.c.b16 %v136, %v135
  %v161 = vpack.c.b16 %v138, %v137
  %v162 = vpack.c.b16 %v140, %v139
  %v163 = vpack.c.b16 %v142, %v141
  %v164 = vpack.c.b16 %v144, %v143
  %v165 = vpack.c.b16 %v146, %v145
  %v166 = vpack.c.b16 %v148, %v147
  %v167 = vpack.c.b16 %v150, %v149
  %v168 = vpack.c.b16 %v152, %v151
  %185 = vmatprep.subr.bf16.mxu0 0
  %186 = vmatpush1.bf16.msra.mxu0 %v153
  %187 = vmatprep.subr.bf16.mxu0 0
  %188 = vmatpush1.bf16.msra.mxu0 %v154
  %189 = vmatprep.subr.bf16.mxu0 0
  %190 = vmatpush1.bf16.msra.mxu0 %v155
  %191 = vmatprep.subr.bf16.mxu0 0
  %192 = vmatpush1.bf16.msra.mxu0 %v156
  %193 = vmatprep.subr.bf16.mxu0 0
  %194 = vmatpush1.bf16.msra.mxu0 %v157
  %195 = vmatprep.subr.bf16.mxu0 0
  %196 = vmatpush1.bf16.msra.mxu0 %v158
  %197 = vmatprep.subr.bf16.mxu0 0
  %198 = vmatpush1.bf16.msra.mxu0 %v159
  %199 = vmatprep.subr.bf16.mxu0 0
  %200 = vmatpush1.bf16.msra.mxu0 %v160
  %201 = vmatprep.subr.bf16.mxu0 0
  %202 = vmatpush1.bf16.msra.mxu0 %v161
  %203 = vmatprep.subr.bf16.mxu0 0
  %204 = vmatpush1.bf16.msra.mxu0 %v162
  %205 = vmatprep.subr.bf16.mxu0 0
  %206 = vmatpush1.bf16.msra.mxu0 %v163
  %207 = vmatprep.subr.bf16.mxu0 0
  %208 = vmatpush1.bf16.msra.mxu0 %v164
  %209 = vmatprep.subr.bf16.mxu0 0
  %210 = vmatpush1.bf16.msra.mxu0 %v165
  %211 = vmatprep.subr.bf16.mxu0 0
  %212 = vmatpush1.bf16.msra.mxu0 %v166
  %213 = vmatprep.subr.bf16.mxu0 0
  %214 = vmatpush1.bf16.msra.mxu0 %v167
  %215 = vmatprep.subr.bf16.mxu0 0
  %216 = vmatpush1.bf16.msra.mxu0 %v168
  %217 = vmatprep.mubr.bf16.mxu0 %v82
  %218 = vmatmul.mubr.bf16.gmra.mrb[0].mxu0 %v81
  %v219 = vpop.f32.mrb[0].mxu0
  %v220 = vadd.f32 0.0, %v219
  %v221 = vpop.f32.mrb[0].mxu0
  %v222 = vpop.f32.mrb[0].mxu0
  %v223 = vadd.f32 0.0, %v222
  %v224 = vpop.f32.mrb[0].mxu0
  %225 = vmatprep.mubr.bf16.mxu0 %v84
  %226 = vmatmul.mubr.bf16.gmra.mrb[0].mxu0 %v83
  %v227 = vpop.f32.mrb[0].mxu0
  %v228 = vadd.f32 0.0, %v227
  %v229 = vpop.f32.mrb[0].mxu0
  %v230 = vpop.f32.mrb[0].mxu0
  %v231 = vadd.f32 0.0, %v230
  %v232 = vpop.f32.mrb[0].mxu0
  %233 = vdwg.mxu0
  %v234 = vadd.f32 %v29, %v220
  %v235 = vadd.f32 %v30, %v223
  %v236 = vadd.f32 %v31, %v228
  %v237 = vadd.f32 %v32, %v231
  %238 = vst [vmem:[#allocation2] sm:$0xff] %v234
  %239 = vst [vmem:[#allocation2 + $0x8] sm:$0xff] %v235
  %240 = vst [vmem:[#allocation2 + $0x10] sm:$0xff] %v236
  %241 = vst [vmem:[#allocation2 + $0x18] sm:$0xff] %v237
  // Predicated region
  $region26: #{vae_forward.14} parent=0 // pred_check
    %p242 = pneg %p21
  $region27: #{vae_forward.14} parent=0 // pred_check_branch
    %244 = sbr.rel (%p242) target = $region29
  $region28: #{vae_forward.14} parent=0 // pred_region
    %v245 = vld [vmem:[#allocation2] sm:$0xff]
    %v246 = vld [vmem:[#allocation2 + $0x8] sm:$0xff]
    %v247 = vld [vmem:[#allocation2 + $0x10] sm:$0xff]
    %v248 = vld [vmem:[#allocation2 + $0x18] sm:$0xff]
    %v249 = vld [vmem:[%s2] sm:$0x1]
    %v251 = vlaneseq
    %v252 = vshrl.u32 %v251, 7
    %v253 = vsub.s32 0, %v252
    %v254 = vrot.slane %v249, %v253
    %v256 = vadd.f32 %v245, %v254
    %v257 = vadd.f32 %v246, %v254
    %v258 = vadd.f32 %v247, %v254
    %v259 = vadd.f32 %v248, %v254
    %v260 = vld [vmem:[%s3] sm:$0x1]
    %v262 = vlaneseq
    %v263 = vshrl.u32 %v262, 7
    %v264 = vsub.s32 0, %v263
    %v265 = vrot.slane %v260, %v264
    %v267 = vmul.f32 %v256, %v265
    %v268 = vmul.f32 %v257, %v265
    %v269 = vmul.f32 %v258, %v265
    %v270 = vmul.f32 %v259, %v265
    %v271 = vld [vmem:[%s4] sm:$0x1]
    %v273 = vlaneseq
    %v274 = vshrl.u32 %v273, 7
    %v275 = vsub.s32 0, %v274
    %v276 = vrot.slane %v271, %v275
    %v278 = vadd.f32 %v267, %v276
    %v279 = vadd.f32 %v268, %v276
    %v280 = vadd.f32 %v269, %v276
    %v281 = vadd.f32 %v270, %v276
    %vm282 = vcmp.gt.f32.partialorder %v278, 0.0
    %vm283 = vcmp.gt.f32.partialorder %v279, 0.0
    %vm284 = vcmp.gt.f32.partialorder %v280, 0.0
    %vm285 = vcmp.gt.f32.partialorder %v281, 0.0
    %v286 = vmul.f32 %v278, 0.01
    %v287 = vmul.f32 %v279, 0.01
    %v288 = vmul.f32 %v280, 0.01
    %v289 = vmul.f32 %v281, 0.01
    %v290 = vsel %vm282, %v278, %v286
    %v291 = vsel %vm283, %v279, %v287
    %v292 = vsel %vm284, %v280, %v288
    %v293 = vsel %vm285, %v281, %v289
    %294 = vst [vmem:[%s5] sm:$0xff] %v290
    %295 = vst [vmem:[%s5 + $0x8] sm:$0xff] %v291
    %296 = vst [vmem:[%s5 + $0x10] sm:$0xff] %v292
    %297 = vst [vmem:[%s5 + $0x18] sm:$0xff] %v293
  $region29: #{vae_forward.14} parent=0 // pred_fallthru
    _
  // Predicated region
  $region30: #{vae_forward.14} parent=0 // pred_check
    _
  $region31: #{vae_forward.14} parent=0 // pred_check_branch
    %299 = sbr.rel (0) target = $region33
  $region32: #{vae_forward.14} parent=0 // pred_region
    _
  $region33: #{vae_forward.14} parent=0 // pred_fallthru
    _
  // Predicated region
  $region34: #{vae_forward.14} parent=0 // pred_check
    _
  $region35: #{vae_forward.14} parent=0 // pred_check_branch
    %301 = sbr.rel (0) target = $region37
  $region36: #{vae_forward.14} parent=0 // pred_region
    _
  $region37: #{vae_forward.14} parent=0 // pred_fallthru
    _

// kernel: vae_forward.15
$region0: #{vae_forward.15}
  #allocation0 [shape = 'u32[]', space=smem, size = 0x4, offset = 0x4, fixed_abs, tag = 'smem constant byte address 0x4 - core index']
  #allocation1 [shape = 'u32[144,128]{1,0:T(1,128)}', space=vmem, size = 0x12000, scoped, tag = 'internal scratch']
  #allocation2 [shape = 'f32[16,128]{1,0:T(8,128)}', space=vmem, size = 0x2000, scoped, tag = 'scratch operand']
  %s0 = inlined_call_operand.vmem [shape: bf16[16,384], index: 0, kind: input, shape index: {}]
  %s1 = inlined_call_operand.vmem [shape: bf16[384,128], index: 1, kind: input, shape index: {}]
  %s2 = inlined_call_operand.vmem [shape: f32[1,128], index: 2, kind: input, shape index: {}]
  %s3 = inlined_call_operand.vmem [shape: bf16[128,128], index: 3, kind: input, shape index: {}]
  %s4 = inlined_call_operand.vmem [shape: f32[1,128], index: 4, kind: input, shape index: {}]
  %s5 = inlined_call_operand.vmem [shape: f32[16,128], index: 5, kind: output, shape index: {}]
  %s6 = sld [smem:[#allocation0]]
  $region38: #{vae_forward.15} parent=0
    _
  %s8 = ssub.s32 1, %s6
  %s9 = scalar_select 0, %s8, %s6
  // Predicated region
  $region2: #{vae_forward.15} parent=0 // pred_check
    _
  $region3: #{vae_forward.15} parent=0 // pred_check_branch
    %11 = sbr.rel (0) target = $region5
  $region4: #{vae_forward.15} parent=0 // pred_region
    _
  $region5: #{vae_forward.15} parent=0 // pred_fallthru
    _
  // Predicated region
  $region6: #{vae_forward.15} parent=0 // pred_check
    _
  $region7: #{vae_forward.15} parent=0 // pred_check_branch
    %13 = sbr.rel (0) target = $region9
  $region8: #{vae_forward.15} parent=0 // pred_region
    _
  $region9: #{vae_forward.15} parent=0 // pred_fallthru
    _
  // Predicated region
  $region10: #{vae_forward.15} parent=0 // pred_check
    _
  $region11: #{vae_forward.15} parent=0 // pred_check_branch
    %15 = sbr.rel (0) target = $region13
  $region12: #{vae_forward.15} parent=0 // pred_region
    _
  $region13: #{vae_forward.15} parent=0 // pred_fallthru
    _
  // Predicated region
  $region14: #{vae_forward.15} parent=0 // pred_check
    _
  $region15: #{vae_forward.15} parent=0 // pred_check_branch
    %17 = sbr.rel (0) target = $region17
  $region16: #{vae_forward.15} parent=0 // pred_region
    _
  $region17: #{vae_forward.15} parent=0 // pred_fallthru
    _
  // Predicated region
  $region18: #{vae_forward.15} parent=0 // pred_check
    _
  $region19: #{vae_forward.15} parent=0 // pred_check_branch
    %19 = sbr.rel (0) target = $region21
  $region20: #{vae_forward.15} parent=0 // pred_region
    _
  $region21: #{vae_forward.15} parent=0 // pred_fallthru
    _
  %p21 = scmp.eq.s32.totalorder 0, 0
  // Predicated region
  $region22: #{vae_forward.15} parent=0 // pred_check
    %p22 = pneg %p21
  $region23: #{vae_forward.15} parent=0 // pred_check_branch
    %24 = sbr.rel (%p22) target = $region25
  $region24: #{vae_forward.15} parent=0 // pred_region
    %25 = vst [vmem:[#allocation2] sm:$0xff] 0.0
    %26 = vst [vmem:[#allocation2 + $0x8] sm:$0xff] 0.0
  $region25: #{vae_forward.15} parent=0 // pred_fallthru
    _
  %v27 = vld [vmem:[#allocation2] sm:$0xff]
  %v28 = vld [vmem:[#allocation2 + $0x8] sm:$0xff]
  %v29 = vld [vmem:[%s0] sm:$0xff]
  %v30 = vld [vmem:[%s0 + $0x8] sm:$0xf]
  %v31 = vld [vmem:[%s0 + $0xc] sm:$0xff]
  %v32 = vld [vmem:[%s0 + $0x14] sm:$0xf]
  %v33 = vld [vmem:[%s1] sm:$0xf]
  %v34 = vld [vmem:[%s1 + $0x4] sm:$0xf]
  %v35 = vld [vmem:[%s1 + $0x8] sm:$0xf]
  %v36 = vld [vmem:[%s1 + $0xc] sm:$0xf]
  %v37 = vld [vmem:[%s1 + $0x10] sm:$0xf]
  %v38 = vld [vmem:[%s1 + $0x14] sm:$0xf]
  %v39 = vld [vmem:[%s1 + $0x18] sm:$0xf]
  %v40 = vld [vmem:[%s1 + $0x1c] sm:$0xf]
  %v41 = vld [vmem:[%s1 + $0x20] sm:$0xf]
  %v42 = vld [vmem:[%s1 + $0x24] sm:$0xf]
  %v43 = vld [vmem:[%s1 + $0x28] sm:$0xf]
  %v44 = vld [vmem:[%s1 + $0x2c] sm:$0xf]
  %v45 = vld [vmem:[%s1 + $0x30] sm:$0xf]
  %v46 = vld [vmem:[%s1 + $0x34] sm:$0xf]
  %v47 = vld [vmem:[%s1 + $0x38] sm:$0xf]
  %v48 = vld [vmem:[%s1 + $0x3c] sm:$0xf]
  %v49 = vld [vmem:[%s1 + $0x40] sm:$0xf]
  %v50 = vld [vmem:[%s1 + $0x44] sm:$0xf]
  %v51 = vld [vmem:[%s1 + $0x48] sm:$0xf]
  %v52 = vld [vmem:[%s1 + $0x4c] sm:$0xf]
  %v53 = vld [vmem:[%s1 + $0x50] sm:$0xf]
  %v54 = vld [vmem:[%s1 + $0x54] sm:$0xf]
  %v55 = vld [vmem:[%s1 + $0x58] sm:$0xf]
  %v56 = vld [vmem:[%s1 + $0x5c] sm:$0xf]
  %v57 = vld [vmem:[%s1 + $0x60] sm:$0xf]
  %v58 = vld [vmem:[%s1 + $0x64] sm:$0xf]
  %v59 = vld [vmem:[%s1 + $0x68] sm:$0xf]
  %v60 = vld [vmem:[%s1 + $0x6c] sm:$0xf]
  %v61 = vld [vmem:[%s1 + $0x70] sm:$0xf]
  %v62 = vld [vmem:[%s1 + $0x74] sm:$0xf]
  %v63 = vld [vmem:[%s1 + $0x78] sm:$0xf]
  %v64 = vld [vmem:[%s1 + $0x7c] sm:$0xf]
  %v65 = vld [vmem:[%s1 + $0x80] sm:$0xf]
  %v66 = vld [vmem:[%s1 + $0x84] sm:$0xf]
  %v67 = vld [vmem:[%s1 + $0x88] sm:$0xf]
  %v68 = vld [vmem:[%s1 + $0x8c] sm:$0xf]
  %v69 = vld [vmem:[%s1 + $0x90] sm:$0xf]
  %v70 = vld [vmem:[%s1 + $0x94] sm:$0xf]
  %v71 = vld [vmem:[%s1 + $0x98] sm:$0xf]
  %v72 = vld [vmem:[%s1 + $0x9c] sm:$0xf]
  %v73 = vld [vmem:[%s1 + $0xa0] sm:$0xf]
  %v74 = vld [vmem:[%s1 + $0xa4] sm:$0xf]
  %v75 = vld [vmem:[%s1 + $0xa8] sm:$0xf]
  %v76 = vld [vmem:[%s1 + $0xac] sm:$0xf]
  %v77 = vld [vmem:[%s1 + $0xb0] sm:$0xf]
  %v78 = vld [vmem:[%s1 + $0xb4] sm:$0xf]
  %v79 = vld [vmem:[%s1 + $0xb8] sm:$0xf]
  %v80 = vld [vmem:[%s1 + $0xbc] sm:$0xf]
  %v85 = vunpack.c.l.b16 %v29
  %v86 = vunpack.c.h.b16 %v29
  %v87 = vunpack.c.l.b16 %v30
  %v88 = vunpack.c.l.b16 %v31
  %v89 = vunpack.c.h.b16 %v31
  %v90 = vunpack.c.l.b16 %v32
  %v91 = vpack.c.b16 %v88, %v85
  %v92 = vpack.c.b16 %v89, %v86
  %v93 = vpack.c.b16 %v90, %v87
  %v145 = vunpack.c.l.b16 %v33
  %v146 = vunpack.c.l.b16 %v34
  %v147 = vunpack.c.l.b16 %v35
  %v148 = vunpack.c.l.b16 %v36
  %v149 = vunpack.c.l.b16 %v37
  %v150 = vunpack.c.l.b16 %v38
  %v151 = vunpack.c.l.b16 %v39
  %v152 = vunpack.c.l.b16 %v40
  %v153 = vunpack.c.l.b16 %v41
  %v154 = vunpack.c.l.b16 %v42
  %v155 = vunpack.c.l.b16 %v43
  %v156 = vunpack.c.l.b16 %v44
  %v157 = vunpack.c.l.b16 %v45
  %v158 = vunpack.c.l.b16 %v46
  %v159 = vunpack.c.l.b16 %v47
  %v160 = vunpack.c.l.b16 %v48
  %v161 = vunpack.c.l.b16 %v49
  %v162 = vunpack.c.l.b16 %v50
  %v163 = vunpack.c.l.b16 %v51
  %v164 = vunpack.c.l.b16 %v52
  %v165 = vunpack.c.l.b16 %v53
  %v166 = vunpack.c.l.b16 %v54
  %v167 = vunpack.c.l.b16 %v55
  %v168 = vunpack.c.l.b16 %v56
  %v169 = vunpack.c.l.b16 %v57
  %v170 = vunpack.c.l.b16 %v58
  %v171 = vunpack.c.l.b16 %v59
  %v172 = vunpack.c.l.b16 %v60
  %v173 = vunpack.c.l.b16 %v61
  %v174 = vunpack.c.l.b16 %v62
  %v175 = vunpack.c.l.b16 %v63
  %v176 = vunpack.c.l.b16 %v64
  %v177 = vunpack.c.l.b16 %v65
  %v178 = vunpack.c.l.b16 %v66
  %v179 = vunpack.c.l.b16 %v67
  %v180 = vunpack.c.l.b16 %v68
  %v181 = vunpack.c.l.b16 %v69
  %v182 = vunpack.c.l.b16 %v70
  %v183 = vunpack.c.l.b16 %v71
  %v184 = vunpack.c.l.b16 %v72
  %v185 = vunpack.c.l.b16 %v73
  %v186 = vunpack.c.l.b16 %v74
  %v187 = vunpack.c.l.b16 %v75
  %v188 = vunpack.c.l.b16 %v76
  %v189 = vunpack.c.l.b16 %v77
  %v190 = vunpack.c.l.b16 %v78
  %v191 = vunpack.c.l.b16 %v79
  %v192 = vunpack.c.l.b16 %v80
  %v193 = vpack.c.b16 %v146, %v145
  %v194 = vpack.c.b16 %v148, %v147
  %v195 = vpack.c.b16 %v150, %v149
  %v196 = vpack.c.b16 %v152, %v151
  %v197 = vpack.c.b16 %v154, %v153
  %v198 = vpack.c.b16 %v156, %v155
  %v199 = vpack.c.b16 %v158, %v157
  %v200 = vpack.c.b16 %v160, %v159
  %v201 = vpack.c.b16 %v162, %v161
  %v202 = vpack.c.b16 %v164, %v163
  %v203 = vpack.c.b16 %v166, %v165
  %v204 = vpack.c.b16 %v168, %v167
  %v205 = vpack.c.b16 %v170, %v169
  %v206 = vpack.c.b16 %v172, %v171
  %v207 = vpack.c.b16 %v174, %v173
  %v208 = vpack.c.b16 %v176, %v175
  %v209 = vpack.c.b16 %v178, %v177
  %v210 = vpack.c.b16 %v180, %v179
  %v211 = vpack.c.b16 %v182, %v181
  %v212 = vpack.c.b16 %v184, %v183
  %v213 = vpack.c.b16 %v186, %v185
  %v214 = vpack.c.b16 %v188, %v187
  %v215 = vpack.c.b16 %v190, %v189
  %v216 = vpack.c.b16 %v192, %v191
  %241 = vmatprep.subr.bf16.mxu0 0
  %242 = vmatpush1.bf16.msra.mxu0 %v193
  %243 = vmatprep.subr.bf16.mxu0 0
  %244 = vmatpush1.bf16.msra.mxu0 %v194
  %245 = vmatprep.subr.bf16.mxu0 0
  %246 = vmatpush1.bf16.msra.mxu0 %v195
  %247 = vmatprep.subr.bf16.mxu0 0
  %248 = vmatpush1.bf16.msra.mxu0 %v196
  %249 = vmatprep.subr.bf16.mxu0 0
  %250 = vmatpush1.bf16.msra.mxu0 %v197
  %251 = vmatprep.subr.bf16.mxu0 0
  %252 = vmatpush1.bf16.msra.mxu0 %v198
  %253 = vmatprep.subr.bf16.mxu0 0
  %254 = vmatpush1.bf16.msra.mxu0 %v199
  %255 = vmatprep.subr.bf16.mxu0 0
  %256 = vmatpush1.bf16.msra.mxu0 %v200
  %257 = vmatprep.subr.bf16.mxu0 0
  %258 = vmatpush1.bf16.msra.mxu0 %v201
  %259 = vmatprep.subr.bf16.mxu0 0
  %260 = vmatpush1.bf16.msra.mxu0 %v202
  %261 = vmatprep.subr.bf16.mxu0 0
  %262 = vmatpush1.bf16.msra.mxu0 %v203
  %263 = vmatprep.subr.bf16.mxu0 0
  %264 = vmatpush1.bf16.msra.mxu0 %v204
  %265 = vmatprep.subr.bf16.mxu0 0
  %266 = vmatpush1.bf16.msra.mxu0 %v205
  %267 = vmatprep.subr.bf16.mxu0 0
  %268 = vmatpush1.bf16.msra.mxu0 %v206
  %269 = vmatprep.subr.bf16.mxu0 0
  %270 = vmatpush1.bf16.msra.mxu0 %v207
  %271 = vmatprep.subr.bf16.mxu0 0
  %272 = vmatpush1.bf16.msra.mxu0 %v208
  %273 = vmatprep.mubr.bf16.mxu0 %v92
  %274 = vmatmul.mubr.bf16.gmra.mrb[0].mxu0 %v91
  %v275 = vpop.f32.mrb[0].mxu0
  %v276 = vadd.f32 0.0, %v275
  %v277 = vpop.f32.mrb[0].mxu0
  %v278 = vpop.f32.mrb[0].mxu0
  %v279 = vadd.f32 0.0, %v278
  %v280 = vpop.f32.mrb[0].mxu0
  %281 = vdwg.mxu0
  %282 = vmatprep.subr.bf16.mxu0 0
  %283 = vmatpush1.bf16.msra.mxu0 %v209
  %284 = vmatprep.subr.bf16.mxu0 0
  %285 = vmatpush1.bf16.msra.mxu0 %v210
  %286 = vmatprep.subr.bf16.mxu0 0
  %287 = vmatpush1.bf16.msra.mxu0 %v211
  %288 = vmatprep.subr.bf16.mxu0 0
  %289 = vmatpush1.bf16.msra.mxu0 %v212
  %290 = vmatprep.subr.bf16.mxu0 0
  %291 = vmatpush1.bf16.msra.mxu0 %v213
  %292 = vmatprep.subr.bf16.mxu0 0
  %293 = vmatpush1.bf16.msra.mxu0 %v214
  %294 = vmatprep.subr.bf16.mxu0 0
  %295 = vmatpush1.bf16.msra.mxu0 %v215
  %296 = vmatprep.subr.bf16.mxu0 0
  %297 = vmatpush1.bf16.msra.mxu0 %v216
  %298 = vmatprep.subr.bf16.mxu0 0
  %299 = vmatpush1.bf16.msra.mxu0 0
  %300 = vmatprep.subr.bf16.mxu0 0
  %301 = vmatpush1.bf16.msra.mxu0 0
  %302 = vmatprep.subr.bf16.mxu0 0
  %303 = vmatpush1.bf16.msra.mxu0 0
  %304 = vmatprep.subr.bf16.mxu0 0
  %305 = vmatpush1.bf16.msra.mxu0 0
  %306 = vmatprep.subr.bf16.mxu0 0
  %307 = vmatpush1.bf16.msra.mxu0 0
  %308 = vmatprep.subr.bf16.mxu0 0
  %309 = vmatpush1.bf16.msra.mxu0 0
  %310 = vmatprep.subr.bf16.mxu0 0
  %311 = vmatpush1.bf16.msra.mxu0 0
  %312 = vmatprep.subr.bf16.mxu0 0
  %313 = vmatpush1.bf16.msra.mxu0 0
  %314 = vmatprep.mubr.bf16.mxu0 0
  %315 = vmatmul.mubr.bf16.gmra.mrb[0].mxu0 %v93
  %v316 = vpop.f32.mrb[0].mxu0
  %v317 = vadd.f32 %v276, %v316
  %v318 = vpop.f32.mrb[0].mxu0
  %v319 = vpop.f32.mrb[0].mxu0
  %v320 = vadd.f32 %v279, %v319
  %v321 = vpop.f32.mrb[0].mxu0
  %322 = vdwg.mxu0
  %v323 = vadd.f32 %v27, %v317
  %v324 = vadd.f32 %v28, %v320
  %325 = vst [vmem:[#allocation2] sm:$0xff] %v323
  %326 = vst [vmem:[#allocation2 + $0x8] sm:$0xff] %v324
  // Predicated region
  $region26: #{vae_forward.15} parent=0 // pred_check
    %p327 = pneg %p21
  $region27: #{vae_forward.15} parent=0 // pred_check_branch
    %329 = sbr.rel (%p327) target = $region29
  $region28: #{vae_forward.15} parent=0 // pred_region
    %v330 = vld [vmem:[#allocation2] sm:$0xff]
    %v331 = vld [vmem:[#allocation2 + $0x8] sm:$0xff]
    %v332 = vld [vmem:[%s2] sm:$0x1]
    %v334 = vlaneseq
    %v335 = vshrl.u32 %v334, 7
    %v336 = vsub.s32 0, %v335
    %v337 = vrot.slane %v332, %v336
    %v339 = vadd.f32 %v330, %v337
    %v340 = vadd.f32 %v331, %v337
    %v341 = vpack.c.bf16 %v340, %v339
    %v342 = vld [vmem:[%s3] sm:$0xf]
    %v343 = vld [vmem:[%s3 + $0x4] sm:$0xf]
    %v344 = vld [vmem:[%s3 + $0x8] sm:$0xf]
    %v345 = vld [vmem:[%s3 + $0xc] sm:$0xf]
    %v346 = vld [vmem:[%s3 + $0x10] sm:$0xf]
    %v347 = vld [vmem:[%s3 + $0x14] sm:$0xf]
    %v348 = vld [vmem:[%s3 + $0x18] sm:$0xf]
    %v349 = vld [vmem:[%s3 + $0x1c] sm:$0xf]
    %v350 = vld [vmem:[%s3 + $0x20] sm:$0xf]
    %v351 = vld [vmem:[%s3 + $0x24] sm:$0xf]
    %v352 = vld [vmem:[%s3 + $0x28] sm:$0xf]
    %v353 = vld [vmem:[%s3 + $0x2c] sm:$0xf]
    %v354 = vld [vmem:[%s3 + $0x30] sm:$0xf]
    %v355 = vld [vmem:[%s3 + $0x34] sm:$0xf]
    %v356 = vld [vmem:[%s3 + $0x38] sm:$0xf]
    %v357 = vld [vmem:[%s3 + $0x3c] sm:$0xf]
    %v358 = vld [vmem:[%s4] sm:$0x1]
    %v360 = vlaneseq
    %v361 = vshrl.u32 %v360, 7
    %v362 = vsub.s32 0, %v361
    %v363 = vrot.slane %v358, %v362
    %v381 = vunpack.c.l.b16 %v342
    %v382 = vunpack.c.l.b16 %v343
    %v383 = vunpack.c.l.b16 %v344
    %v384 = vunpack.c.l.b16 %v345
    %v385 = vunpack.c.l.b16 %v346
    %v386 = vunpack.c.l.b16 %v347
    %v387 = vunpack.c.l.b16 %v348
    %v388 = vunpack.c.l.b16 %v349
    %v389 = vunpack.c.l.b16 %v350
    %v390 = vunpack.c.l.b16 %v351
    %v391 = vunpack.c.l.b16 %v352
    %v392 = vunpack.c.l.b16 %v353
    %v393 = vunpack.c.l.b16 %v354
    %v394 = vunpack.c.l.b16 %v355
    %v395 = vunpack.c.l.b16 %v356
    %v396 = vunpack.c.l.b16 %v357
    %v397 = vpack.c.b16 %v382, %v381
    %v398 = vpack.c.b16 %v384, %v383
    %v399 = vpack.c.b16 %v386, %v385
    %v400 = vpack.c.b16 %v388, %v387
    %v401 = vpack.c.b16 %v390, %v389
    %v402 = vpack.c.b16 %v392, %v391
    %v403 = vpack.c.b16 %v394, %v393
    %v404 = vpack.c.b16 %v396, %v395
    %413 = vmatprep.subr.bf16.mxu0 0
    %414 = vmatpush1.bf16.msra.mxu0 %v397
    %415 = vmatprep.subr.bf16.mxu0 0
    %416 = vmatpush1.bf16.msra.mxu0 %v398
    %417 = vmatprep.subr.bf16.mxu0 0
    %418 = vmatpush1.bf16.msra.mxu0 %v399
    %419 = vmatprep.subr.bf16.mxu0 0
    %420 = vmatpush1.bf16.msra.mxu0 %v400
    %421 = vmatprep.subr.bf16.mxu0 0
    %422 = vmatpush1.bf16.msra.mxu0 %v401
    %423 = vmatprep.subr.bf16.mxu0 0
    %424 = vmatpush1.bf16.msra.mxu0 %v402
    %425 = vmatprep.subr.bf16.mxu0 0
    %426 = vmatpush1.bf16.msra.mxu0 %v403
    %427 = vmatprep.subr.bf16.mxu0 0
    %428 = vmatpush1.bf16.msra.mxu0 %v404
    %429 = vmatprep.subr.bf16.mxu0 0
    %430 = vmatpush1.bf16.msra.mxu0 0
    %431 = vmatprep.subr.bf16.mxu0 0
    %432 = vmatpush1.bf16.msra.mxu0 0
    %433 = vmatprep.subr.bf16.mxu0 0
    %434 = vmatpush1.bf16.msra.mxu0 0
    %435 = vmatprep.subr.bf16.mxu0 0
    %436 = vmatpush1.bf16.msra.mxu0 0
    %437 = vmatprep.subr.bf16.mxu0 0
    %438 = vmatpush1.bf16.msra.mxu0 0
    %439 = vmatprep.subr.bf16.mxu0 0
    %440 = vmatpush1.bf16.msra.mxu0 0
    %441 = vmatprep.subr.bf16.mxu0 0
    %442 = vmatpush1.bf16.msra.mxu0 0
    %443 = vmatprep.subr.bf16.mxu0 0
    %444 = vmatpush1.bf16.msra.mxu0 0
    %445 = vmatprep.mubr.bf16.mxu0 0
    %446 = vmatmul.mubr.bf16.gmra.mrb[0].mxu0 %v341
    %v447 = vpop.f32.mrb[0].mxu0
    %v448 = vadd.f32 %v363, %v447
    %v449 = vpop.f32.mrb[0].mxu0
    %v450 = vpop.f32.mrb[0].mxu0
    %v451 = vadd.f32 %v363, %v450
    %v452 = vpop.f32.mrb[0].mxu0
    %453 = vdwg.mxu0
    %454 = vst [vmem:[%s5] sm:$0xff] %v448
    %455 = vst [vmem:[%s5 + $0x8] sm:$0xff] %v451
  $region29: #{vae_forward.15} parent=0 // pred_fallthru
    _
  // Predicated region
  $region30: #{vae_forward.15} parent=0 // pred_check
    _
  $region31: #{vae_forward.15} parent=0 // pred_check_branch
    %457 = sbr.rel (0) target = $region33
  $region32: #{vae_forward.15} parent=0 // pred_region
    _
  $region33: #{vae_forward.15} parent=0 // pred_fallthru
    _
  // Predicated region
  $region34: #{vae_forward.15} parent=0 // pred_check
    _
  $region35: #{vae_forward.15} parent=0 // pred_check_branch
    %459 = sbr.rel (0) target = $region37
  $region36: #{vae_forward.15} parent=0 // pred_region
    _
  $region37: #{vae_forward.15} parent=0 // pred_fallthru
    _

</llo_original>
